<compile_context>
chip_gen: v7x
topology: tpu7x:2x2x1
jax: 0.10.0
libtpu: 0.0.40
codegen_flags: <defaults>
</compile_context>

<pallas_src>
import numpy as np
import jax
import jax.numpy as jnp
from jax.experimental import pallas as pl
from jax.experimental.pallas import tpu as pltpu

_BN_EPS = 1e-5


def _edge_aware_kernel(x_ref, bw1_ref, bw2_ref, bw3_ref, bn_g_ref, bn_b_ref,
                       fc1t_ref, fc2t_ref, cgrp_ref, cgrpt_ref, c4grp_ref,
                       c4grpt_ref, wselt_ref, chansel_ref, bsel_ref, bselt_ref,
                       alpha_ref, beta_ref,
                       out_ref, edge_ref,
                       padx_ref, pad1_ref, pad3_ref):
    f32 = jnp.float32
    B, Hp2, _ = padx_ref.shape
    H = Hp2 - 2
    BH, WC = x_ref.shape                     # (B*H, W*C) lane-dense slab
    W = wselt_ref.shape[0]
    C = WC // W
    C4 = c4grp_ref.shape[1]
    WC4 = W * C4
    inv_m = 1.0 / float(BH * W)              # 1/(B*H*W): BatchNorm batch stats

    x2 = x_ref[...]                                               # (B*H, W*C)

    def band_conv3x3(pad_ref, bw_ref):
        """3x3 conv on a lane-flat slab: 3 accumulated MXU matmuls (one per dy).

        pad_ref : (B, H+2, W*Cin) row-halo'd features (zero halo rows).
        bw_ref  : (3, W*Cin, W*Cout) banded weights (W-padding folded in).
        returns : (B*H, W*Cout) lane-flat conv output.
        """
        kp = pad_ref.shape[-1]
        acc = None
        for dy in range(3):
            rows = pad_ref[:, dy:dy + H, :].reshape(BH, kp)
            term = jnp.dot(rows, bw_ref[dy], preferred_element_type=f32)
            acc = term if acc is None else acc + term              # init from 1st tap
        return acc

    # ---- edge_conv[0]: Conv3x3(C -> C4, pad 1, no bias) ----------------------
    # Row halo built in VMEM: one full-block zero store + one interior copy.
    padx_ref[...] = jnp.zeros(padx_ref.shape, f32)
    padx_ref[:, 1:H + 1, :] = x2.reshape(B, H, WC)
    conv1 = band_conv3x3(padx_ref, bw1_ref)                       # (B*H, W*C4)

    # ---- edge_conv[1..2]: BatchNorm2d (batch stats, biased var) + ReLU -------
    # Two-pass mean/var; per-channel stats via one sublane reduction + tiny
    # group matmuls; applied as a single lane-broadcast scale/shift.
    lane_sum = jnp.sum(conv1, axis=0, keepdims=True)              # (1, W*C4)
    ch_mean = jnp.dot(lane_sum, c4grp_ref[...], preferred_element_type=f32) * inv_m
    mean_l = jnp.dot(ch_mean, c4grpt_ref[...], preferred_element_type=f32)
    centered = conv1 - mean_l
    lane_sq = jnp.sum(centered * centered, axis=0, keepdims=True)
    ch_var = jnp.dot(lane_sq, c4grp_ref[...], preferred_element_type=f32) * inv_m
    ch_scale = bn_g_ref[...] * jax.lax.rsqrt(ch_var + _BN_EPS)    # (1, C4)
    ch_shift = bn_b_ref[...] - ch_mean * ch_scale                 # (1, C4)
    scale_l = jnp.dot(ch_scale, c4grpt_ref[...], preferred_element_type=f32)
    shift_l = jnp.dot(ch_shift, c4grpt_ref[...], preferred_element_type=f32)
    h1 = jnp.maximum(conv1 * scale_l + shift_l, 0.0)              # (B*H, W*C4)

    # ---- edge_conv[3..4]: Conv3x3(C4 -> 1, pad 1, no bias) + sigmoid ---------
    pad1_ref[...] = jnp.zeros(pad1_ref.shape, f32)
    pad1_ref[:, 1:H + 1, :] = h1.reshape(B, H, WC4)
    edge = jax.nn.sigmoid(band_conv3x3(pad1_ref, bw2_ref))        # (B*H, W)

    # ---- LightweightChannelAttention: GAP + two 1x1 FCs + sigmoid ------------
    row_sum = jnp.dot(bsel_ref[...], x2, preferred_element_type=f32)       # (B, W*C)
    gap = jnp.dot(row_sum, cgrp_ref[...],
                  preferred_element_type=f32) * (1.0 / float(H * W))       # (B, C)
    z = jnp.maximum(jnp.dot(gap, fc1t_ref[...], preferred_element_type=f32), 0.0)
    att = jax.nn.sigmoid(jnp.dot(z, fc2t_ref[...], preferred_element_type=f32))  # (B, C)
    att_rows = jnp.dot(bselt_ref[...],
                       jnp.dot(att, cgrpt_ref[...], preferred_element_type=f32),
                       preferred_element_type=f32)                # (B*H, W*C)
    x_ca = x2 * att_rows                                          # (B*H, W*C)

    # ---- spatial attention: channel mean/max + Conv3x3(2 -> 1) + sigmoid -----
    # Per-channel lane selection via 0/1 matmuls (MXU) -- no cross-lane XLU
    # reductions, no strided gathers, all intermediates stay lane-flat.
    sum_w = None
    max_w = None
    for c in range(C):
        cand = jnp.dot(x_ca, chansel_ref[c], preferred_element_type=f32)   # (B*H, W)
        sum_w = cand if sum_w is None else sum_w + cand
        max_w = cand if max_w is None else jnp.maximum(max_w, cand)
    avg_w = sum_w * (1.0 / float(C))                              # (B*H, W)

    pad3_ref[...] = jnp.zeros(pad3_ref.shape, f32)
    pad3_ref[:, 1:H + 1, 0:W] = avg_w.reshape(B, H, W)            # channel 0: avg
    pad3_ref[:, 1:H + 1, W:2 * W] = max_w.reshape(B, H, W)        # channel 1: max
    spatial = jax.nn.sigmoid(band_conv3x3(pad3_ref, bw3_ref))     # (B*H, W)

    # ---- fusion: combine the per-pixel gates, broadcast once, multiply once --
    alpha = alpha_ref[0]
    beta = beta_ref[0]
    gate_w = (1.0 + edge * alpha) * spatial * beta                # (B*H, W)
    gate_full = jnp.dot(gate_w, wselt_ref[...], preferred_element_type=f32)  # (B*H, W*C)
    out_ref[...] = x_ca * gate_full
    edge_ref[...] = edge


def edge_aware_attention(x_nchw, params):
    """EdgeAwareAttention.forward.  NCHW in, (spatial_enhanced, edge_map) NCHW out."""
    B, C, H, W = x_nchw.shape
    C4 = params["w1"].shape[-1]
    WC, WC4 = W * C, W * C4

    # glue: NCHW -> lane-dense (B*H, W*C) slab.  No wrapper-side padding: the
    # halo is built in-kernel, so only the interior is DMA'd (dense, unmasked).
    x_slab = jnp.transpose(x_nchw, (0, 2, 3, 1)).astype(jnp.float32).reshape(B * H, WC)

    # ---- weight-independent 0/1 selector matrices (host constants) -----------
    f32 = np.float32
    # tap[dx, w_in, w_out] = 1 iff w_in == w_out + dx - 1 and in-bounds; this
    # folds the W-direction zero padding of a 3x3 conv into the weight matrix.
    tap = np.zeros((3, W, W), f32)
    for dx in range(3):
        for w in range(W):
            win = w + dx - 1
            if 0 <= win < W:
                tap[dx, win, w] = 1.0
    cgrp = np.tile(np.eye(C, dtype=f32), (W, 1))          # (W*C, C): lane -> channel
    c4grp = np.tile(np.eye(C4, dtype=f32), (W, 1))        # (W*C4, C4)
    wselt = np.repeat(np.eye(W, dtype=f32), C, axis=0).T  # (W, W*C): w -> its C lanes
    chansel = np.zeros((C, WC, W), f32)                   # per-channel lane selector
    for c in range(C):
        chansel[c, np.arange(W) * C + c, np.arange(W)] = 1.0
    bsel = np.repeat(np.eye(B, dtype=f32), H, axis=1)     # (B, B*H): rows of batch b

    # ---- banded conv-weight matrices: 3x3 conv == 3 matmuls on flat slabs ----
    w1 = params["w1"].astype(jnp.float32)                 # (3, 3, C, C4)
    w2 = params["w2"].astype(jnp.float32)                 # (3, 3, C4)
    w3 = params["w3"].astype(jnp.float32)                 # (3, 3, 2)
    bw1 = jnp.einsum("xuw,yxio->yuiwo", tap, w1).reshape(3, WC, WC4)
    bw2 = jnp.einsum("xuw,yxi->yuiw", tap, w2).reshape(3, WC4, W)
    bw3 = jnp.concatenate([jnp.einsum("xuw,yx->yuw", tap, w3[:, :, 0]),
                           jnp.einsum("xuw,yx->yuw", tap, w3[:, :, 1])],
                          axis=1)                         # (3, 2*W, W): [avg | max]

    bn_g = params["bn_gamma"].reshape(1, C4).astype(jnp.float32)
    bn_b = params["bn_beta"].reshape(1, C4).astype(jnp.float32)

    vspec = pl.BlockSpec(memory_space=pltpu.MemorySpace.VMEM)
    sspec = pl.BlockSpec(memory_space=pltpu.MemorySpace.SMEM)

    out_slab, edge_slab = pl.pallas_call(
        _edge_aware_kernel,
        out_shape=(jax.ShapeDtypeStruct((B * H, WC), jnp.float32),   # lane-dense
                   jax.ShapeDtypeStruct((B * H, W), jnp.float32)),
        in_specs=[vspec] * 16 + [sspec, sspec],
        out_specs=(vspec, vspec),
        scratch_shapes=[
            pltpu.VMEM((B, H + 2, WC), jnp.float32),      # row-halo'd input
            pltpu.VMEM((B, H + 2, WC4), jnp.float32),     # row-halo'd BN/ReLU feats
            pltpu.VMEM((B, H + 2, 2 * W), jnp.float32),   # row-halo'd [avg | max]
        ],
        # explicit scoped-VMEM budget; actual resident set is a few tens of KiB,
        # so this is safe on v5e/v6e (128 MiB) and leaves headroom on v7x (64 MiB)
        compiler_params=pltpu.CompilerParams(
            vmem_limit_bytes=32 * 1024 * 1024),
    )(x_slab, bw1, bw2, bw3, bn_g, bn_b,
      params["fc1_t"].astype(jnp.float32), params["fc2_t"].astype(jnp.float32),
      jnp.asarray(cgrp), jnp.asarray(cgrp.T),
      jnp.asarray(c4grp), jnp.asarray(c4grp.T),
      jnp.asarray(wselt), jnp.asarray(chansel),
      jnp.asarray(bsel), jnp.asarray(bsel.T),
      params["alpha"].astype(jnp.float32), params["beta"].astype(jnp.float32))

    out_nchw = jnp.transpose(out_slab.reshape(B, H, W, C), (0, 3, 1, 2))
    edge_nchw = edge_slab.reshape(B, 1, H, W)
    return out_nchw, edge_nchw


def make_params(key, channels):
    """Deterministic synthetic parameters with the module's shapes."""
    C = channels
    assert C >= 4 and C % 4 == 0, "EdgeAwareAttention requires channels divisible by 4"
    C4 = C // 4
    R = max(2, C // 16)
    k1, k2, k3, k4, k5 = jax.random.split(key, 5)
    return {
        # edge_conv[0]: Conv2d(C, C4, 3, bias=False); torch weight (C4, C, 3, 3)
        # stored as (ky, kx, in=C, out=C4)  (= torch_w.permute(2, 3, 1, 0)).
        "w1": 0.1 * jax.random.normal(k1, (3, 3, C, C4), jnp.float32),
        # edge_conv[1]: BatchNorm2d(C4) affine params (PyTorch default init)
        "bn_gamma": jnp.ones((C4,), jnp.float32),
        "bn_beta": jnp.zeros((C4,), jnp.float32),
        # edge_conv[3]: Conv2d(C4, 1, 3, bias=False); torch (1, C4, 3, 3)
        # stored as (ky, kx, in=C4)
        "w2": 0.1 * jax.random.normal(k2, (3, 3, C4), jnp.float32),
        # channel_att.fc: Conv2d(C, R, 1) stored transposed as (C, R) and
        #                 Conv2d(R, C, 1) stored transposed as (R, C)
        "fc1_t": 0.1 * jax.random.normal(k3, (C, R), jnp.float32),
        "fc2_t": 0.1 * jax.random.normal(k4, (R, C), jnp.float32),
        # spatial_att: Conv2d(2, 1, 3, bias=False); torch (1, 2, 3, 3)
        # stored as (ky, kx, in=[avg, max])
        "w3": 0.1 * jax.random.normal(k5, (3, 3, 2), jnp.float32),
        # learnable scalars (torch.ones(1))
        "alpha": jnp.ones((1,), jnp.float32),
        "beta": jnp.ones((1,), jnp.float32),
    }


if __name__ == "__main__":
    B, C, H, W = 2, 8, 16, 16    # W*C = 128 -> fully lane-dense slabs
    key = jax.random.PRNGKey(0)
    kx, kp = jax.random.split(key)
    x = jax.random.normal(kx, (B, C, H, W), jnp.float32)
    params = make_params(kp, C)

    spatial_enhanced, edge_map = edge_aware_attention(x, params)
    jax.block_until_ready((spatial_enhanced, edge_map))

    assert spatial_enhanced.shape == (B, C, H, W)
    assert edge_map.shape == (B, 1, H, W)
    print("KERNEL_OK")
</pallas_src>

<mosaic_0001>
module attributes {stable_mosaic.version = 11 : i64} {
  func.func @_edge_aware_kernel(%arg0: memref<32x128xf32, #tpu.memory_space<vmem>>, %arg1: memref<3x128x32xf32, #tpu.memory_space<vmem>>, %arg2: memref<3x32x16xf32, #tpu.memory_space<vmem>>, %arg3: memref<3x32x16xf32, #tpu.memory_space<vmem>>, %arg4: memref<1x2xf32, #tpu.memory_space<vmem>>, %arg5: memref<1x2xf32, #tpu.memory_space<vmem>>, %arg6: memref<8x2xf32, #tpu.memory_space<vmem>>, %arg7: memref<2x8xf32, #tpu.memory_space<vmem>>, %arg8: memref<128x8xf32, #tpu.memory_space<vmem>>, %arg9: memref<8x128xf32, #tpu.memory_space<vmem>>, %arg10: memref<32x2xf32, #tpu.memory_space<vmem>>, %arg11: memref<2x32xf32, #tpu.memory_space<vmem>>, %arg12: memref<16x128xf32, #tpu.memory_space<vmem>>, %arg13: memref<8x128x16xf32, #tpu.memory_space<vmem>>, %arg14: memref<2x32xf32, #tpu.memory_space<vmem>>, %arg15: memref<32x2xf32, #tpu.memory_space<vmem>>, %arg16: memref<1xf32, #tpu.memory_space<smem>>, %arg17: memref<1xf32, #tpu.memory_space<smem>>, %arg18: memref<32x128xf32, #tpu.memory_space<vmem>>, %arg19: memref<32x16xf32, #tpu.memory_space<vmem>>, %arg20: memref<2x18x128xf32, #tpu.memory_space<vmem>>, %arg21: memref<2x18x32xf32, #tpu.memory_space<vmem>>, %arg22: memref<2x18x32xf32, #tpu.memory_space<vmem>>) attributes {dimension_semantics = [], scalar_prefetch = 0 : i64, scratch_operands = 3 : i64, tpu.core_type = #tpu.core_type<tc>} {
    %c0 = arith.constant 0 : index
    %c0_0 = arith.constant 0 : index
    %0 = vector.load %arg0[%c0, %c0_0] : memref<32x128xf32, #tpu.memory_space<vmem>>, vector<32x128xf32>
    %cst = arith.constant 0.000000e+00 : f32
    %1 = vector.broadcast %cst : f32 to vector<2x18x128xf32>
    %c0_1 = arith.constant 0 : index
    %c0_2 = arith.constant 0 : index
    %c0_3 = arith.constant 0 : index
    %2 = vector.load %arg20[%c0_1, %c0_2, %c0_3] : memref<2x18x128xf32, #tpu.memory_space<vmem>>, vector<2x18x128xf32>
    tpu.vector_store %arg20[%c0_1, %c0_2, %c0_3], %1 {strides = array<i32>} : memref<2x18x128xf32, #tpu.memory_space<vmem>>, vector<2x18x128xf32>,
    %3 = vector.shape_cast %0 : vector<32x128xf32> to vector<2x16x128xf32>
    %c0_4 = arith.constant 0 : index
    %c1 = arith.constant 1 : index
    %c0_5 = arith.constant 0 : index
    %4 = vector.load %arg20[%c0_4, %c1, %c0_5] : memref<2x18x128xf32, #tpu.memory_space<vmem>>, vector<2x16x128xf32>
    tpu.vector_store %arg20[%c0_4, %c1, %c0_5], %3 {strides = array<i32>} : memref<2x18x128xf32, #tpu.memory_space<vmem>>, vector<2x16x128xf32>,
    %c0_6 = arith.constant 0 : index
    %c0_7 = arith.constant 0 : index
    %c0_8 = arith.constant 0 : index
    %5 = vector.load %arg20[%c0_6, %c0_7, %c0_8] : memref<2x18x128xf32, #tpu.memory_space<vmem>>, vector<2x16x128xf32>
    %6 = vector.shape_cast %5 : vector<2x16x128xf32> to vector<32x128xf32>
    %c0_9 = arith.constant 0 : index
    %c0_10 = arith.constant 0 : index
    %c0_11 = arith.constant 0 : index
    %7 = vector.load %arg1[%c0_9, %c0_10, %c0_11] : memref<3x128x32xf32, #tpu.memory_space<vmem>>, vector<1x128x32xf32>
    %8 = vector.shape_cast %7 : vector<1x128x32xf32> to vector<128x32xf32>
    %cst_12 = arith.constant dense<0.000000e+00> : vector<32x32xf32>
    %9 = tpu.matmul %6, %8, %cst_12 {dimension_numbers = #tpu.dot_dimension_numbers<[1], [0], [0], [1], [0, 0, 1, 1], [], []>} : vector<32x128xf32>, vector<128x32xf32>, vector<32x32xf32> -> vector<32x32xf32>
    %c0_13 = arith.constant 0 : index
    %c1_14 = arith.constant 1 : index
    %c0_15 = arith.constant 0 : index
    %10 = vector.load %arg20[%c0_13, %c1_14, %c0_15] : memref<2x18x128xf32, #tpu.memory_space<vmem>>, vector<2x16x128xf32>
    %11 = vector.shape_cast %10 : vector<2x16x128xf32> to vector<32x128xf32>
    %c1_16 = arith.constant 1 : index
    %c0_17 = arith.constant 0 : index
    %c0_18 = arith.constant 0 : index
    %12 = vector.load %arg1[%c1_16, %c0_17, %c0_18] : memref<3x128x32xf32, #tpu.memory_space<vmem>>, vector<1x128x32xf32>
    %13 = vector.shape_cast %12 : vector<1x128x32xf32> to vector<128x32xf32>
    %cst_19 = arith.constant dense<0.000000e+00> : vector<32x32xf32>
    %14 = tpu.matmul %11, %13, %cst_19 {dimension_numbers = #tpu.dot_dimension_numbers<[1], [0], [0], [1], [0, 0, 1, 1], [], []>} : vector<32x128xf32>, vector<128x32xf32>, vector<32x32xf32> -> vector<32x32xf32>
    %15 = arith.addf %9, %14 : vector<32x32xf32>
    %c0_20 = arith.constant 0 : index
    %c2 = arith.constant 2 : index
    %c0_21 = arith.constant 0 : index
    %16 = vector.load %arg20[%c0_20, %c2, %c0_21] : memref<2x18x128xf32, #tpu.memory_space<vmem>>, vector<2x16x128xf32>
    %17 = vector.shape_cast %16 : vector<2x16x128xf32> to vector<32x128xf32>
    %c2_22 = arith.constant 2 : index
    %c0_23 = arith.constant 0 : index
    %c0_24 = arith.constant 0 : index
    %18 = vector.load %arg1[%c2_22, %c0_23, %c0_24] : memref<3x128x32xf32, #tpu.memory_space<vmem>>, vector<1x128x32xf32>
    %19 = vector.shape_cast %18 : vector<1x128x32xf32> to vector<128x32xf32>
    %cst_25 = arith.constant dense<0.000000e+00> : vector<32x32xf32>
    %20 = tpu.matmul %17, %19, %cst_25 {dimension_numbers = #tpu.dot_dimension_numbers<[1], [0], [0], [1], [0, 0, 1, 1], [], []>} : vector<32x128xf32>, vector<128x32xf32>, vector<32x32xf32> -> vector<32x32xf32>
    %21 = arith.addf %15, %20 : vector<32x32xf32>
    %cst_26 = arith.constant dense<0.000000e+00> : vector<32xf32>
    %22 = vector.multi_reduction <add>, %21, %cst_26 [0] : vector<32x32xf32> to vector<32xf32>
    %23 = vector.shape_cast %22 : vector<32xf32> to vector<1x32xf32>
    %c0_27 = arith.constant 0 : index
    %c0_28 = arith.constant 0 : index
    %24 = vector.load %arg10[%c0_27, %c0_28] : memref<32x2xf32, #tpu.memory_space<vmem>>, vector<32x2xf32>
    %cst_29 = arith.constant dense<0.000000e+00> : vector<1x2xf32>
    %25 = tpu.matmul %23, %24, %cst_29 {dimension_numbers = #tpu.dot_dimension_numbers<[1], [0], [0], [1], [0, 0, 1, 1], [], []>} : vector<1x32xf32>, vector<32x2xf32>, vector<1x2xf32> -> vector<1x2xf32>
    %cst_30 = arith.constant 0.001953125 : f32
    %26 = vector.broadcast %cst_30 : f32 to vector<1x2xf32>
    %27 = arith.mulf %25, %26 : vector<1x2xf32>
    %c0_31 = arith.constant 0 : index
    %c0_32 = arith.constant 0 : index
    %28 = vector.load %arg11[%c0_31, %c0_32] : memref<2x32xf32, #tpu.memory_space<vmem>>, vector<2x32xf32>
    %cst_33 = arith.constant dense<0.000000e+00> : vector<1x32xf32>
    %29 = tpu.matmul %27, %28, %cst_33 {dimension_numbers = #tpu.dot_dimension_numbers<[1], [0], [0], [1], [0, 0, 1, 1], [], []>} : vector<1x2xf32>, vector<2x32xf32>, vector<1x32xf32> -> vector<1x32xf32>
    %30 = vector.broadcast %29 : vector<1x32xf32> to vector<32x32xf32>
    %31 = arith.subf %21, %30 : vector<32x32xf32>
    %32 = arith.mulf %31, %31 : vector<32x32xf32>
    %cst_34 = arith.constant dense<0.000000e+00> : vector<32xf32>
    %33 = vector.multi_reduction <add>, %32, %cst_34 [0] : vector<32x32xf32> to vector<32xf32>
    %34 = vector.shape_cast %33 : vector<32xf32> to vector<1x32xf32>
    %c0_35 = arith.constant 0 : index
    %c0_36 = arith.constant 0 : index
    %35 = vector.load %arg10[%c0_35, %c0_36] : memref<32x2xf32, #tpu.memory_space<vmem>>, vector<32x2xf32>
    %cst_37 = arith.constant dense<0.000000e+00> : vector<1x2xf32>
    %36 = tpu.matmul %34, %35, %cst_37 {dimension_numbers = #tpu.dot_dimension_numbers<[1], [0], [0], [1], [0, 0, 1, 1], [], []>} : vector<1x32xf32>, vector<32x2xf32>, vector<1x2xf32> -> vector<1x2xf32>
    %cst_38 = arith.constant 0.001953125 : f32
    %37 = vector.broadcast %cst_38 : f32 to vector<1x2xf32>
    %38 = arith.mulf %36, %37 : vector<1x2xf32>
    %c0_39 = arith.constant 0 : index
    %c0_40 = arith.constant 0 : index
    %39 = vector.load %arg4[%c0_39, %c0_40] : memref<1x2xf32, #tpu.memory_space<vmem>>, vector<1x2xf32>
    %cst_41 = arith.constant 9.99999974E-6 : f32
    %40 = vector.broadcast %cst_41 : f32 to vector<1x2xf32>
    %41 = arith.addf %38, %40 : vector<1x2xf32>
    %42 = math.rsqrt %41 : vector<1x2xf32>
    %43 = arith.mulf %39, %42 : vector<1x2xf32>
    %c0_42 = arith.constant 0 : index
    %c0_43 = arith.constant 0 : index
    %44 = vector.load %arg5[%c0_42, %c0_43] : memref<1x2xf32, #tpu.memory_space<vmem>>, vector<1x2xf32>
    %45 = arith.mulf %27, %43 : vector<1x2xf32>
    %46 = arith.subf %44, %45 : vector<1x2xf32>
    %c0_44 = arith.constant 0 : index
    %c0_45 = arith.constant 0 : index
    %47 = vector.load %arg11[%c0_44, %c0_45] : memref<2x32xf32, #tpu.memory_space<vmem>>, vector<2x32xf32>
    %cst_46 = arith.constant dense<0.000000e+00> : vector<1x32xf32>
    %48 = tpu.matmul %43, %47, %cst_46 {dimension_numbers = #tpu.dot_dimension_numbers<[1], [0], [0], [1], [0, 0, 1, 1], [], []>} : vector<1x2xf32>, vector<2x32xf32>, vector<1x32xf32> -> vector<1x32xf32>
    %c0_47 = arith.constant 0 : index
    %c0_48 = arith.constant 0 : index
    %49 = vector.load %arg11[%c0_47, %c0_48] : memref<2x32xf32, #tpu.memory_space<vmem>>, vector<2x32xf32>
    %cst_49 = arith.constant dense<0.000000e+00> : vector<1x32xf32>
    %50 = tpu.matmul %46, %49, %cst_49 {dimension_numbers = #tpu.dot_dimension_numbers<[1], [0], [0], [1], [0, 0, 1, 1], [], []>} : vector<1x2xf32>, vector<2x32xf32>, vector<1x32xf32> -> vector<1x32xf32>
    %51 = vector.broadcast %48 : vector<1x32xf32> to vector<32x32xf32>
    %52 = arith.mulf %21, %51 : vector<32x32xf32>
    %53 = vector.broadcast %50 : vector<1x32xf32> to vector<32x32xf32>
    %54 = arith.addf %52, %53 : vector<32x32xf32>
    %cst_50 = arith.constant 0.000000e+00 : f32
    %55 = vector.broadcast %cst_50 : f32 to vector<32x32xf32>
    %56 = arith.maximumf %54, %55 : vector<32x32xf32>
    %cst_51 = arith.constant 0.000000e+00 : f32
    %57 = vector.broadcast %cst_51 : f32 to vector<2x18x32xf32>
    %c0_52 = arith.constant 0 : index
    %c0_53 = arith.constant 0 : index
    %c0_54 = arith.constant 0 : index
    %58 = vector.load %arg21[%c0_52, %c0_53, %c0_54] : memref<2x18x32xf32, #tpu.memory_space<vmem>>, vector<2x18x32xf32>
    tpu.vector_store %arg21[%c0_52, %c0_53, %c0_54], %57 {strides = array<i32>} : memref<2x18x32xf32, #tpu.memory_space<vmem>>, vector<2x18x32xf32>,
    %59 = vector.shape_cast %56 : vector<32x32xf32> to vector<2x16x32xf32>
    %c0_55 = arith.constant 0 : index
    %c1_56 = arith.constant 1 : index
    %c0_57 = arith.constant 0 : index
    %60 = vector.load %arg21[%c0_55, %c1_56, %c0_57] : memref<2x18x32xf32, #tpu.memory_space<vmem>>, vector<2x16x32xf32>
    tpu.vector_store %arg21[%c0_55, %c1_56, %c0_57], %59 {strides = array<i32>} : memref<2x18x32xf32, #tpu.memory_space<vmem>>, vector<2x16x32xf32>,
    %c0_58 = arith.constant 0 : index
    %c0_59 = arith.constant 0 : index
    %c0_60 = arith.constant 0 : index
    %61 = vector.load %arg21[%c0_58, %c0_59, %c0_60] : memref<2x18x32xf32, #tpu.memory_space<vmem>>, vector<2x16x32xf32>
    %62 = vector.shape_cast %61 : vector<2x16x32xf32> to vector<32x32xf32>
    %c0_61 = arith.constant 0 : index
    %c0_62 = arith.constant 0 : index
    %c0_63 = arith.constant 0 : index
    %63 = vector.load %arg2[%c0_61, %c0_62, %c0_63] : memref<3x32x16xf32, #tpu.memory_space<vmem>>, vector<1x32x16xf32>
    %64 = vector.shape_cast %63 : vector<1x32x16xf32> to vector<32x16xf32>
    %cst_64 = arith.constant dense<0.000000e+00> : vector<32x16xf32>
    %65 = tpu.matmul %62, %64, %cst_64 {dimension_numbers = #tpu.dot_dimension_numbers<[1], [0], [0], [1], [0, 0, 1, 1], [], []>} : vector<32x32xf32>, vector<32x16xf32>, vector<32x16xf32> -> vector<32x16xf32>
    %c0_65 = arith.constant 0 : index
    %c1_66 = arith.constant 1 : index
    %c0_67 = arith.constant 0 : index
    %66 = vector.load %arg21[%c0_65, %c1_66, %c0_67] : memref<2x18x32xf32, #tpu.memory_space<vmem>>, vector<2x16x32xf32>
    %67 = vector.shape_cast %66 : vector<2x16x32xf32> to vector<32x32xf32>
    %c1_68 = arith.constant 1 : index
    %c0_69 = arith.constant 0 : index
    %c0_70 = arith.constant 0 : index
    %68 = vector.load %arg2[%c1_68, %c0_69, %c0_70] : memref<3x32x16xf32, #tpu.memory_space<vmem>>, vector<1x32x16xf32>
    %69 = vector.shape_cast %68 : vector<1x32x16xf32> to vector<32x16xf32>
    %cst_71 = arith.constant dense<0.000000e+00> : vector<32x16xf32>
    %70 = tpu.matmul %67, %69, %cst_71 {dimension_numbers = #tpu.dot_dimension_numbers<[1], [0], [0], [1], [0, 0, 1, 1], [], []>} : vector<32x32xf32>, vector<32x16xf32>, vector<32x16xf32> -> vector<32x16xf32>
    %71 = arith.addf %65, %70 : vector<32x16xf32>
    %c0_72 = arith.constant 0 : index
    %c2_73 = arith.constant 2 : index
    %c0_74 = arith.constant 0 : index
    %72 = vector.load %arg21[%c0_72, %c2_73, %c0_74] : memref<2x18x32xf32, #tpu.memory_space<vmem>>, vector<2x16x32xf32>
    %73 = vector.shape_cast %72 : vector<2x16x32xf32> to vector<32x32xf32>
    %c2_75 = arith.constant 2 : index
    %c0_76 = arith.constant 0 : index
    %c0_77 = arith.constant 0 : index
    %74 = vector.load %arg2[%c2_75, %c0_76, %c0_77] : memref<3x32x16xf32, #tpu.memory_space<vmem>>, vector<1x32x16xf32>
    %75 = vector.shape_cast %74 : vector<1x32x16xf32> to vector<32x16xf32>
    %cst_78 = arith.constant dense<0.000000e+00> : vector<32x16xf32>
    %76 = tpu.matmul %73, %75, %cst_78 {dimension_numbers = #tpu.dot_dimension_numbers<[1], [0], [0], [1], [0, 0, 1, 1], [], []>} : vector<32x32xf32>, vector<32x16xf32>, vector<32x16xf32> -> vector<32x16xf32>
    %77 = arith.addf %71, %76 : vector<32x16xf32>
    %78 = arith.negf %77 : vector<32x16xf32>
    %79 = math.exp %78 : vector<32x16xf32>
    %cst_79 = arith.constant 1.000000e+00 : f32
    %80 = vector.broadcast %cst_79 : f32 to vector<32x16xf32>
    %81 = arith.addf %80, %79 : vector<32x16xf32>
    %82 = arith.divf %80, %81 : vector<32x16xf32>
    %c0_80 = arith.constant 0 : index
    %c0_81 = arith.constant 0 : index
    %83 = vector.load %arg14[%c0_80, %c0_81] : memref<2x32xf32, #tpu.memory_space<vmem>>, vector<2x32xf32>
    %cst_82 = arith.constant dense<0.000000e+00> : vector<2x128xf32>
    %84 = tpu.matmul %83, %0, %cst_82 {dimension_numbers = #tpu.dot_dimension_numbers<[1], [0], [0], [1], [0, 0, 1, 1], [], []>} : vector<2x32xf32>, vector<32x128xf32>, vector<2x128xf32> -> vector<2x128xf32>
    %c0_83 = arith.constant 0 : index
    %c0_84 = arith.constant 0 : index
    %85 = vector.load %arg8[%c0_83, %c0_84] : memref<128x8xf32, #tpu.memory_space<vmem>>, vector<128x8xf32>
    %cst_85 = arith.constant dense<0.000000e+00> : vector<2x8xf32>
    %86 = tpu.matmul %84, %85, %cst_85 {dimension_numbers = #tpu.dot_dimension_numbers<[1], [0], [0], [1], [0, 0, 1, 1], [], []>} : vector<2x128xf32>, vector<128x8xf32>, vector<2x8xf32> -> vector<2x8xf32>
    %cst_86 = arith.constant 3.906250e-03 : f32
    %87 = vector.broadcast %cst_86 : f32 to vector<2x8xf32>
    %88 = arith.mulf %86, %87 : vector<2x8xf32>
    %c0_87 = arith.constant 0 : index
    %c0_88 = arith.constant 0 : index
    %89 = vector.load %arg6[%c0_87, %c0_88] : memref<8x2xf32, #tpu.memory_space<vmem>>, vector<8x2xf32>
    %cst_89 = arith.constant dense<0.000000e+00> : vector<2x2xf32>
    %90 = tpu.matmul %88, %89, %cst_89 {dimension_numbers = #tpu.dot_dimension_numbers<[1], [0], [0], [1], [0, 0, 1, 1], [], []>} : vector<2x8xf32>, vector<8x2xf32>, vector<2x2xf32> -> vector<2x2xf32>
    %cst_90 = arith.constant 0.000000e+00 : f32
    %91 = vector.broadcast %cst_90 : f32 to vector<2x2xf32>
    %92 = arith.maximumf %90, %91 : vector<2x2xf32>
    %c0_91 = arith.constant 0 : index
    %c0_92 = arith.constant 0 : index
    %93 = vector.load %arg7[%c0_91, %c0_92] : memref<2x8xf32, #tpu.memory_space<vmem>>, vector<2x8xf32>
    %cst_93 = arith.constant dense<0.000000e+00> : vector<2x8xf32>
    %94 = tpu.matmul %92, %93, %cst_93 {dimension_numbers = #tpu.dot_dimension_numbers<[1], [0], [0], [1], [0, 0, 1, 1], [], []>} : vector<2x2xf32>, vector<2x8xf32>, vector<2x8xf32> -> vector<2x8xf32>
    %95 = arith.negf %94 : vector<2x8xf32>
    %96 = math.exp %95 : vector<2x8xf32>
    %cst_94 = arith.constant 1.000000e+00 : f32
    %97 = vector.broadcast %cst_94 : f32 to vector<2x8xf32>
    %98 = arith.addf %97, %96 : vector<2x8xf32>
    %99 = arith.divf %97, %98 : vector<2x8xf32>
    %c0_95 = arith.constant 0 : index
    %c0_96 = arith.constant 0 : index
    %100 = vector.load %arg15[%c0_95, %c0_96] : memref<32x2xf32, #tpu.memory_space<vmem>>, vector<32x2xf32>
    %c0_97 = arith.constant 0 : index
    %c0_98 = arith.constant 0 : index
    %101 = vector.load %arg9[%c0_97, %c0_98] : memref<8x128xf32, #tpu.memory_space<vmem>>, vector<8x128xf32>
    %cst_99 = arith.constant dense<0.000000e+00> : vector<2x128xf32>
    %102 = tpu.matmul %99, %101, %cst_99 {dimension_numbers = #tpu.dot_dimension_numbers<[1], [0], [0], [1], [0, 0, 1, 1], [], []>} : vector<2x8xf32>, vector<8x128xf32>, vector<2x128xf32> -> vector<2x128xf32>
    %cst_100 = arith.constant dense<0.000000e+00> : vector<32x128xf32>
    %103 = tpu.matmul %100, %102, %cst_100 {dimension_numbers = #tpu.dot_dimension_numbers<[1], [0], [0], [1], [0, 0, 1, 1], [], []>} : vector<32x2xf32>, vector<2x128xf32>, vector<32x128xf32> -> vector<32x128xf32>
    %104 = arith.mulf %0, %103 : vector<32x128xf32>
    %c0_101 = arith.constant 0 : index
    %c0_102 = arith.constant 0 : index
    %c0_103 = arith.constant 0 : index
    %105 = vector.load %arg13[%c0_101, %c0_102, %c0_103] : memref<8x128x16xf32, #tpu.memory_space<vmem>>, vector<1x128x16xf32>
    %106 = vector.shape_cast %105 : vector<1x128x16xf32> to vector<128x16xf32>
    %cst_104 = arith.constant dense<0.000000e+00> : vector<32x16xf32>
    %107 = tpu.matmul %104, %106, %cst_104 {dimension_numbers = #tpu.dot_dimension_numbers<[1], [0], [0], [1], [0, 0, 1, 1], [], []>} : vector<32x128xf32>, vector<128x16xf32>, vector<32x16xf32> -> vector<32x16xf32>
    %c1_105 = arith.constant 1 : index
    %c0_106 = arith.constant 0 : index
    %c0_107 = arith.constant 0 : index
    %108 = vector.load %arg13[%c1_105, %c0_106, %c0_107] : memref<8x128x16xf32, #tpu.memory_space<vmem>>, vector<1x128x16xf32>
    %109 = vector.shape_cast %108 : vector<1x128x16xf32> to vector<128x16xf32>
    %cst_108 = arith.constant dense<0.000000e+00> : vector<32x16xf32>
    %110 = tpu.matmul %104, %109, %cst_108 {dimension_numbers = #tpu.dot_dimension_numbers<[1], [0], [0], [1], [0, 0, 1, 1], [], []>} : vector<32x128xf32>, vector<128x16xf32>, vector<32x16xf32> -> vector<32x16xf32>
    %111 = arith.addf %107, %110 : vector<32x16xf32>
    %112 = arith.maximumf %107, %110 : vector<32x16xf32>
    %c2_109 = arith.constant 2 : index
    %c0_110 = arith.constant 0 : index
    %c0_111 = arith.constant 0 : index
    %113 = vector.load %arg13[%c2_109, %c0_110, %c0_111] : memref<8x128x16xf32, #tpu.memory_space<vmem>>, vector<1x128x16xf32>
    %114 = vector.shape_cast %113 : vector<1x128x16xf32> to vector<128x16xf32>
    %cst_112 = arith.constant dense<0.000000e+00> : vector<32x16xf32>
    %115 = tpu.matmul %104, %114, %cst_112 {dimension_numbers = #tpu.dot_dimension_numbers<[1], [0], [0], [1], [0, 0, 1, 1], [], []>} : vector<32x128xf32>, vector<128x16xf32>, vector<32x16xf32> -> vector<32x16xf32>
    %116 = arith.addf %111, %115 : vector<32x16xf32>
    %117 = arith.maximumf %112, %115 : vector<32x16xf32>
    %c3 = arith.constant 3 : index
    %c0_113 = arith.constant 0 : index
    %c0_114 = arith.constant 0 : index
    %118 = vector.load %arg13[%c3, %c0_113, %c0_114] : memref<8x128x16xf32, #tpu.memory_space<vmem>>, vector<1x128x16xf32>
    %119 = vector.shape_cast %118 : vector<1x128x16xf32> to vector<128x16xf32>
    %cst_115 = arith.constant dense<0.000000e+00> : vector<32x16xf32>
    %120 = tpu.matmul %104, %119, %cst_115 {dimension_numbers = #tpu.dot_dimension_numbers<[1], [0], [0], [1], [0, 0, 1, 1], [], []>} : vector<32x128xf32>, vector<128x16xf32>, vector<32x16xf32> -> vector<32x16xf32>
    %121 = arith.addf %116, %120 : vector<32x16xf32>
    %122 = arith.maximumf %117, %120 : vector<32x16xf32>
    %c4 = arith.constant 4 : index
    %c0_116 = arith.constant 0 : index
    %c0_117 = arith.constant 0 : index
    %123 = vector.load %arg13[%c4, %c0_116, %c0_117] : memref<8x128x16xf32, #tpu.memory_space<vmem>>, vector<1x128x16xf32>
    %124 = vector.shape_cast %123 : vector<1x128x16xf32> to vector<128x16xf32>
    %cst_118 = arith.constant dense<0.000000e+00> : vector<32x16xf32>
    %125 = tpu.matmul %104, %124, %cst_118 {dimension_numbers = #tpu.dot_dimension_numbers<[1], [0], [0], [1], [0, 0, 1, 1], [], []>} : vector<32x128xf32>, vector<128x16xf32>, vector<32x16xf32> -> vector<32x16xf32>
    %126 = arith.addf %121, %125 : vector<32x16xf32>
    %127 = arith.maximumf %122, %125 : vector<32x16xf32>
    %c5 = arith.constant 5 : index
    %c0_119 = arith.constant 0 : index
    %c0_120 = arith.constant 0 : index
    %128 = vector.load %arg13[%c5, %c0_119, %c0_120] : memref<8x128x16xf32, #tpu.memory_space<vmem>>, vector<1x128x16xf32>
    %129 = vector.shape_cast %128 : vector<1x128x16xf32> to vector<128x16xf32>
    %cst_121 = arith.constant dense<0.000000e+00> : vector<32x16xf32>
    %130 = tpu.matmul %104, %129, %cst_121 {dimension_numbers = #tpu.dot_dimension_numbers<[1], [0], [0], [1], [0, 0, 1, 1], [], []>} : vector<32x128xf32>, vector<128x16xf32>, vector<32x16xf32> -> vector<32x16xf32>
    %131 = arith.addf %126, %130 : vector<32x16xf32>
    %132 = arith.maximumf %127, %130 : vector<32x16xf32>
    %c6 = arith.constant 6 : index
    %c0_122 = arith.constant 0 : index
    %c0_123 = arith.constant 0 : index
    %133 = vector.load %arg13[%c6, %c0_122, %c0_123] : memref<8x128x16xf32, #tpu.memory_space<vmem>>, vector<1x128x16xf32>
    %134 = vector.shape_cast %133 : vector<1x128x16xf32> to vector<128x16xf32>
    %cst_124 = arith.constant dense<0.000000e+00> : vector<32x16xf32>
    %135 = tpu.matmul %104, %134, %cst_124 {dimension_numbers = #tpu.dot_dimension_numbers<[1], [0], [0], [1], [0, 0, 1, 1], [], []>} : vector<32x128xf32>, vector<128x16xf32>, vector<32x16xf32> -> vector<32x16xf32>
    %136 = arith.addf %131, %135 : vector<32x16xf32>
    %137 = arith.maximumf %132, %135 : vector<32x16xf32>
    %c7 = arith.constant 7 : index
    %c0_125 = arith.constant 0 : index
    %c0_126 = arith.constant 0 : index
    %138 = vector.load %arg13[%c7, %c0_125, %c0_126] : memref<8x128x16xf32, #tpu.memory_space<vmem>>, vector<1x128x16xf32>
    %139 = vector.shape_cast %138 : vector<1x128x16xf32> to vector<128x16xf32>
    %cst_127 = arith.constant dense<0.000000e+00> : vector<32x16xf32>
    %140 = tpu.matmul %104, %139, %cst_127 {dimension_numbers = #tpu.dot_dimension_numbers<[1], [0], [0], [1], [0, 0, 1, 1], [], []>} : vector<32x128xf32>, vector<128x16xf32>, vector<32x16xf32> -> vector<32x16xf32>
    %141 = arith.addf %136, %140 : vector<32x16xf32>
    %142 = arith.maximumf %137, %140 : vector<32x16xf32>
    %cst_128 = arith.constant 1.250000e-01 : f32
    %143 = vector.broadcast %cst_128 : f32 to vector<32x16xf32>
    %144 = arith.mulf %141, %143 : vector<32x16xf32>
    %cst_129 = arith.constant 0.000000e+00 : f32
    %145 = vector.broadcast %cst_129 : f32 to vector<2x18x32xf32>
    %c0_130 = arith.constant 0 : index
    %c0_131 = arith.constant 0 : index
    %c0_132 = arith.constant 0 : index
    %146 = vector.load %arg22[%c0_130, %c0_131, %c0_132] : memref<2x18x32xf32, #tpu.memory_space<vmem>>, vector<2x18x32xf32>
    tpu.vector_store %arg22[%c0_130, %c0_131, %c0_132], %145 {strides = array<i32>} : memref<2x18x32xf32, #tpu.memory_space<vmem>>, vector<2x18x32xf32>,
    %147 = vector.shape_cast %144 : vector<32x16xf32> to vector<2x16x16xf32>
    %c0_133 = arith.constant 0 : index
    %c1_134 = arith.constant 1 : index
    %c0_135 = arith.constant 0 : index
    %148 = vector.load %arg22[%c0_133, %c1_134, %c0_135] : memref<2x18x32xf32, #tpu.memory_space<vmem>>, vector<2x16x16xf32>
    tpu.vector_store %arg22[%c0_133, %c1_134, %c0_135], %147 {strides = array<i32>} : memref<2x18x32xf32, #tpu.memory_space<vmem>>, vector<2x16x16xf32>,
    %149 = vector.shape_cast %142 : vector<32x16xf32> to vector<2x16x16xf32>
    %c0_136 = arith.constant 0 : index
    %c1_137 = arith.constant 1 : index
    %c16 = arith.constant 16 : index
    %150 = vector.load %arg22[%c0_136, %c1_137, %c16] : memref<2x18x32xf32, #tpu.memory_space<vmem>>, vector<2x16x16xf32>
    tpu.vector_store %arg22[%c0_136, %c1_137, %c16], %149 {strides = array<i32>} : memref<2x18x32xf32, #tpu.memory_space<vmem>>, vector<2x16x16xf32>,
    %c0_138 = arith.constant 0 : index
    %c0_139 = arith.constant 0 : index
    %c0_140 = arith.constant 0 : index
    %151 = vector.load %arg22[%c0_138, %c0_139, %c0_140] : memref<2x18x32xf32, #tpu.memory_space<vmem>>, vector<2x16x32xf32>
    %152 = vector.shape_cast %151 : vector<2x16x32xf32> to vector<32x32xf32>
    %c0_141 = arith.constant 0 : index
    %c0_142 = arith.constant 0 : index
    %c0_143 = arith.constant 0 : index
    %153 = vector.load %arg3[%c0_141, %c0_142, %c0_143] : memref<3x32x16xf32, #tpu.memory_space<vmem>>, vector<1x32x16xf32>
    %154 = vector.shape_cast %153 : vector<1x32x16xf32> to vector<32x16xf32>
    %cst_144 = arith.constant dense<0.000000e+00> : vector<32x16xf32>
    %155 = tpu.matmul %152, %154, %cst_144 {dimension_numbers = #tpu.dot_dimension_numbers<[1], [0], [0], [1], [0, 0, 1, 1], [], []>} : vector<32x32xf32>, vector<32x16xf32>, vector<32x16xf32> -> vector<32x16xf32>
    %c0_145 = arith.constant 0 : index
    %c1_146 = arith.constant 1 : index
    %c0_147 = arith.constant 0 : index
    %156 = vector.load %arg22[%c0_145, %c1_146, %c0_147] : memref<2x18x32xf32, #tpu.memory_space<vmem>>, vector<2x16x32xf32>
    %157 = vector.shape_cast %156 : vector<2x16x32xf32> to vector<32x32xf32>
    %c1_148 = arith.constant 1 : index
    %c0_149 = arith.constant 0 : index
    %c0_150 = arith.constant 0 : index
    %158 = vector.load %arg3[%c1_148, %c0_149, %c0_150] : memref<3x32x16xf32, #tpu.memory_space<vmem>>, vector<1x32x16xf32>
    %159 = vector.shape_cast %158 : vector<1x32x16xf32> to vector<32x16xf32>
    %cst_151 = arith.constant dense<0.000000e+00> : vector<32x16xf32>
    %160 = tpu.matmul %157, %159, %cst_151 {dimension_numbers = #tpu.dot_dimension_numbers<[1], [0], [0], [1], [0, 0, 1, 1], [], []>} : vector<32x32xf32>, vector<32x16xf32>, vector<32x16xf32> -> vector<32x16xf32>
    %161 = arith.addf %155, %160 : vector<32x16xf32>
    %c0_152 = arith.constant 0 : index
    %c2_153 = arith.constant 2 : index
    %c0_154 = arith.constant 0 : index
    %162 = vector.load %arg22[%c0_152, %c2_153, %c0_154] : memref<2x18x32xf32, #tpu.memory_space<vmem>>, vector<2x16x32xf32>
    %163 = vector.shape_cast %162 : vector<2x16x32xf32> to vector<32x32xf32>
    %c2_155 = arith.constant 2 : index
    %c0_156 = arith.constant 0 : index
    %c0_157 = arith.constant 0 : index
    %164 = vector.load %arg3[%c2_155, %c0_156, %c0_157] : memref<3x32x16xf32, #tpu.memory_space<vmem>>, vector<1x32x16xf32>
    %165 = vector.shape_cast %164 : vector<1x32x16xf32> to vector<32x16xf32>
    %cst_158 = arith.constant dense<0.000000e+00> : vector<32x16xf32>
    %166 = tpu.matmul %163, %165, %cst_158 {dimension_numbers = #tpu.dot_dimension_numbers<[1], [0], [0], [1], [0, 0, 1, 1], [], []>} : vector<32x32xf32>, vector<32x16xf32>, vector<32x16xf32> -> vector<32x16xf32>
    %167 = arith.addf %161, %166 : vector<32x16xf32>
    %168 = arith.negf %167 : vector<32x16xf32>
    %169 = math.exp %168 : vector<32x16xf32>
    %cst_159 = arith.constant 1.000000e+00 : f32
    %170 = vector.broadcast %cst_159 : f32 to vector<32x16xf32>
    %171 = arith.addf %170, %169 : vector<32x16xf32>
    %172 = arith.divf %170, %171 : vector<32x16xf32>
    %c0_160 = arith.constant 0 : index
    %173 = memref.load %arg16[%c0_160] : memref<1xf32, #tpu.memory_space<smem>>
    %c0_161 = arith.constant 0 : index
    %174 = memref.load %arg17[%c0_161] : memref<1xf32, #tpu.memory_space<smem>>
    %175 = vector.broadcast %173 : f32 to vector<32x16xf32>
    %176 = arith.mulf %82, %175 : vector<32x16xf32>
    %cst_162 = arith.constant 1.000000e+00 : f32
    %177 = vector.broadcast %cst_162 : f32 to vector<32x16xf32>
    %178 = arith.addf %177, %176 : vector<32x16xf32>
    %179 = arith.mulf %178, %172 : vector<32x16xf32>
    %180 = vector.broadcast %174 : f32 to vector<32x16xf32>
    %181 = arith.mulf %179, %180 : vector<32x16xf32>
    %c0_163 = arith.constant 0 : index
    %c0_164 = arith.constant 0 : index
    %182 = vector.load %arg12[%c0_163, %c0_164] : memref<16x128xf32, #tpu.memory_space<vmem>>, vector<16x128xf32>
    %cst_165 = arith.constant dense<0.000000e+00> : vector<32x128xf32>
    %183 = tpu.matmul %181, %182, %cst_165 {dimension_numbers = #tpu.dot_dimension_numbers<[1], [0], [0], [1], [0, 0, 1, 1], [], []>} : vector<32x16xf32>, vector<16x128xf32>, vector<32x128xf32> -> vector<32x128xf32>
    %184 = arith.mulf %104, %183 : vector<32x128xf32>
    %c0_166 = arith.constant 0 : index
    %c0_167 = arith.constant 0 : index
    %185 = vector.load %arg18[%c0_166, %c0_167] : memref<32x128xf32, #tpu.memory_space<vmem>>, vector<32x128xf32>
    tpu.vector_store %arg18[%c0_166, %c0_167], %184 {strides = array<i32>} : memref<32x128xf32, #tpu.memory_space<vmem>>, vector<32x128xf32>,
    %c0_168 = arith.constant 0 : index
    %c0_169 = arith.constant 0 : index
    %186 = vector.load %arg19[%c0_168, %c0_169] : memref<32x16xf32, #tpu.memory_space<vmem>>, vector<32x16xf32>
    tpu.vector_store %arg19[%c0_168, %c0_169], %82 {strides = array<i32>} : memref<32x16xf32, #tpu.memory_space<vmem>>, vector<32x16xf32>,
    return
  }
}

</mosaic_0001>

<llo_original>
// kernel: tpu_custom_call.1
$region0: #{tpu_custom_call.1}
  #allocation0 [shape = 'u32[]', space=smem, size = 0x4, offset = 0x4, fixed_abs, tag = 'smem constant byte address 0x4 - core index']
  #allocation1 [shape = 'u32[144,128]{1,0:T(1,128)}', space=vmem, size = 0x12000, scoped, tag = 'internal scratch']
  #allocation2 [shape = 'f32[2,18,128]{2,1,0:T(8,128)}', space=vmem, size = 0x6000, scoped, tag = 'scratch operand']
  #allocation3 [shape = 'f32[2,18,32]{2,1,0:T(8,128)}', space=vmem, size = 0x6000, scoped, tag = 'scratch operand']
  #allocation4 [shape = 'f32[2,18,32]{2,1,0:T(8,128)}', space=vmem, size = 0x6000, scoped, tag = 'scratch operand']
  #allocation5 [shape = 'f32[1]{0:T(128)S(6)}', space=smem, size = 0x200, scoped, tag = 'scoped memory for tpu_custom_call.1']
  #allocation6 [shape = 'f32[1]{0:T(128)S(6)}', space=smem, size = 0x200, scoped, tag = 'scoped memory for tpu_custom_call.1']
  %s0 = inlined_call_operand.vmem [shape: f32[32,128], index: 0, kind: input, shape index: {}]
  %s1 = inlined_call_operand.vmem [shape: f32[3,128,32], index: 1, kind: input, shape index: {}]
  %s2 = inlined_call_operand.vmem [shape: f32[3,32,16], index: 2, kind: input, shape index: {}]
  %s3 = inlined_call_operand.vmem [shape: f32[3,32,16], index: 3, kind: input, shape index: {}]
  %s4 = inlined_call_operand.vmem [shape: f32[1,2], index: 4, kind: input, shape index: {}]
  %s5 = inlined_call_operand.vmem [shape: f32[1,2], index: 5, kind: input, shape index: {}]
  %s6 = inlined_call_operand.vmem [shape: f32[8,2], index: 6, kind: input, shape index: {}]
  %s7 = inlined_call_operand.vmem [shape: f32[2,8], index: 7, kind: input, shape index: {}]
  %s8 = inlined_call_operand.vmem [shape: f32[128,8], index: 8, kind: input, shape index: {}]
  %s9 = inlined_call_operand.vmem [shape: f32[8,128], index: 9, kind: input, shape index: {}]
  %s10 = inlined_call_operand.vmem [shape: f32[32,2], index: 10, kind: input, shape index: {}]
  %s11 = inlined_call_operand.vmem [shape: f32[2,32], index: 11, kind: input, shape index: {}]
  %s12 = inlined_call_operand.vmem [shape: f32[16,128], index: 12, kind: input, shape index: {}]
  %s13 = inlined_call_operand.vmem [shape: f32[8,128,16], index: 13, kind: input, shape index: {}]
  %s14 = inlined_call_operand.vmem [shape: f32[2,32], index: 14, kind: input, shape index: {}]
  %s15 = inlined_call_operand.vmem [shape: f32[32,2], index: 15, kind: input, shape index: {}]
  %s16 = inlined_call_operand.<no memory space> [shape: f32[1], index: 16, kind: input, shape index: {}]
  %s17 = inlined_call_operand.<no memory space> [shape: f32[1], index: 17, kind: input, shape index: {}]
  %s18 = inlined_call_operand.hbm [shape: f32[32,128], index: 18, kind: output, shape index: {0}]
  %s19 = inlined_call_operand.vmem [shape: f32[32,16], index: 19, kind: output, shape index: {1}]
  %20 = xla_tuple %s18, %s19
  %s21 = sld [smem:[#allocation0]]
  $region90: #{tpu_custom_call.1} parent=0
    _
  %s23 = ssub.s32 1, %s21
  %s24 = scalar_select 0, %s23, %s21
  %25 = sst [smem:[#allocation5]] %s16
  %26 = sst [smem:[#allocation6]] %s17
  $region1: #{tpu_custom_call.1} parent=0
    #allocation7 [shape = 'u8[16384]{0}', space=vmem, size = 0x4000, scoped, tag = 'output window, operand 0, single buffered']
    #allocation8 [shape = 's32[1]{0}', space=sflag, size = 0x4, scoped, tag = 'scoped memory for tpu_custom_call.1']
    %27 = vsyncpa [#allocation8], 0
    // Predicated region
    $region2: #{tpu_custom_call.1} parent=1 // pred_check
      _
    $region3: #{tpu_custom_call.1} parent=1 // pred_check_branch
      %29 = sbr.rel (0) target = $region5
    $region4: #{tpu_custom_call.1} parent=1 // pred_region
      _
    $region5: #{tpu_custom_call.1} parent=1 // pred_fallthru
      _
    // Predicated region
    $region6: #{tpu_custom_call.1} parent=1 // pred_check
      _
    $region7: #{tpu_custom_call.1} parent=1 // pred_check_branch
      %31 = sbr.rel (0) target = $region9
    $region8: #{tpu_custom_call.1} parent=1 // pred_region
      _
    $region9: #{tpu_custom_call.1} parent=1 // pred_fallthru
      _
    // Predicated region
    $region10: #{tpu_custom_call.1} parent=1 // pred_check
      _
    $region11: #{tpu_custom_call.1} parent=1 // pred_check_branch
      %33 = sbr.rel (0) target = $region13
    $region12: #{tpu_custom_call.1} parent=1 // pred_region
      _
    $region13: #{tpu_custom_call.1} parent=1 // pred_fallthru
      _
    // Predicated region
    $region14: #{tpu_custom_call.1} parent=1 // pred_check
      _
    $region15: #{tpu_custom_call.1} parent=1 // pred_check_branch
      %35 = sbr.rel (0) target = $region17
    $region16: #{tpu_custom_call.1} parent=1 // pred_region
      _
    $region17: #{tpu_custom_call.1} parent=1 // pred_fallthru
      _
    // Predicated region
    $region18: #{tpu_custom_call.1} parent=1 // pred_check
      _
    $region19: #{tpu_custom_call.1} parent=1 // pred_check_branch
      %37 = sbr.rel (0) target = $region21
    $region20: #{tpu_custom_call.1} parent=1 // pred_region
      _
    $region21: #{tpu_custom_call.1} parent=1 // pred_fallthru
      _
    // Predicated region
    $region22: #{tpu_custom_call.1} parent=1 // pred_check
      _
    $region23: #{tpu_custom_call.1} parent=1 // pred_check_branch
      %39 = sbr.rel (0) target = $region25
    $region24: #{tpu_custom_call.1} parent=1 // pred_region
      _
    $region25: #{tpu_custom_call.1} parent=1 // pred_fallthru
      _
    // Predicated region
    $region26: #{tpu_custom_call.1} parent=1 // pred_check
      _
    $region27: #{tpu_custom_call.1} parent=1 // pred_check_branch
      %41 = sbr.rel (0) target = $region29
    $region28: #{tpu_custom_call.1} parent=1 // pred_region
      _
    $region29: #{tpu_custom_call.1} parent=1 // pred_fallthru
      _
    // Predicated region
    $region30: #{tpu_custom_call.1} parent=1 // pred_check
      _
    $region31: #{tpu_custom_call.1} parent=1 // pred_check_branch
      %43 = sbr.rel (0) target = $region33
    $region32: #{tpu_custom_call.1} parent=1 // pred_region
      _
    $region33: #{tpu_custom_call.1} parent=1 // pred_fallthru
      _
    // Predicated region
    $region34: #{tpu_custom_call.1} parent=1 // pred_check
      _
    $region35: #{tpu_custom_call.1} parent=1 // pred_check_branch
      %45 = sbr.rel (0) target = $region37
    $region36: #{tpu_custom_call.1} parent=1 // pred_region
      _
    $region37: #{tpu_custom_call.1} parent=1 // pred_fallthru
      _
    // Predicated region
    $region38: #{tpu_custom_call.1} parent=1 // pred_check
      _
    $region39: #{tpu_custom_call.1} parent=1 // pred_check_branch
      %47 = sbr.rel (0) target = $region41
    $region40: #{tpu_custom_call.1} parent=1 // pred_region
      _
    $region41: #{tpu_custom_call.1} parent=1 // pred_fallthru
      _
    // Predicated region
    $region42: #{tpu_custom_call.1} parent=1 // pred_check
      _
    $region43: #{tpu_custom_call.1} parent=1 // pred_check_branch
      %49 = sbr.rel (0) target = $region45
    $region44: #{tpu_custom_call.1} parent=1 // pred_region
      _
    $region45: #{tpu_custom_call.1} parent=1 // pred_fallthru
      _
    // Predicated region
    $region46: #{tpu_custom_call.1} parent=1 // pred_check
      _
    $region47: #{tpu_custom_call.1} parent=1 // pred_check_branch
      %51 = sbr.rel (0) target = $region49
    $region48: #{tpu_custom_call.1} parent=1 // pred_region
      _
    $region49: #{tpu_custom_call.1} parent=1 // pred_fallthru
      _
    // Predicated region
    $region50: #{tpu_custom_call.1} parent=1 // pred_check
      _
    $region51: #{tpu_custom_call.1} parent=1 // pred_check_branch
      %53 = sbr.rel (0) target = $region53
    $region52: #{tpu_custom_call.1} parent=1 // pred_region
      _
    $region53: #{tpu_custom_call.1} parent=1 // pred_fallthru
      _
    // Predicated region
    $region54: #{tpu_custom_call.1} parent=1 // pred_check
      _
    $region55: #{tpu_custom_call.1} parent=1 // pred_check_branch
      %55 = sbr.rel (0) target = $region57
    $region56: #{tpu_custom_call.1} parent=1 // pred_region
      _
    $region57: #{tpu_custom_call.1} parent=1 // pred_fallthru
      _
    // Predicated region
    $region58: #{tpu_custom_call.1} parent=1 // pred_check
      _
    $region59: #{tpu_custom_call.1} parent=1 // pred_check_branch
      %57 = sbr.rel (0) target = $region61
    $region60: #{tpu_custom_call.1} parent=1 // pred_region
      _
    $region61: #{tpu_custom_call.1} parent=1 // pred_fallthru
      _
    // Predicated region
    $region62: #{tpu_custom_call.1} parent=1 // pred_check
      _
    $region63: #{tpu_custom_call.1} parent=1 // pred_check_branch
      %59 = sbr.rel (0) target = $region65
    $region64: #{tpu_custom_call.1} parent=1 // pred_region
      _
    $region65: #{tpu_custom_call.1} parent=1 // pred_fallthru
      _
    // Predicated region
    $region66: #{tpu_custom_call.1} parent=1 // pred_check
      _
    $region67: #{tpu_custom_call.1} parent=1 // pred_check_branch
      %61 = sbr.rel (0) target = $region69
    $region68: #{tpu_custom_call.1} parent=1 // pred_region
      _
    $region69: #{tpu_custom_call.1} parent=1 // pred_fallthru
      _
    // Predicated region
    $region70: #{tpu_custom_call.1} parent=1 // pred_check
      _
    $region71: #{tpu_custom_call.1} parent=1 // pred_check_branch
      %63 = sbr.rel (0) target = $region73
    $region72: #{tpu_custom_call.1} parent=1 // pred_region
      _
    $region73: #{tpu_custom_call.1} parent=1 // pred_fallthru
      _
    %v64 = vld [vmem:[%s0] sm:$0xff]
    %v65 = vld [vmem:[%s0 + $0x8] sm:$0xff]
    %v66 = vld [vmem:[%s0 + $0x10] sm:$0xff]
    %v67 = vld [vmem:[%s0 + $0x18] sm:$0xff]
    %68 = vst [vmem:[#allocation2] sm:$0xff] 0.0
    %69 = vst [vmem:[#allocation2 + $0x8] sm:$0xff] 0.0
    %70 = vst [vmem:[#allocation2 + $0x10] sm:$0x3] 0.0
    %71 = vst [vmem:[#allocation2 + $0x18] sm:$0xff] 0.0
    %72 = vst [vmem:[#allocation2 + $0x20] sm:$0xff] 0.0
    %73 = vst [vmem:[#allocation2 + $0x28] sm:$0x3] 0.0
    %74 = vst [vmem:[#allocation2 + $0x1] sm:$0xff] %v64
    %75 = vst [vmem:[#allocation2 + $0x9] sm:$0xff] %v65
    %76 = vst [vmem:[#allocation2 + $0x19] sm:$0xff] %v66
    %77 = vst [vmem:[#allocation2 + $0x21] sm:$0xff] %v67
    %v78 = vld [vmem:[#allocation2] sm:$0xff]
    %v79 = vld [vmem:[#allocation2 + $0x8] sm:$0xff]
    %v80 = vld [vmem:[#allocation2 + $0x18] sm:$0xff]
    %v81 = vld [vmem:[#allocation2 + $0x20] sm:$0xff]
    %v82 = vld [vmem:[%s1] sm:$0xff]
    %v83 = vld [vmem:[%s1 + $0x8] sm:$0xff]
    %v84 = vld [vmem:[%s1 + $0x10] sm:$0xff]
    %v85 = vld [vmem:[%s1 + $0x18] sm:$0xff]
    %v86 = vld [vmem:[%s1 + $0x20] sm:$0xff]
    %v87 = vld [vmem:[%s1 + $0x28] sm:$0xff]
    %v88 = vld [vmem:[%s1 + $0x30] sm:$0xff]
    %v89 = vld [vmem:[%s1 + $0x38] sm:$0xff]
    %v90 = vld [vmem:[%s1 + $0x40] sm:$0xff]
    %v91 = vld [vmem:[%s1 + $0x48] sm:$0xff]
    %v92 = vld [vmem:[%s1 + $0x50] sm:$0xff]
    %v93 = vld [vmem:[%s1 + $0x58] sm:$0xff]
    %v94 = vld [vmem:[%s1 + $0x60] sm:$0xff]
    %v95 = vld [vmem:[%s1 + $0x68] sm:$0xff]
    %v96 = vld [vmem:[%s1 + $0x70] sm:$0xff]
    %v97 = vld [vmem:[%s1 + $0x78] sm:$0xff]
    %v98 = vld [vmem:[#allocation2 + $0x1] sm:$0xff]
    %v99 = vld [vmem:[#allocation2 + $0x9] sm:$0xff]
    %v100 = vld [vmem:[#allocation2 + $0x19] sm:$0xff]
    %v101 = vld [vmem:[#allocation2 + $0x21] sm:$0xff]
    %s102 = scalar_lea.vmem %s1, 128
    %v103 = vld [vmem:[%s102] sm:$0xff]
    %v104 = vld [vmem:[%s102 + $0x8] sm:$0xff]
    %v105 = vld [vmem:[%s102 + $0x10] sm:$0xff]
    %v106 = vld [vmem:[%s102 + $0x18] sm:$0xff]
    %v107 = vld [vmem:[%s102 + $0x20] sm:$0xff]
    %v108 = vld [vmem:[%s102 + $0x28] sm:$0xff]
    %v109 = vld [vmem:[%s102 + $0x30] sm:$0xff]
    %v110 = vld [vmem:[%s102 + $0x38] sm:$0xff]
    %v111 = vld [vmem:[%s102 + $0x40] sm:$0xff]
    %v112 = vld [vmem:[%s102 + $0x48] sm:$0xff]
    %v113 = vld [vmem:[%s102 + $0x50] sm:$0xff]
    %v114 = vld [vmem:[%s102 + $0x58] sm:$0xff]
    %v115 = vld [vmem:[%s102 + $0x60] sm:$0xff]
    %v116 = vld [vmem:[%s102 + $0x68] sm:$0xff]
    %v117 = vld [vmem:[%s102 + $0x70] sm:$0xff]
    %v118 = vld [vmem:[%s102 + $0x78] sm:$0xff]
    %119 = vmatprep.subr.mxu0 0.0
    %120 = vmatpush1.msra.mxu0 %v103
    %121 = vmatprep.subr.mxu0 0.0
    %122 = vmatpush1.msra.mxu0 %v104
    %123 = vmatprep.subr.mxu0 0.0
    %124 = vmatpush1.msra.mxu0 %v105
    %125 = vmatprep.subr.mxu0 0.0
    %126 = vmatpush1.msra.mxu0 %v106
    %127 = vmatprep.subr.mxu0 0.0
    %128 = vmatpush1.msra.mxu0 %v107
    %129 = vmatprep.subr.mxu0 0.0
    %130 = vmatpush1.msra.mxu0 %v108
    %131 = vmatprep.subr.mxu0 0.0
    %132 = vmatpush1.msra.mxu0 %v109
    %133 = vmatprep.subr.mxu0 0.0
    %134 = vmatpush1.msra.mxu0 %v110
    %135 = vmatprep.subr.mxu0 0.0
    %136 = vmatpush1.msra.mxu0 %v111
    %137 = vmatprep.subr.mxu0 0.0
    %138 = vmatpush1.msra.mxu0 %v112
    %139 = vmatprep.subr.mxu0 0.0
    %140 = vmatpush1.msra.mxu0 %v113
    %141 = vmatprep.subr.mxu0 0.0
    %142 = vmatpush1.msra.mxu0 %v114
    %143 = vmatprep.subr.mxu0 0.0
    %144 = vmatpush1.msra.mxu0 %v115
    %145 = vmatprep.subr.mxu0 0.0
    %146 = vmatpush1.msra.mxu0 %v116
    %147 = vmatprep.subr.mxu0 0.0
    %148 = vmatpush1.msra.mxu0 %v117
    %149 = vmatprep.subr.mxu0 0.0
    %150 = vmatpush1.msra.mxu0 %v118
    %151 = vmatprep.subr.mxu0 0.0
    %152 = vmatpush1.msra.mxu0 0.0
    %153 = vmatprep.subr.mxu0 0.0
    %154 = vmatpush1.msra.mxu0 0.0
    %155 = vmatprep.subr.mxu0 0.0
    %156 = vmatpush1.msra.mxu0 0.0
    %157 = vmatprep.subr.mxu0 0.0
    %158 = vmatpush1.msra.mxu0 0.0
    %159 = vmatprep.subr.mxu0 0.0
    %160 = vmatpush1.msra.mxu0 0.0
    %161 = vmatprep.subr.mxu0 0.0
    %162 = vmatpush1.msra.mxu0 0.0
    %163 = vmatprep.subr.mxu0 0.0
    %164 = vmatpush1.msra.mxu0 0.0
    %165 = vmatprep.subr.mxu0 0.0
    %166 = vmatpush1.msra.mxu0 0.0
    %167 = vmatprep.subr.mxu0 0.0
    %168 = vmatpush1.msra.mxu0 0.0
    %169 = vmatprep.subr.mxu0 0.0
    %170 = vmatpush1.msra.mxu0 0.0
    %171 = vmatprep.subr.mxu0 0.0
    %172 = vmatpush1.msra.mxu0 0.0
    %173 = vmatprep.subr.mxu0 0.0
    %174 = vmatpush1.msra.mxu0 0.0
    %175 = vmatprep.subr.mxu0 0.0
    %176 = vmatpush1.msra.mxu0 0.0
    %177 = vmatprep.subr.mxu0 0.0
    %178 = vmatpush1.msra.mxu0 0.0
    %179 = vmatprep.subr.mxu0 0.0
    %180 = vmatpush1.msra.mxu0 0.0
    %181 = vmatprep.subr.mxu0 0.0
    %182 = vmatpush1.msra.mxu0 0.0
    %183 = vmatprep.mubr.f32.mxu0 0.0
    %184 = vmatmul.mubr.f32.gmra.mrb[0].mxu0 %v98
    %v185 = vpop.f32.mrb[0].mxu0
    %v186 = vadd.f32 0.0, %v185
    %v187 = vpop.f32.mrb[0].mxu0
    %188 = vmatprep.mubr.f32.mxu0 0.0
    %189 = vmatmul.mubr.f32.gmra.mrb[0].mxu0 %v99
    %v190 = vpop.f32.mrb[0].mxu0
    %v191 = vadd.f32 0.0, %v190
    %v192 = vpop.f32.mrb[0].mxu0
    %193 = vmatprep.mubr.f32.mxu0 0.0
    %194 = vmatmul.mubr.f32.gmra.mrb[0].mxu0 %v100
    %v195 = vpop.f32.mrb[0].mxu0
    %v196 = vadd.f32 0.0, %v195
    %v197 = vpop.f32.mrb[0].mxu0
    %198 = vmatprep.mubr.f32.mxu0 0.0
    %199 = vmatmul.mubr.f32.gmra.mrb[0].mxu0 %v101
    %v200 = vpop.f32.mrb[0].mxu0
    %v201 = vadd.f32 0.0, %v200
    %v202 = vpop.f32.mrb[0].mxu0
    %203 = vdwg.mxu0
    %204 = vmatprep.subr.mxu0 0.0
    %205 = vmatpush1.msra.mxu0 %v82
    %206 = vmatprep.subr.mxu0 0.0
    %207 = vmatpush1.msra.mxu0 %v83
    %208 = vmatprep.subr.mxu0 0.0
    %209 = vmatpush1.msra.mxu0 %v84
    %210 = vmatprep.subr.mxu0 0.0
    %211 = vmatpush1.msra.mxu0 %v85
    %212 = vmatprep.subr.mxu0 0.0
    %213 = vmatpush1.msra.mxu0 %v86
    %214 = vmatprep.subr.mxu0 0.0
    %215 = vmatpush1.msra.mxu0 %v87
    %216 = vmatprep.subr.mxu0 0.0
    %217 = vmatpush1.msra.mxu0 %v88
    %218 = vmatprep.subr.mxu0 0.0
    %219 = vmatpush1.msra.mxu0 %v89
    %220 = vmatprep.subr.mxu0 0.0
    %221 = vmatpush1.msra.mxu0 %v90
    %222 = vmatprep.subr.mxu0 0.0
    %223 = vmatpush1.msra.mxu0 %v91
    %224 = vmatprep.subr.mxu0 0.0
    %225 = vmatpush1.msra.mxu0 %v92
    %226 = vmatprep.subr.mxu0 0.0
    %227 = vmatpush1.msra.mxu0 %v93
    %228 = vmatprep.subr.mxu0 0.0
    %229 = vmatpush1.msra.mxu0 %v94
    %230 = vmatprep.subr.mxu0 0.0
    %231 = vmatpush1.msra.mxu0 %v95
    %232 = vmatprep.subr.mxu0 0.0
    %233 = vmatpush1.msra.mxu0 %v96
    %234 = vmatprep.subr.mxu0 0.0
    %235 = vmatpush1.msra.mxu0 %v97
    %236 = vmatprep.subr.mxu0 0.0
    %237 = vmatpush1.msra.mxu0 0.0
    %238 = vmatprep.subr.mxu0 0.0
    %239 = vmatpush1.msra.mxu0 0.0
    %240 = vmatprep.subr.mxu0 0.0
    %241 = vmatpush1.msra.mxu0 0.0
    %242 = vmatprep.subr.mxu0 0.0
    %243 = vmatpush1.msra.mxu0 0.0
    %244 = vmatprep.subr.mxu0 0.0
    %245 = vmatpush1.msra.mxu0 0.0
    %246 = vmatprep.subr.mxu0 0.0
    %247 = vmatpush1.msra.mxu0 0.0
    %248 = vmatprep.subr.mxu0 0.0
    %249 = vmatpush1.msra.mxu0 0.0
    %250 = vmatprep.subr.mxu0 0.0
    %251 = vmatpush1.msra.mxu0 0.0
    %252 = vmatprep.subr.mxu0 0.0
    %253 = vmatpush1.msra.mxu0 0.0
    %254 = vmatprep.subr.mxu0 0.0
    %255 = vmatpush1.msra.mxu0 0.0
    %256 = vmatprep.subr.mxu0 0.0
    %257 = vmatpush1.msra.mxu0 0.0
    %258 = vmatprep.subr.mxu0 0.0
    %259 = vmatpush1.msra.mxu0 0.0
    %260 = vmatprep.subr.mxu0 0.0
    %261 = vmatpush1.msra.mxu0 0.0
    %262 = vmatprep.subr.mxu0 0.0
    %263 = vmatpush1.msra.mxu0 0.0
    %264 = vmatprep.subr.mxu0 0.0
    %265 = vmatpush1.msra.mxu0 0.0
    %266 = vmatprep.subr.mxu0 0.0
    %267 = vmatpush1.msra.mxu0 0.0
    %268 = vmatprep.mubr.f32.mxu0 0.0
    %269 = vmatmul.mubr.f32.gmra.mrb[0].mxu0 %v78
    %v270 = vpop.f32.mrb[0].mxu0
    %v271 = vadd.f32 %v186, %v270
    %v272 = vpop.f32.mrb[0].mxu0
    %273 = vmatprep.mubr.f32.mxu0 0.0
    %274 = vmatmul.mubr.f32.gmra.mrb[0].mxu0 %v79
    %v275 = vpop.f32.mrb[0].mxu0
    %v276 = vadd.f32 %v191, %v275
    %v277 = vpop.f32.mrb[0].mxu0
    %278 = vmatprep.mubr.f32.mxu0 0.0
    %279 = vmatmul.mubr.f32.gmra.mrb[0].mxu0 %v80
    %v280 = vpop.f32.mrb[0].mxu0
    %v281 = vadd.f32 %v196, %v280
    %v282 = vpop.f32.mrb[0].mxu0
    %283 = vmatprep.mubr.f32.mxu0 0.0
    %284 = vmatmul.mubr.f32.gmra.mrb[0].mxu0 %v81
    %v285 = vpop.f32.mrb[0].mxu0
    %v286 = vadd.f32 %v201, %v285
    %v287 = vpop.f32.mrb[0].mxu0
    %288 = vdwg.mxu0
    %v289 = vld [vmem:[#allocation2 + $0x2] sm:$0xff]
    %v290 = vld [vmem:[#allocation2 + $0xa] sm:$0xff]
    %v291 = vld [vmem:[#allocation2 + $0x1a] sm:$0xff]
    %v292 = vld [vmem:[#allocation2 + $0x22] sm:$0xff]
    %s293 = scalar_lea.vmem %s1, 256
    %v294 = vld [vmem:[%s293] sm:$0xff]
    %v295 = vld [vmem:[%s293 + $0x8] sm:$0xff]
    %v296 = vld [vmem:[%s293 + $0x10] sm:$0xff]
    %v297 = vld [vmem:[%s293 + $0x18] sm:$0xff]
    %v298 = vld [vmem:[%s293 + $0x20] sm:$0xff]
    %v299 = vld [vmem:[%s293 + $0x28] sm:$0xff]
    %v300 = vld [vmem:[%s293 + $0x30] sm:$0xff]
    %v301 = vld [vmem:[%s293 + $0x38] sm:$0xff]
    %v302 = vld [vmem:[%s293 + $0x40] sm:$0xff]
    %v303 = vld [vmem:[%s293 + $0x48] sm:$0xff]
    %v304 = vld [vmem:[%s293 + $0x50] sm:$0xff]
    %v305 = vld [vmem:[%s293 + $0x58] sm:$0xff]
    %v306 = vld [vmem:[%s293 + $0x60] sm:$0xff]
    %v307 = vld [vmem:[%s293 + $0x68] sm:$0xff]
    %v308 = vld [vmem:[%s293 + $0x70] sm:$0xff]
    %v309 = vld [vmem:[%s293 + $0x78] sm:$0xff]
    %310 = vmatprep.subr.mxu0 0.0
    %311 = vmatpush1.msra.mxu0 %v294
    %312 = vmatprep.subr.mxu0 0.0
    %313 = vmatpush1.msra.mxu0 %v295
    %314 = vmatprep.subr.mxu0 0.0
    %315 = vmatpush1.msra.mxu0 %v296
    %316 = vmatprep.subr.mxu0 0.0
    %317 = vmatpush1.msra.mxu0 %v297
    %318 = vmatprep.subr.mxu0 0.0
    %319 = vmatpush1.msra.mxu0 %v298
    %320 = vmatprep.subr.mxu0 0.0
    %321 = vmatpush1.msra.mxu0 %v299
    %322 = vmatprep.subr.mxu0 0.0
    %323 = vmatpush1.msra.mxu0 %v300
    %324 = vmatprep.subr.mxu0 0.0
    %325 = vmatpush1.msra.mxu0 %v301
    %326 = vmatprep.subr.mxu0 0.0
    %327 = vmatpush1.msra.mxu0 %v302
    %328 = vmatprep.subr.mxu0 0.0
    %329 = vmatpush1.msra.mxu0 %v303
    %330 = vmatprep.subr.mxu0 0.0
    %331 = vmatpush1.msra.mxu0 %v304
    %332 = vmatprep.subr.mxu0 0.0
    %333 = vmatpush1.msra.mxu0 %v305
    %334 = vmatprep.subr.mxu0 0.0
    %335 = vmatpush1.msra.mxu0 %v306
    %336 = vmatprep.subr.mxu0 0.0
    %337 = vmatpush1.msra.mxu0 %v307
    %338 = vmatprep.subr.mxu0 0.0
    %339 = vmatpush1.msra.mxu0 %v308
    %340 = vmatprep.subr.mxu0 0.0
    %341 = vmatpush1.msra.mxu0 %v309
    %342 = vmatprep.subr.mxu0 0.0
    %343 = vmatpush1.msra.mxu0 0.0
    %344 = vmatprep.subr.mxu0 0.0
    %345 = vmatpush1.msra.mxu0 0.0
    %346 = vmatprep.subr.mxu0 0.0
    %347 = vmatpush1.msra.mxu0 0.0
    %348 = vmatprep.subr.mxu0 0.0
    %349 = vmatpush1.msra.mxu0 0.0
    %350 = vmatprep.subr.mxu0 0.0
    %351 = vmatpush1.msra.mxu0 0.0
    %352 = vmatprep.subr.mxu0 0.0
    %353 = vmatpush1.msra.mxu0 0.0
    %354 = vmatprep.subr.mxu0 0.0
    %355 = vmatpush1.msra.mxu0 0.0
    %356 = vmatprep.subr.mxu0 0.0
    %357 = vmatpush1.msra.mxu0 0.0
    %358 = vmatprep.subr.mxu0 0.0
    %359 = vmatpush1.msra.mxu0 0.0
    %360 = vmatprep.subr.mxu0 0.0
    %361 = vmatpush1.msra.mxu0 0.0
    %362 = vmatprep.subr.mxu0 0.0
    %363 = vmatpush1.msra.mxu0 0.0
    %364 = vmatprep.subr.mxu0 0.0
    %365 = vmatpush1.msra.mxu0 0.0
    %366 = vmatprep.subr.mxu0 0.0
    %367 = vmatpush1.msra.mxu0 0.0
    %368 = vmatprep.subr.mxu0 0.0
    %369 = vmatpush1.msra.mxu0 0.0
    %370 = vmatprep.subr.mxu0 0.0
    %371 = vmatpush1.msra.mxu0 0.0
    %372 = vmatprep.subr.mxu0 0.0
    %373 = vmatpush1.msra.mxu0 0.0
    %374 = vmatprep.mubr.f32.mxu0 0.0
    %375 = vmatmul.mubr.f32.gmra.mrb[0].mxu0 %v289
    %v376 = vpop.f32.mrb[0].mxu0
    %v377 = vadd.f32 0.0, %v376
    %v378 = vpop.f32.mrb[0].mxu0
    %379 = vmatprep.mubr.f32.mxu0 0.0
    %380 = vmatmul.mubr.f32.gmra.mrb[0].mxu0 %v290
    %v381 = vpop.f32.mrb[0].mxu0
    %v382 = vadd.f32 0.0, %v381
    %v383 = vpop.f32.mrb[0].mxu0
    %384 = vmatprep.mubr.f32.mxu0 0.0
    %385 = vmatmul.mubr.f32.gmra.mrb[0].mxu0 %v291
    %v386 = vpop.f32.mrb[0].mxu0
    %v387 = vadd.f32 0.0, %v386
    %v388 = vpop.f32.mrb[0].mxu0
    %389 = vmatprep.mubr.f32.mxu0 0.0
    %390 = vmatmul.mubr.f32.gmra.mrb[0].mxu0 %v292
    %v391 = vpop.f32.mrb[0].mxu0
    %v392 = vadd.f32 0.0, %v391
    %v393 = vpop.f32.mrb[0].mxu0
    %394 = vdwg.mxu0
    %v395 = vadd.f32 %v271, %v377
    %v396 = vadd.f32 %v276, %v382
    %v397 = vadd.f32 %v281, %v387
    %v398 = vadd.f32 %v286, %v392
    %vm399 = vcmask 261120
    %v400 = vsel %vm399, %v395, 0.0
    %v401 = vsel %vm399, %v396, 0.0
    %v402 = vadd.f32 %v400, %v401
    %v403 = vsel %vm399, %v397, 0.0
    %v404 = vadd.f32 %v402, %v403
    %v405 = vsel %vm399, %v398, 0.0
    %v406 = vadd.f32 %v404, %v405
    %v407 = vrot.slane %v406, 4
    %v408 = vadd.f32 %v406, %v407
    %v409 = vrot.slane %v408, 2
    %v410 = vadd.f32 %v408, %v409
    %v411 = vrot.slane %v410, 1
    %v412 = vadd.f32 %v410, %v411
    %v413 = vld [vmem:[%s10] sm:$0xff]
    %v414 = vld [vmem:[%s10 + $0x8] sm:$0xff]
    %v415 = vld [vmem:[%s10 + $0x10] sm:$0xff]
    %v416 = vld [vmem:[%s10 + $0x18] sm:$0xff]
    %v418 = vsel %vm399, %v412, 0
    %420 = vmatprep.subr.mxu0 0.0
    %421 = vmatpush1.msra.mxu0 %v413
    %422 = vmatprep.subr.mxu0 0.0
    %423 = vmatpush1.msra.mxu0 %v414
    %424 = vmatprep.subr.mxu0 0.0
    %425 = vmatpush1.msra.mxu0 %v415
    %426 = vmatprep.subr.mxu0 0.0
    %427 = vmatpush1.msra.mxu0 %v416
    %428 = vmatprep.subr.mxu0 0.0
    %429 = vmatpush1.msra.mxu0 0.0
    %430 = vmatprep.subr.mxu0 0.0
    %431 = vmatpush1.msra.mxu0 0.0
    %432 = vmatprep.subr.mxu0 0.0
    %433 = vmatpush1.msra.mxu0 0.0
    %434 = vmatprep.subr.mxu0 0.0
    %435 = vmatpush1.msra.mxu0 0.0
    %436 = vmatprep.subr.mxu0 0.0
    %437 = vmatpush1.msra.mxu0 0.0
    %438 = vmatprep.subr.mxu0 0.0
    %439 = vmatpush1.msra.mxu0 0.0
    %440 = vmatprep.subr.mxu0 0.0
    %441 = vmatpush1.msra.mxu0 0.0
    %442 = vmatprep.subr.mxu0 0.0
    %443 = vmatpush1.msra.mxu0 0.0
    %444 = vmatprep.subr.mxu0 0.0
    %445 = vmatpush1.msra.mxu0 0.0
    %446 = vmatprep.subr.mxu0 0.0
    %447 = vmatpush1.msra.mxu0 0.0
    %448 = vmatprep.subr.mxu0 0.0
    %449 = vmatpush1.msra.mxu0 0.0
    %450 = vmatprep.subr.mxu0 0.0
    %451 = vmatpush1.msra.mxu0 0.0
    %452 = vmatprep.subr.mxu0 0.0
    %453 = vmatpush1.msra.mxu0 0.0
    %454 = vmatprep.subr.mxu0 0.0
    %455 = vmatpush1.msra.mxu0 0.0
    %456 = vmatprep.subr.mxu0 0.0
    %457 = vmatpush1.msra.mxu0 0.0
    %458 = vmatprep.subr.mxu0 0.0
    %459 = vmatpush1.msra.mxu0 0.0
    %460 = vmatprep.subr.mxu0 0.0
    %461 = vmatpush1.msra.mxu0 0.0
    %462 = vmatprep.subr.mxu0 0.0
    %463 = vmatpush1.msra.mxu0 0.0
    %464 = vmatprep.subr.mxu0 0.0
    %465 = vmatpush1.msra.mxu0 0.0
    %466 = vmatprep.subr.mxu0 0.0
    %467 = vmatpush1.msra.mxu0 0.0
    %468 = vmatprep.subr.mxu0 0.0
    %469 = vmatpush1.msra.mxu0 0.0
    %470 = vmatprep.subr.mxu0 0.0
    %471 = vmatpush1.msra.mxu0 0.0
    %472 = vmatprep.subr.mxu0 0.0
    %473 = vmatpush1.msra.mxu0 0.0
    %474 = vmatprep.subr.mxu0 0.0
    %475 = vmatpush1.msra.mxu0 0.0
    %476 = vmatprep.subr.mxu0 0.0
    %477 = vmatpush1.msra.mxu0 0.0
    %478 = vmatprep.subr.mxu0 0.0
    %479 = vmatpush1.msra.mxu0 0.0
    %480 = vmatprep.subr.mxu0 0.0
    %481 = vmatpush1.msra.mxu0 0.0
    %482 = vmatprep.subr.mxu0 0.0
    %483 = vmatpush1.msra.mxu0 0.0
    %484 = vmatprep.mubr.f32.mxu0 0.0
    %485 = vmatmul.mubr.f32.gmra.mrb[0].mxu0 %v418
    %v486 = vpop.f32.mrb[0].mxu0
    %v487 = vadd.f32 0.0, %v486
    %v488 = vpop.f32.mrb[0].mxu0
    %489 = vdwg.mxu0
    %v490 = vmul.f32 %v487, 0.001953125
    %v491 = vld [vmem:[%s11] sm:$0x3]
    %vm492 = vcmask 15360
    %v494 = vsel %vm492, %v490, 0
    %vm496 = vcmask 1041408
    %v498 = vsel %vm496, %v491, 0
    %500 = vmatprep.subr.mxu0 0.0
    %501 = vmatpush1.msra.mxu0 %v498
    %502 = vmatprep.subr.mxu0 0.0
    %503 = vmatpush1.msra.mxu0 0.0
    %504 = vmatprep.subr.mxu0 0.0
    %505 = vmatpush1.msra.mxu0 0.0
    %506 = vmatprep.subr.mxu0 0.0
    %507 = vmatpush1.msra.mxu0 0.0
    %508 = vmatprep.subr.mxu0 0.0
    %509 = vmatpush1.msra.mxu0 0.0
    %510 = vmatprep.subr.mxu0 0.0
    %511 = vmatpush1.msra.mxu0 0.0
    %512 = vmatprep.subr.mxu0 0.0
    %513 = vmatpush1.msra.mxu0 0.0
    %514 = vmatprep.subr.mxu0 0.0
    %515 = vmatpush1.msra.mxu0 0.0
    %516 = vmatprep.subr.mxu0 0.0
    %517 = vmatpush1.msra.mxu0 0.0
    %518 = vmatprep.subr.mxu0 0.0
    %519 = vmatpush1.msra.mxu0 0.0
    %520 = vmatprep.subr.mxu0 0.0
    %521 = vmatpush1.msra.mxu0 0.0
    %522 = vmatprep.subr.mxu0 0.0
    %523 = vmatpush1.msra.mxu0 0.0
    %524 = vmatprep.subr.mxu0 0.0
    %525 = vmatpush1.msra.mxu0 0.0
    %526 = vmatprep.subr.mxu0 0.0
    %527 = vmatpush1.msra.mxu0 0.0
    %528 = vmatprep.subr.mxu0 0.0
    %529 = vmatpush1.msra.mxu0 0.0
    %530 = vmatprep.subr.mxu0 0.0
    %531 = vmatpush1.msra.mxu0 0.0
    %532 = vmatprep.subr.mxu0 0.0
    %533 = vmatpush1.msra.mxu0 0.0
    %534 = vmatprep.subr.mxu0 0.0
    %535 = vmatpush1.msra.mxu0 0.0
    %536 = vmatprep.subr.mxu0 0.0
    %537 = vmatpush1.msra.mxu0 0.0
    %538 = vmatprep.subr.mxu0 0.0
    %539 = vmatpush1.msra.mxu0 0.0
    %540 = vmatprep.subr.mxu0 0.0
    %541 = vmatpush1.msra.mxu0 0.0
    %542 = vmatprep.subr.mxu0 0.0
    %543 = vmatpush1.msra.mxu0 0.0
    %544 = vmatprep.subr.mxu0 0.0
    %545 = vmatpush1.msra.mxu0 0.0
    %546 = vmatprep.subr.mxu0 0.0
    %547 = vmatpush1.msra.mxu0 0.0
    %548 = vmatprep.subr.mxu0 0.0
    %549 = vmatpush1.msra.mxu0 0.0
    %550 = vmatprep.subr.mxu0 0.0
    %551 = vmatpush1.msra.mxu0 0.0
    %552 = vmatprep.subr.mxu0 0.0
    %553 = vmatpush1.msra.mxu0 0.0
    %554 = vmatprep.subr.mxu0 0.0
    %555 = vmatpush1.msra.mxu0 0.0
    %556 = vmatprep.subr.mxu0 0.0
    %557 = vmatpush1.msra.mxu0 0.0
    %558 = vmatprep.subr.mxu0 0.0
    %559 = vmatpush1.msra.mxu0 0.0
    %560 = vmatprep.subr.mxu0 0.0
    %561 = vmatpush1.msra.mxu0 0.0
    %562 = vmatprep.subr.mxu0 0.0
    %563 = vmatpush1.msra.mxu0 0.0
    %564 = vmatprep.mubr.f32.mxu0 0.0
    %565 = vmatmul.mubr.f32.gmra.mrb[0].mxu0 %v494
    %v566 = vpop.f32.mrb[0].mxu0
    %v567 = vadd.f32 0.0, %v566
    %v568 = vpop.f32.mrb[0].mxu0
    %569 = vdwg.mxu0
    %v570 = vlaneseq
    %v571 = vshrl.u32 %v570, 7
    %v572 = vsub.s32 0, %v571
    %v573 = vrot.slane %v567, %v572
    %v574 = vsub.f32 %v395, %v573
    %v575 = vsub.f32 %v396, %v573
    %v576 = vsub.f32 %v397, %v573
    %v577 = vsub.f32 %v398, %v573
    %v578 = vmul.f32 %v574, %v574
    %v579 = vmul.f32 %v575, %v575
    %v580 = vmul.f32 %v576, %v576
    %v581 = vmul.f32 %v577, %v577
    %v582 = vsel %vm399, %v578, 0.0
    %v583 = vsel %vm399, %v579, 0.0
    %v584 = vadd.f32 %v582, %v583
    %v585 = vsel %vm399, %v580, 0.0
    %v586 = vadd.f32 %v584, %v585
    %v587 = vsel %vm399, %v581, 0.0
    %v588 = vadd.f32 %v586, %v587
    %v589 = vrot.slane %v588, 4
    %v590 = vadd.f32 %v588, %v589
    %v591 = vrot.slane %v590, 2
    %v592 = vadd.f32 %v590, %v591
    %v593 = vrot.slane %v592, 1
    %v594 = vadd.f32 %v592, %v593
    %v596 = vsel %vm399, %v594, 0
    %598 = vmatprep.subr.mxu0 0.0
    %599 = vmatpush1.msra.mxu0 %v413
    %600 = vmatprep.subr.mxu0 0.0
    %601 = vmatpush1.msra.mxu0 %v414
    %602 = vmatprep.subr.mxu0 0.0
    %603 = vmatpush1.msra.mxu0 %v415
    %604 = vmatprep.subr.mxu0 0.0
    %605 = vmatpush1.msra.mxu0 %v416
    %606 = vmatprep.subr.mxu0 0.0
    %607 = vmatpush1.msra.mxu0 0.0
    %608 = vmatprep.subr.mxu0 0.0
    %609 = vmatpush1.msra.mxu0 0.0
    %610 = vmatprep.subr.mxu0 0.0
    %611 = vmatpush1.msra.mxu0 0.0
    %612 = vmatprep.subr.mxu0 0.0
    %613 = vmatpush1.msra.mxu0 0.0
    %614 = vmatprep.subr.mxu0 0.0
    %615 = vmatpush1.msra.mxu0 0.0
    %616 = vmatprep.subr.mxu0 0.0
    %617 = vmatpush1.msra.mxu0 0.0
    %618 = vmatprep.subr.mxu0 0.0
    %619 = vmatpush1.msra.mxu0 0.0
    %620 = vmatprep.subr.mxu0 0.0
    %621 = vmatpush1.msra.mxu0 0.0
    %622 = vmatprep.subr.mxu0 0.0
    %623 = vmatpush1.msra.mxu0 0.0
    %624 = vmatprep.subr.mxu0 0.0
    %625 = vmatpush1.msra.mxu0 0.0
    %626 = vmatprep.subr.mxu0 0.0
    %627 = vmatpush1.msra.mxu0 0.0
    %628 = vmatprep.subr.mxu0 0.0
    %629 = vmatpush1.msra.mxu0 0.0
    %630 = vmatprep.subr.mxu0 0.0
    %631 = vmatpush1.msra.mxu0 0.0
    %632 = vmatprep.subr.mxu0 0.0
    %633 = vmatpush1.msra.mxu0 0.0
    %634 = vmatprep.subr.mxu0 0.0
    %635 = vmatpush1.msra.mxu0 0.0
    %636 = vmatprep.subr.mxu0 0.0
    %637 = vmatpush1.msra.mxu0 0.0
    %638 = vmatprep.subr.mxu0 0.0
    %639 = vmatpush1.msra.mxu0 0.0
    %640 = vmatprep.subr.mxu0 0.0
    %641 = vmatpush1.msra.mxu0 0.0
    %642 = vmatprep.subr.mxu0 0.0
    %643 = vmatpush1.msra.mxu0 0.0
    %644 = vmatprep.subr.mxu0 0.0
    %645 = vmatpush1.msra.mxu0 0.0
    %646 = vmatprep.subr.mxu0 0.0
    %647 = vmatpush1.msra.mxu0 0.0
    %648 = vmatprep.subr.mxu0 0.0
    %649 = vmatpush1.msra.mxu0 0.0
    %650 = vmatprep.subr.mxu0 0.0
    %651 = vmatpush1.msra.mxu0 0.0
    %652 = vmatprep.subr.mxu0 0.0
    %653 = vmatpush1.msra.mxu0 0.0
    %654 = vmatprep.subr.mxu0 0.0
    %655 = vmatpush1.msra.mxu0 0.0
    %656 = vmatprep.subr.mxu0 0.0
    %657 = vmatpush1.msra.mxu0 0.0
    %658 = vmatprep.subr.mxu0 0.0
    %659 = vmatpush1.msra.mxu0 0.0
    %660 = vmatprep.subr.mxu0 0.0
    %661 = vmatpush1.msra.mxu0 0.0
    %662 = vmatprep.mubr.f32.mxu0 0.0
    %663 = vmatmul.mubr.f32.gmra.mrb[0].mxu0 %v596
    %v664 = vpop.f32.mrb[0].mxu0
    %v665 = vadd.f32 0.0, %v664
    %v666 = vpop.f32.mrb[0].mxu0
    %667 = vdwg.mxu0
    %v668 = vmul.f32 %v665, 0.001953125
    %v669 = vld [vmem:[%s4] sm:$0x1]
    %v670 = vadd.f32 %v668, 1e-05
    %v671 = vrsqrt.pop %v670
    %v672 = vmul.f32 %v669, %v671
    %v673 = vld [vmem:[%s5] sm:$0x1]
    %v674 = vmul.f32 %v490, %v672
    %v675 = vsub.f32 %v673, %v674
    %v677 = vsel %vm492, %v672, 0
    %679 = vmatprep.subr.mxu0 0.0
    %680 = vmatpush1.msra.mxu0 %v498
    %681 = vmatprep.subr.mxu0 0.0
    %682 = vmatpush1.msra.mxu0 0.0
    %683 = vmatprep.subr.mxu0 0.0
    %684 = vmatpush1.msra.mxu0 0.0
    %685 = vmatprep.subr.mxu0 0.0
    %686 = vmatpush1.msra.mxu0 0.0
    %687 = vmatprep.subr.mxu0 0.0
    %688 = vmatpush1.msra.mxu0 0.0
    %689 = vmatprep.subr.mxu0 0.0
    %690 = vmatpush1.msra.mxu0 0.0
    %691 = vmatprep.subr.mxu0 0.0
    %692 = vmatpush1.msra.mxu0 0.0
    %693 = vmatprep.subr.mxu0 0.0
    %694 = vmatpush1.msra.mxu0 0.0
    %695 = vmatprep.subr.mxu0 0.0
    %696 = vmatpush1.msra.mxu0 0.0
    %697 = vmatprep.subr.mxu0 0.0
    %698 = vmatpush1.msra.mxu0 0.0
    %699 = vmatprep.subr.mxu0 0.0
    %700 = vmatpush1.msra.mxu0 0.0
    %701 = vmatprep.subr.mxu0 0.0
    %702 = vmatpush1.msra.mxu0 0.0
    %703 = vmatprep.subr.mxu0 0.0
    %704 = vmatpush1.msra.mxu0 0.0
    %705 = vmatprep.subr.mxu0 0.0
    %706 = vmatpush1.msra.mxu0 0.0
    %707 = vmatprep.subr.mxu0 0.0
    %708 = vmatpush1.msra.mxu0 0.0
    %709 = vmatprep.subr.mxu0 0.0
    %710 = vmatpush1.msra.mxu0 0.0
    %711 = vmatprep.subr.mxu0 0.0
    %712 = vmatpush1.msra.mxu0 0.0
    %713 = vmatprep.subr.mxu0 0.0
    %714 = vmatpush1.msra.mxu0 0.0
    %715 = vmatprep.subr.mxu0 0.0
    %716 = vmatpush1.msra.mxu0 0.0
    %717 = vmatprep.subr.mxu0 0.0
    %718 = vmatpush1.msra.mxu0 0.0
    %719 = vmatprep.subr.mxu0 0.0
    %720 = vmatpush1.msra.mxu0 0.0
    %721 = vmatprep.subr.mxu0 0.0
    %722 = vmatpush1.msra.mxu0 0.0
    %723 = vmatprep.subr.mxu0 0.0
    %724 = vmatpush1.msra.mxu0 0.0
    %725 = vmatprep.subr.mxu0 0.0
    %726 = vmatpush1.msra.mxu0 0.0
    %727 = vmatprep.subr.mxu0 0.0
    %728 = vmatpush1.msra.mxu0 0.0
    %729 = vmatprep.subr.mxu0 0.0
    %730 = vmatpush1.msra.mxu0 0.0
    %731 = vmatprep.subr.mxu0 0.0
    %732 = vmatpush1.msra.mxu0 0.0
    %733 = vmatprep.subr.mxu0 0.0
    %734 = vmatpush1.msra.mxu0 0.0
    %735 = vmatprep.subr.mxu0 0.0
    %736 = vmatpush1.msra.mxu0 0.0
    %737 = vmatprep.subr.mxu0 0.0
    %738 = vmatpush1.msra.mxu0 0.0
    %739 = vmatprep.subr.mxu0 0.0
    %740 = vmatpush1.msra.mxu0 0.0
    %741 = vmatprep.subr.mxu0 0.0
    %742 = vmatpush1.msra.mxu0 0.0
    %743 = vmatprep.mubr.f32.mxu0 0.0
    %744 = vmatmul.mubr.f32.gmra.mrb[0].mxu0 %v677
    %v745 = vpop.f32.mrb[0].mxu0
    %v746 = vadd.f32 0.0, %v745
    %v747 = vpop.f32.mrb[0].mxu0
    %748 = vdwg.mxu0
    %v750 = vsel %vm492, %v675, 0
    %752 = vmatprep.subr.mxu0 0.0
    %753 = vmatpush1.msra.mxu0 %v498
    %754 = vmatprep.subr.mxu0 0.0
    %755 = vmatpush1.msra.mxu0 0.0
    %756 = vmatprep.subr.mxu0 0.0
    %757 = vmatpush1.msra.mxu0 0.0
    %758 = vmatprep.subr.mxu0 0.0
    %759 = vmatpush1.msra.mxu0 0.0
    %760 = vmatprep.subr.mxu0 0.0
    %761 = vmatpush1.msra.mxu0 0.0
    %762 = vmatprep.subr.mxu0 0.0
    %763 = vmatpush1.msra.mxu0 0.0
    %764 = vmatprep.subr.mxu0 0.0
    %765 = vmatpush1.msra.mxu0 0.0
    %766 = vmatprep.subr.mxu0 0.0
    %767 = vmatpush1.msra.mxu0 0.0
    %768 = vmatprep.subr.mxu0 0.0
    %769 = vmatpush1.msra.mxu0 0.0
    %770 = vmatprep.subr.mxu0 0.0
    %771 = vmatpush1.msra.mxu0 0.0
    %772 = vmatprep.subr.mxu0 0.0
    %773 = vmatpush1.msra.mxu0 0.0
    %774 = vmatprep.subr.mxu0 0.0
    %775 = vmatpush1.msra.mxu0 0.0
    %776 = vmatprep.subr.mxu0 0.0
    %777 = vmatpush1.msra.mxu0 0.0
    %778 = vmatprep.subr.mxu0 0.0
    %779 = vmatpush1.msra.mxu0 0.0
    %780 = vmatprep.subr.mxu0 0.0
    %781 = vmatpush1.msra.mxu0 0.0
    %782 = vmatprep.subr.mxu0 0.0
    %783 = vmatpush1.msra.mxu0 0.0
    %784 = vmatprep.subr.mxu0 0.0
    %785 = vmatpush1.msra.mxu0 0.0
    %786 = vmatprep.subr.mxu0 0.0
    %787 = vmatpush1.msra.mxu0 0.0
    %788 = vmatprep.subr.mxu0 0.0
    %789 = vmatpush1.msra.mxu0 0.0
    %790 = vmatprep.subr.mxu0 0.0
    %791 = vmatpush1.msra.mxu0 0.0
    %792 = vmatprep.subr.mxu0 0.0
    %793 = vmatpush1.msra.mxu0 0.0
    %794 = vmatprep.subr.mxu0 0.0
    %795 = vmatpush1.msra.mxu0 0.0
    %796 = vmatprep.subr.mxu0 0.0
    %797 = vmatpush1.msra.mxu0 0.0
    %798 = vmatprep.subr.mxu0 0.0
    %799 = vmatpush1.msra.mxu0 0.0
    %800 = vmatprep.subr.mxu0 0.0
    %801 = vmatpush1.msra.mxu0 0.0
    %802 = vmatprep.subr.mxu0 0.0
    %803 = vmatpush1.msra.mxu0 0.0
    %804 = vmatprep.subr.mxu0 0.0
    %805 = vmatpush1.msra.mxu0 0.0
    %806 = vmatprep.subr.mxu0 0.0
    %807 = vmatpush1.msra.mxu0 0.0
    %808 = vmatprep.subr.mxu0 0.0
    %809 = vmatpush1.msra.mxu0 0.0
    %810 = vmatprep.subr.mxu0 0.0
    %811 = vmatpush1.msra.mxu0 0.0
    %812 = vmatprep.subr.mxu0 0.0
    %813 = vmatpush1.msra.mxu0 0.0
    %814 = vmatprep.subr.mxu0 0.0
    %815 = vmatpush1.msra.mxu0 0.0
    %816 = vmatprep.mubr.f32.mxu0 0.0
    %817 = vmatmul.mubr.f32.gmra.mrb[0].mxu0 %v750
    %v818 = vpop.f32.mrb[0].mxu0
    %v819 = vadd.f32 0.0, %v818
    %v820 = vpop.f32.mrb[0].mxu0
    %821 = vdwg.mxu0
    %v822 = vlaneseq
    %v823 = vshrl.u32 %v822, 7
    %v824 = vsub.s32 0, %v823
    %v825 = vrot.slane %v746, %v824
    %v826 = vmul.f32 %v395, %v825
    %v827 = vmul.f32 %v396, %v825
    %v828 = vmul.f32 %v397, %v825
    %v829 = vmul.f32 %v398, %v825
    %v830 = vlaneseq
    %v831 = vshrl.u32 %v830, 7
    %v832 = vsub.s32 0, %v831
    %v833 = vrot.slane %v819, %v832
    %v834 = vadd.f32 %v826, %v833
    %v835 = vadd.f32 %v827, %v833
    %v836 = vadd.f32 %v828, %v833
    %v837 = vadd.f32 %v829, %v833
    %v838 = vmax.f32 %v834, 0.0
    %v839 = vmax.f32 %v835, 0.0
    %v840 = vmax.f32 %v836, 0.0
    %v841 = vmax.f32 %v837, 0.0
    %842 = vst.msk [vmem:[#allocation3] sm:$0xff] %vm399, 0.0
    %843 = vst.msk [vmem:[#allocation3 + $0x8] sm:$0xff] %vm399, 0.0
    %vm844 = vcmask 254976
    %845 = vst.msk [vmem:[#allocation3 + $0x10] sm:$0x3] %vm844, 0.0
    %846 = vst.msk [vmem:[#allocation3 + $0x18] sm:$0xff] %vm399, 0.0
    %847 = vst.msk [vmem:[#allocation3 + $0x20] sm:$0xff] %vm399, 0.0
    %848 = vst.msk [vmem:[#allocation3 + $0x28] sm:$0x3] %vm844, 0.0
    %849 = vst.msk [vmem:[#allocation3 + $0x1] sm:$0xff] %vm399, %v838
    %850 = vst.msk [vmem:[#allocation3 + $0x9] sm:$0xff] %vm399, %v839
    %851 = vst.msk [vmem:[#allocation3 + $0x19] sm:$0xff] %vm399, %v840
    %852 = vst.msk [vmem:[#allocation3 + $0x21] sm:$0xff] %vm399, %v841
    %v853 = vld [vmem:[#allocation3] sm:$0xff]
    %v854 = vld [vmem:[#allocation3 + $0x8] sm:$0xff]
    %v855 = vld [vmem:[#allocation3 + $0x18] sm:$0xff]
    %v856 = vld [vmem:[#allocation3 + $0x20] sm:$0xff]
    %v857 = vld [vmem:[%s2] sm:$0xff]
    %v858 = vld [vmem:[%s2 + $0x8] sm:$0xff]
    %v859 = vld [vmem:[%s2 + $0x10] sm:$0xff]
    %v860 = vld [vmem:[%s2 + $0x18] sm:$0xff]
    %v861 = vld [vmem:[#allocation3 + $0x1] sm:$0xff]
    %v862 = vld [vmem:[#allocation3 + $0x9] sm:$0xff]
    %v863 = vld [vmem:[#allocation3 + $0x19] sm:$0xff]
    %v864 = vld [vmem:[#allocation3 + $0x21] sm:$0xff]
    %s865 = scalar_lea.vmem %s2, 32
    %v866 = vld [vmem:[%s865] sm:$0xff]
    %v867 = vld [vmem:[%s865 + $0x8] sm:$0xff]
    %v868 = vld [vmem:[%s865 + $0x10] sm:$0xff]
    %v869 = vld [vmem:[%s865 + $0x18] sm:$0xff]
    %v871 = vsel %vm399, %v861, 0
    %v874 = vsel %vm399, %v862, 0
    %v877 = vsel %vm399, %v863, 0
    %v880 = vsel %vm399, %v864, 0
    %882 = vmatprep.subr.mxu0 0.0
    %883 = vmatpush1.msra.mxu0 %v866
    %884 = vmatprep.subr.mxu0 0.0
    %885 = vmatpush1.msra.mxu0 %v867
    %886 = vmatprep.subr.mxu0 0.0
    %887 = vmatpush1.msra.mxu0 %v868
    %888 = vmatprep.subr.mxu0 0.0
    %889 = vmatpush1.msra.mxu0 %v869
    %890 = vmatprep.subr.mxu0 0.0
    %891 = vmatpush1.msra.mxu0 0.0
    %892 = vmatprep.subr.mxu0 0.0
    %893 = vmatpush1.msra.mxu0 0.0
    %894 = vmatprep.subr.mxu0 0.0
    %895 = vmatpush1.msra.mxu0 0.0
    %896 = vmatprep.subr.mxu0 0.0
    %897 = vmatpush1.msra.mxu0 0.0
    %898 = vmatprep.subr.mxu0 0.0
    %899 = vmatpush1.msra.mxu0 0.0
    %900 = vmatprep.subr.mxu0 0.0
    %901 = vmatpush1.msra.mxu0 0.0
    %902 = vmatprep.subr.mxu0 0.0
    %903 = vmatpush1.msra.mxu0 0.0
    %904 = vmatprep.subr.mxu0 0.0
    %905 = vmatpush1.msra.mxu0 0.0
    %906 = vmatprep.subr.mxu0 0.0
    %907 = vmatpush1.msra.mxu0 0.0
    %908 = vmatprep.subr.mxu0 0.0
    %909 = vmatpush1.msra.mxu0 0.0
    %910 = vmatprep.subr.mxu0 0.0
    %911 = vmatpush1.msra.mxu0 0.0
    %912 = vmatprep.subr.mxu0 0.0
    %913 = vmatpush1.msra.mxu0 0.0
    %914 = vmatprep.subr.mxu0 0.0
    %915 = vmatpush1.msra.mxu0 0.0
    %916 = vmatprep.subr.mxu0 0.0
    %917 = vmatpush1.msra.mxu0 0.0
    %918 = vmatprep.subr.mxu0 0.0
    %919 = vmatpush1.msra.mxu0 0.0
    %920 = vmatprep.subr.mxu0 0.0
    %921 = vmatpush1.msra.mxu0 0.0
    %922 = vmatprep.subr.mxu0 0.0
    %923 = vmatpush1.msra.mxu0 0.0
    %924 = vmatprep.subr.mxu0 0.0
    %925 = vmatpush1.msra.mxu0 0.0
    %926 = vmatprep.subr.mxu0 0.0
    %927 = vmatpush1.msra.mxu0 0.0
    %928 = vmatprep.subr.mxu0 0.0
    %929 = vmatpush1.msra.mxu0 0.0
    %930 = vmatprep.subr.mxu0 0.0
    %931 = vmatpush1.msra.mxu0 0.0
    %932 = vmatprep.subr.mxu0 0.0
    %933 = vmatpush1.msra.mxu0 0.0
    %934 = vmatprep.subr.mxu0 0.0
    %935 = vmatpush1.msra.mxu0 0.0
    %936 = vmatprep.subr.mxu0 0.0
    %937 = vmatpush1.msra.mxu0 0.0
    %938 = vmatprep.subr.mxu0 0.0
    %939 = vmatpush1.msra.mxu0 0.0
    %940 = vmatprep.subr.mxu0 0.0
    %941 = vmatpush1.msra.mxu0 0.0
    %942 = vmatprep.subr.mxu0 0.0
    %943 = vmatpush1.msra.mxu0 0.0
    %944 = vmatprep.subr.mxu0 0.0
    %945 = vmatpush1.msra.mxu0 0.0
    %946 = vmatprep.mubr.f32.mxu0 0.0
    %947 = vmatmul.mubr.f32.gmra.mrb[0].mxu0 %v871
    %v948 = vpop.f32.mrb[0].mxu0
    %v949 = vadd.f32 0.0, %v948
    %v950 = vpop.f32.mrb[0].mxu0
    %951 = vmatprep.mubr.f32.mxu0 0.0
    %952 = vmatmul.mubr.f32.gmra.mrb[0].mxu0 %v874
    %v953 = vpop.f32.mrb[0].mxu0
    %v954 = vadd.f32 0.0, %v953
    %v955 = vpop.f32.mrb[0].mxu0
    %956 = vmatprep.mubr.f32.mxu0 0.0
    %957 = vmatmul.mubr.f32.gmra.mrb[0].mxu0 %v877
    %v958 = vpop.f32.mrb[0].mxu0
    %v959 = vadd.f32 0.0, %v958
    %v960 = vpop.f32.mrb[0].mxu0
    %961 = vmatprep.mubr.f32.mxu0 0.0
    %962 = vmatmul.mubr.f32.gmra.mrb[0].mxu0 %v880
    %v963 = vpop.f32.mrb[0].mxu0
    %v964 = vadd.f32 0.0, %v963
    %v965 = vpop.f32.mrb[0].mxu0
    %966 = vdwg.mxu0
    %v968 = vsel %vm399, %v853, 0
    %v971 = vsel %vm399, %v854, 0
    %v974 = vsel %vm399, %v855, 0
    %v977 = vsel %vm399, %v856, 0
    %979 = vmatprep.subr.mxu0 0.0
    %980 = vmatpush1.msra.mxu0 %v857
    %981 = vmatprep.subr.mxu0 0.0
    %982 = vmatpush1.msra.mxu0 %v858
    %983 = vmatprep.subr.mxu0 0.0
    %984 = vmatpush1.msra.mxu0 %v859
    %985 = vmatprep.subr.mxu0 0.0
    %986 = vmatpush1.msra.mxu0 %v860
    %987 = vmatprep.subr.mxu0 0.0
    %988 = vmatpush1.msra.mxu0 0.0
    %989 = vmatprep.subr.mxu0 0.0
    %990 = vmatpush1.msra.mxu0 0.0
    %991 = vmatprep.subr.mxu0 0.0
    %992 = vmatpush1.msra.mxu0 0.0
    %993 = vmatprep.subr.mxu0 0.0
    %994 = vmatpush1.msra.mxu0 0.0
    %995 = vmatprep.subr.mxu0 0.0
    %996 = vmatpush1.msra.mxu0 0.0
    %997 = vmatprep.subr.mxu0 0.0
    %998 = vmatpush1.msra.mxu0 0.0
    %999 = vmatprep.subr.mxu0 0.0
    %1000 = vmatpush1.msra.mxu0 0.0
    %1001 = vmatprep.subr.mxu0 0.0
    %1002 = vmatpush1.msra.mxu0 0.0
    %1003 = vmatprep.subr.mxu0 0.0
    %1004 = vmatpush1.msra.mxu0 0.0
    %1005 = vmatprep.subr.mxu0 0.0
    %1006 = vmatpush1.msra.mxu0 0.0
    %1007 = vmatprep.subr.mxu0 0.0
    %1008 = vmatpush1.msra.mxu0 0.0
    %1009 = vmatprep.subr.mxu0 0.0
    %1010 = vmatpush1.msra.mxu0 0.0
    %1011 = vmatprep.subr.mxu0 0.0
    %1012 = vmatpush1.msra.mxu0 0.0
    %1013 = vmatprep.subr.mxu0 0.0
    %1014 = vmatpush1.msra.mxu0 0.0
    %1015 = vmatprep.subr.mxu0 0.0
    %1016 = vmatpush1.msra.mxu0 0.0
    %1017 = vmatprep.subr.mxu0 0.0
    %1018 = vmatpush1.msra.mxu0 0.0
    %1019 = vmatprep.subr.mxu0 0.0
    %1020 = vmatpush1.msra.mxu0 0.0
    %1021 = vmatprep.subr.mxu0 0.0
    %1022 = vmatpush1.msra.mxu0 0.0
    %1023 = vmatprep.subr.mxu0 0.0
    %1024 = vmatpush1.msra.mxu0 0.0
    %1025 = vmatprep.subr.mxu0 0.0
    %1026 = vmatpush1.msra.mxu0 0.0
    %1027 = vmatprep.subr.mxu0 0.0
    %1028 = vmatpush1.msra.mxu0 0.0
    %1029 = vmatprep.subr.mxu0 0.0
    %1030 = vmatpush1.msra.mxu0 0.0
    %1031 = vmatprep.subr.mxu0 0.0
    %1032 = vmatpush1.msra.mxu0 0.0
    %1033 = vmatprep.subr.mxu0 0.0
    %1034 = vmatpush1.msra.mxu0 0.0
    %1035 = vmatprep.subr.mxu0 0.0
    %1036 = vmatpush1.msra.mxu0 0.0
    %1037 = vmatprep.subr.mxu0 0.0
    %1038 = vmatpush1.msra.mxu0 0.0
    %1039 = vmatprep.subr.mxu0 0.0
    %1040 = vmatpush1.msra.mxu0 0.0
    %1041 = vmatprep.subr.mxu0 0.0
    %1042 = vmatpush1.msra.mxu0 0.0
    %1043 = vmatprep.mubr.f32.mxu0 0.0
    %1044 = vmatmul.mubr.f32.gmra.mrb[0].mxu0 %v968
    %v1045 = vpop.f32.mrb[0].mxu0
    %v1046 = vadd.f32 %v949, %v1045
    %v1047 = vpop.f32.mrb[0].mxu0
    %1048 = vmatprep.mubr.f32.mxu0 0.0
    %1049 = vmatmul.mubr.f32.gmra.mrb[0].mxu0 %v971
    %v1050 = vpop.f32.mrb[0].mxu0
    %v1051 = vadd.f32 %v954, %v1050
    %v1052 = vpop.f32.mrb[0].mxu0
    %1053 = vmatprep.mubr.f32.mxu0 0.0
    %1054 = vmatmul.mubr.f32.gmra.mrb[0].mxu0 %v974
    %v1055 = vpop.f32.mrb[0].mxu0
    %v1056 = vadd.f32 %v959, %v1055
    %v1057 = vpop.f32.mrb[0].mxu0
    %1058 = vmatprep.mubr.f32.mxu0 0.0
    %1059 = vmatmul.mubr.f32.gmra.mrb[0].mxu0 %v977
    %v1060 = vpop.f32.mrb[0].mxu0
    %v1061 = vadd.f32 %v964, %v1060
    %v1062 = vpop.f32.mrb[0].mxu0
    %1063 = vdwg.mxu0
    %v1064 = vld [vmem:[#allocation3 + $0x2] sm:$0xff]
    %v1065 = vld [vmem:[#allocation3 + $0xa] sm:$0xff]
    %v1066 = vld [vmem:[#allocation3 + $0x1a] sm:$0xff]
    %v1067 = vld [vmem:[#allocation3 + $0x22] sm:$0xff]
    %s1068 = scalar_lea.vmem %s2, 64
    %v1069 = vld [vmem:[%s1068] sm:$0xff]
    %v1070 = vld [vmem:[%s1068 + $0x8] sm:$0xff]
    %v1071 = vld [vmem:[%s1068 + $0x10] sm:$0xff]
    %v1072 = vld [vmem:[%s1068 + $0x18] sm:$0xff]
    %v1074 = vsel %vm399, %v1064, 0
    %v1077 = vsel %vm399, %v1065, 0
    %v1080 = vsel %vm399, %v1066, 0
    %v1083 = vsel %vm399, %v1067, 0
    %1085 = vmatprep.subr.mxu0 0.0
    %1086 = vmatpush1.msra.mxu0 %v1069
    %1087 = vmatprep.subr.mxu0 0.0
    %1088 = vmatpush1.msra.mxu0 %v1070
    %1089 = vmatprep.subr.mxu0 0.0
    %1090 = vmatpush1.msra.mxu0 %v1071
    %1091 = vmatprep.subr.mxu0 0.0
    %1092 = vmatpush1.msra.mxu0 %v1072
    %1093 = vmatprep.subr.mxu0 0.0
    %1094 = vmatpush1.msra.mxu0 0.0
    %1095 = vmatprep.subr.mxu0 0.0
    %1096 = vmatpush1.msra.mxu0 0.0
    %1097 = vmatprep.subr.mxu0 0.0
    %1098 = vmatpush1.msra.mxu0 0.0
    %1099 = vmatprep.subr.mxu0 0.0
    %1100 = vmatpush1.msra.mxu0 0.0
    %1101 = vmatprep.subr.mxu0 0.0
    %1102 = vmatpush1.msra.mxu0 0.0
    %1103 = vmatprep.subr.mxu0 0.0
    %1104 = vmatpush1.msra.mxu0 0.0
    %1105 = vmatprep.subr.mxu0 0.0
    %1106 = vmatpush1.msra.mxu0 0.0
    %1107 = vmatprep.subr.mxu0 0.0
    %1108 = vmatpush1.msra.mxu0 0.0
    %1109 = vmatprep.subr.mxu0 0.0
    %1110 = vmatpush1.msra.mxu0 0.0
    %1111 = vmatprep.subr.mxu0 0.0
    %1112 = vmatpush1.msra.mxu0 0.0
    %1113 = vmatprep.subr.mxu0 0.0
    %1114 = vmatpush1.msra.mxu0 0.0
    %1115 = vmatprep.subr.mxu0 0.0
    %1116 = vmatpush1.msra.mxu0 0.0
    %1117 = vmatprep.subr.mxu0 0.0
    %1118 = vmatpush1.msra.mxu0 0.0
    %1119 = vmatprep.subr.mxu0 0.0
    %1120 = vmatpush1.msra.mxu0 0.0
    %1121 = vmatprep.subr.mxu0 0.0
    %1122 = vmatpush1.msra.mxu0 0.0
    %1123 = vmatprep.subr.mxu0 0.0
    %1124 = vmatpush1.msra.mxu0 0.0
    %1125 = vmatprep.subr.mxu0 0.0
    %1126 = vmatpush1.msra.mxu0 0.0
    %1127 = vmatprep.subr.mxu0 0.0
    %1128 = vmatpush1.msra.mxu0 0.0
    %1129 = vmatprep.subr.mxu0 0.0
    %1130 = vmatpush1.msra.mxu0 0.0
    %1131 = vmatprep.subr.mxu0 0.0
    %1132 = vmatpush1.msra.mxu0 0.0
    %1133 = vmatprep.subr.mxu0 0.0
    %1134 = vmatpush1.msra.mxu0 0.0
    %1135 = vmatprep.subr.mxu0 0.0
    %1136 = vmatpush1.msra.mxu0 0.0
    %1137 = vmatprep.subr.mxu0 0.0
    %1138 = vmatpush1.msra.mxu0 0.0
    %1139 = vmatprep.subr.mxu0 0.0
    %1140 = vmatpush1.msra.mxu0 0.0
    %1141 = vmatprep.subr.mxu0 0.0
    %1142 = vmatpush1.msra.mxu0 0.0
    %1143 = vmatprep.subr.mxu0 0.0
    %1144 = vmatpush1.msra.mxu0 0.0
    %1145 = vmatprep.subr.mxu0 0.0
    %1146 = vmatpush1.msra.mxu0 0.0
    %1147 = vmatprep.subr.mxu0 0.0
    %1148 = vmatpush1.msra.mxu0 0.0
    %1149 = vmatprep.mubr.f32.mxu0 0.0
    %1150 = vmatmul.mubr.f32.gmra.mrb[0].mxu0 %v1074
    %v1151 = vpop.f32.mrb[0].mxu0
    %v1152 = vadd.f32 0.0, %v1151
    %v1153 = vpop.f32.mrb[0].mxu0
    %1154 = vmatprep.mubr.f32.mxu0 0.0
    %1155 = vmatmul.mubr.f32.gmra.mrb[0].mxu0 %v1077
    %v1156 = vpop.f32.mrb[0].mxu0
    %v1157 = vadd.f32 0.0, %v1156
    %v1158 = vpop.f32.mrb[0].mxu0
    %1159 = vmatprep.mubr.f32.mxu0 0.0
    %1160 = vmatmul.mubr.f32.gmra.mrb[0].mxu0 %v1080
    %v1161 = vpop.f32.mrb[0].mxu0
    %v1162 = vadd.f32 0.0, %v1161
    %v1163 = vpop.f32.mrb[0].mxu0
    %1164 = vmatprep.mubr.f32.mxu0 0.0
    %1165 = vmatmul.mubr.f32.gmra.mrb[0].mxu0 %v1083
    %v1166 = vpop.f32.mrb[0].mxu0
    %v1167 = vadd.f32 0.0, %v1166
    %v1168 = vpop.f32.mrb[0].mxu0
    %1169 = vdwg.mxu0
    %v1170 = vadd.f32 %v1046, %v1152
    %v1171 = vadd.f32 %v1051, %v1157
    %v1172 = vadd.f32 %v1056, %v1162
    %v1173 = vadd.f32 %v1061, %v1167
    %v1174 = vxor.u32 %v1170, 2147483648
    %v1175 = vxor.u32 %v1171, 2147483648
    %v1176 = vxor.u32 %v1172, 2147483648
    %v1177 = vxor.u32 %v1173, 2147483648
    %v1178 = vmul.f32 %v1174, 1.442695
    %v1179 = vpow.pop %v1178
    %v1180 = vmul.f32 %v1175, 1.442695
    %v1181 = vpow.pop %v1180
    %v1182 = vmul.f32 %v1176, 1.442695
    %v1183 = vpow.pop %v1182
    %v1184 = vmul.f32 %v1177, 1.442695
    %v1185 = vpow.pop %v1184
    %v1186 = vadd.f32 %v1179, 1.0
    %v1187 = vadd.f32 %v1181, 1.0
    %v1188 = vadd.f32 %v1183, 1.0
    %v1189 = vadd.f32 %v1185, 1.0
    %v1190 = vrcp.pop %v1186
    %v1191 = vmul.f32 1.0, %v1190
    %v1192 = vrcp.pop %v1187
    %v1193 = vmul.f32 1.0, %v1192
    %v1194 = vrcp.pop %v1188
    %v1195 = vmul.f32 1.0, %v1194
    %v1196 = vrcp.pop %v1189
    %v1197 = vmul.f32 1.0, %v1196
    %v1198 = vld [vmem:[%s14] sm:$0x3]
    %v1200 = vsel %vm399, %v1198, 0
    %1202 = vmatprep.subr.mxu0 0.0
    %1203 = vmatpush1.msra.mxu0 %v64
    %1204 = vmatprep.subr.mxu0 0.0
    %1205 = vmatpush1.msra.mxu0 %v65
    %1206 = vmatprep.subr.mxu0 0.0
    %1207 = vmatpush1.msra.mxu0 %v66
    %1208 = vmatprep.subr.mxu0 0.0
    %1209 = vmatpush1.msra.mxu0 %v67
    %1210 = vmatprep.subr.mxu0 0.0
    %1211 = vmatpush1.msra.mxu0 0.0
    %1212 = vmatprep.subr.mxu0 0.0
    %1213 = vmatpush1.msra.mxu0 0.0
    %1214 = vmatprep.subr.mxu0 0.0
    %1215 = vmatpush1.msra.mxu0 0.0
    %1216 = vmatprep.subr.mxu0 0.0
    %1217 = vmatpush1.msra.mxu0 0.0
    %1218 = vmatprep.subr.mxu0 0.0
    %1219 = vmatpush1.msra.mxu0 0.0
    %1220 = vmatprep.subr.mxu0 0.0
    %1221 = vmatpush1.msra.mxu0 0.0
    %1222 = vmatprep.subr.mxu0 0.0
    %1223 = vmatpush1.msra.mxu0 0.0
    %1224 = vmatprep.subr.mxu0 0.0
    %1225 = vmatpush1.msra.mxu0 0.0
    %1226 = vmatprep.subr.mxu0 0.0
    %1227 = vmatpush1.msra.mxu0 0.0
    %1228 = vmatprep.subr.mxu0 0.0
    %1229 = vmatpush1.msra.mxu0 0.0
    %1230 = vmatprep.subr.mxu0 0.0
    %1231 = vmatpush1.msra.mxu0 0.0
    %1232 = vmatprep.subr.mxu0 0.0
    %1233 = vmatpush1.msra.mxu0 0.0
    %1234 = vmatprep.subr.mxu0 0.0
    %1235 = vmatpush1.msra.mxu0 0.0
    %1236 = vmatprep.subr.mxu0 0.0
    %1237 = vmatpush1.msra.mxu0 0.0
    %1238 = vmatprep.subr.mxu0 0.0
    %1239 = vmatpush1.msra.mxu0 0.0
    %1240 = vmatprep.subr.mxu0 0.0
    %1241 = vmatpush1.msra.mxu0 0.0
    %1242 = vmatprep.subr.mxu0 0.0
    %1243 = vmatpush1.msra.mxu0 0.0
    %1244 = vmatprep.subr.mxu0 0.0
    %1245 = vmatpush1.msra.mxu0 0.0
    %1246 = vmatprep.subr.mxu0 0.0
    %1247 = vmatpush1.msra.mxu0 0.0
    %1248 = vmatprep.subr.mxu0 0.0
    %1249 = vmatpush1.msra.mxu0 0.0
    %1250 = vmatprep.subr.mxu0 0.0
    %1251 = vmatpush1.msra.mxu0 0.0
    %1252 = vmatprep.subr.mxu0 0.0
    %1253 = vmatpush1.msra.mxu0 0.0
    %1254 = vmatprep.subr.mxu0 0.0
    %1255 = vmatpush1.msra.mxu0 0.0
    %1256 = vmatprep.subr.mxu0 0.0
    %1257 = vmatpush1.msra.mxu0 0.0
    %1258 = vmatprep.subr.mxu0 0.0
    %1259 = vmatpush1.msra.mxu0 0.0
    %1260 = vmatprep.subr.mxu0 0.0
    %1261 = vmatpush1.msra.mxu0 0.0
    %1262 = vmatprep.subr.mxu0 0.0
    %1263 = vmatpush1.msra.mxu0 0.0
    %1264 = vmatprep.subr.mxu0 0.0
    %1265 = vmatpush1.msra.mxu0 0.0
    %1266 = vmatprep.mubr.f32.mxu0 0.0
    %1267 = vmatmul.mubr.f32.gmra.mrb[0].mxu0 %v1200
    %v1268 = vpop.f32.mrb[0].mxu0
    %v1269 = vadd.f32 0.0, %v1268
    %v1270 = vpop.f32.mrb[0].mxu0
    %1271 = vdwg.mxu0
    %v1272 = vld [vmem:[%s8] sm:$0xff]
    %v1273 = vld [vmem:[%s8 + $0x8] sm:$0xff]
    %v1274 = vld [vmem:[%s8 + $0x10] sm:$0xff]
    %v1275 = vld [vmem:[%s8 + $0x18] sm:$0xff]
    %v1276 = vld [vmem:[%s8 + $0x20] sm:$0xff]
    %v1277 = vld [vmem:[%s8 + $0x28] sm:$0xff]
    %v1278 = vld [vmem:[%s8 + $0x30] sm:$0xff]
    %v1279 = vld [vmem:[%s8 + $0x38] sm:$0xff]
    %v1280 = vld [vmem:[%s8 + $0x40] sm:$0xff]
    %v1281 = vld [vmem:[%s8 + $0x48] sm:$0xff]
    %v1282 = vld [vmem:[%s8 + $0x50] sm:$0xff]
    %v1283 = vld [vmem:[%s8 + $0x58] sm:$0xff]
    %v1284 = vld [vmem:[%s8 + $0x60] sm:$0xff]
    %v1285 = vld [vmem:[%s8 + $0x68] sm:$0xff]
    %v1286 = vld [vmem:[%s8 + $0x70] sm:$0xff]
    %v1287 = vld [vmem:[%s8 + $0x78] sm:$0xff]
    %1288 = vmatprep.subr.mxu0 0.0
    %1289 = vmatpush1.msra.mxu0 %v1272
    %1290 = vmatprep.subr.mxu0 0.0
    %1291 = vmatpush1.msra.mxu0 %v1273
    %1292 = vmatprep.subr.mxu0 0.0
    %1293 = vmatpush1.msra.mxu0 %v1274
    %1294 = vmatprep.subr.mxu0 0.0
    %1295 = vmatpush1.msra.mxu0 %v1275
    %1296 = vmatprep.subr.mxu0 0.0
    %1297 = vmatpush1.msra.mxu0 %v1276
    %1298 = vmatprep.subr.mxu0 0.0
    %1299 = vmatpush1.msra.mxu0 %v1277
    %1300 = vmatprep.subr.mxu0 0.0
    %1301 = vmatpush1.msra.mxu0 %v1278
    %1302 = vmatprep.subr.mxu0 0.0
    %1303 = vmatpush1.msra.mxu0 %v1279
    %1304 = vmatprep.subr.mxu0 0.0
    %1305 = vmatpush1.msra.mxu0 %v1280
    %1306 = vmatprep.subr.mxu0 0.0
    %1307 = vmatpush1.msra.mxu0 %v1281
    %1308 = vmatprep.subr.mxu0 0.0
    %1309 = vmatpush1.msra.mxu0 %v1282
    %1310 = vmatprep.subr.mxu0 0.0
    %1311 = vmatpush1.msra.mxu0 %v1283
    %1312 = vmatprep.subr.mxu0 0.0
    %1313 = vmatpush1.msra.mxu0 %v1284
    %1314 = vmatprep.subr.mxu0 0.0
    %1315 = vmatpush1.msra.mxu0 %v1285
    %1316 = vmatprep.subr.mxu0 0.0
    %1317 = vmatpush1.msra.mxu0 %v1286
    %1318 = vmatprep.subr.mxu0 0.0
    %1319 = vmatpush1.msra.mxu0 %v1287
    %1320 = vmatprep.subr.mxu0 0.0
    %1321 = vmatpush1.msra.mxu0 0.0
    %1322 = vmatprep.subr.mxu0 0.0
    %1323 = vmatpush1.msra.mxu0 0.0
    %1324 = vmatprep.subr.mxu0 0.0
    %1325 = vmatpush1.msra.mxu0 0.0
    %1326 = vmatprep.subr.mxu0 0.0
    %1327 = vmatpush1.msra.mxu0 0.0
    %1328 = vmatprep.subr.mxu0 0.0
    %1329 = vmatpush1.msra.mxu0 0.0
    %1330 = vmatprep.subr.mxu0 0.0
    %1331 = vmatpush1.msra.mxu0 0.0
    %1332 = vmatprep.subr.mxu0 0.0
    %1333 = vmatpush1.msra.mxu0 0.0
    %1334 = vmatprep.subr.mxu0 0.0
    %1335 = vmatpush1.msra.mxu0 0.0
    %1336 = vmatprep.subr.mxu0 0.0
    %1337 = vmatpush1.msra.mxu0 0.0
    %1338 = vmatprep.subr.mxu0 0.0
    %1339 = vmatpush1.msra.mxu0 0.0
    %1340 = vmatprep.subr.mxu0 0.0
    %1341 = vmatpush1.msra.mxu0 0.0
    %1342 = vmatprep.subr.mxu0 0.0
    %1343 = vmatpush1.msra.mxu0 0.0
    %1344 = vmatprep.subr.mxu0 0.0
    %1345 = vmatpush1.msra.mxu0 0.0
    %1346 = vmatprep.subr.mxu0 0.0
    %1347 = vmatpush1.msra.mxu0 0.0
    %1348 = vmatprep.subr.mxu0 0.0
    %1349 = vmatpush1.msra.mxu0 0.0
    %1350 = vmatprep.subr.mxu0 0.0
    %1351 = vmatpush1.msra.mxu0 0.0
    %1352 = vmatprep.mubr.f32.mxu0 0.0
    %1353 = vmatmul.mubr.f32.gmra.mrb[0].mxu0 %v1269
    %v1354 = vpop.f32.mrb[0].mxu0
    %v1355 = vadd.f32 0.0, %v1354
    %v1356 = vpop.f32.mrb[0].mxu0
    %1357 = vdwg.mxu0
    %v1358 = vmul.f32 %v1355, 0.00390625
    %v1359 = vld [vmem:[%s6] sm:$0xff]
    %vm1360 = vcmask 64512
    %v1362 = vsel %vm1360, %v1358, 0
    %1364 = vmatprep.subr.mxu0 0.0
    %1365 = vmatpush1.msra.mxu0 %v1359
    %1366 = vmatprep.subr.mxu0 0.0
    %1367 = vmatpush1.msra.mxu0 0.0
    %1368 = vmatprep.subr.mxu0 0.0
    %1369 = vmatpush1.msra.mxu0 0.0
    %1370 = vmatprep.subr.mxu0 0.0
    %1371 = vmatpush1.msra.mxu0 0.0
    %1372 = vmatprep.subr.mxu0 0.0
    %1373 = vmatpush1.msra.mxu0 0.0
    %1374 = vmatprep.subr.mxu0 0.0
    %1375 = vmatpush1.msra.mxu0 0.0
    %1376 = vmatprep.subr.mxu0 0.0
    %1377 = vmatpush1.msra.mxu0 0.0
    %1378 = vmatprep.subr.mxu0 0.0
    %1379 = vmatpush1.msra.mxu0 0.0
    %1380 = vmatprep.subr.mxu0 0.0
    %1381 = vmatpush1.msra.mxu0 0.0
    %1382 = vmatprep.subr.mxu0 0.0
    %1383 = vmatpush1.msra.mxu0 0.0
    %1384 = vmatprep.subr.mxu0 0.0
    %1385 = vmatpush1.msra.mxu0 0.0
    %1386 = vmatprep.subr.mxu0 0.0
    %1387 = vmatpush1.msra.mxu0 0.0
    %1388 = vmatprep.subr.mxu0 0.0
    %1389 = vmatpush1.msra.mxu0 0.0
    %1390 = vmatprep.subr.mxu0 0.0
    %1391 = vmatpush1.msra.mxu0 0.0
    %1392 = vmatprep.subr.mxu0 0.0
    %1393 = vmatpush1.msra.mxu0 0.0
    %1394 = vmatprep.subr.mxu0 0.0
    %1395 = vmatpush1.msra.mxu0 0.0
    %1396 = vmatprep.subr.mxu0 0.0
    %1397 = vmatpush1.msra.mxu0 0.0
    %1398 = vmatprep.subr.mxu0 0.0
    %1399 = vmatpush1.msra.mxu0 0.0
    %1400 = vmatprep.subr.mxu0 0.0
    %1401 = vmatpush1.msra.mxu0 0.0
    %1402 = vmatprep.subr.mxu0 0.0
    %1403 = vmatpush1.msra.mxu0 0.0
    %1404 = vmatprep.subr.mxu0 0.0
    %1405 = vmatpush1.msra.mxu0 0.0
    %1406 = vmatprep.subr.mxu0 0.0
    %1407 = vmatpush1.msra.mxu0 0.0
    %1408 = vmatprep.subr.mxu0 0.0
    %1409 = vmatpush1.msra.mxu0 0.0
    %1410 = vmatprep.subr.mxu0 0.0
    %1411 = vmatpush1.msra.mxu0 0.0
    %1412 = vmatprep.subr.mxu0 0.0
    %1413 = vmatpush1.msra.mxu0 0.0
    %1414 = vmatprep.subr.mxu0 0.0
    %1415 = vmatpush1.msra.mxu0 0.0
    %1416 = vmatprep.subr.mxu0 0.0
    %1417 = vmatpush1.msra.mxu0 0.0
    %1418 = vmatprep.subr.mxu0 0.0
    %1419 = vmatpush1.msra.mxu0 0.0
    %1420 = vmatprep.subr.mxu0 0.0
    %1421 = vmatpush1.msra.mxu0 0.0
    %1422 = vmatprep.subr.mxu0 0.0
    %1423 = vmatpush1.msra.mxu0 0.0
    %1424 = vmatprep.subr.mxu0 0.0
    %1425 = vmatpush1.msra.mxu0 0.0
    %1426 = vmatprep.subr.mxu0 0.0
    %1427 = vmatpush1.msra.mxu0 0.0
    %1428 = vmatprep.mubr.f32.mxu0 0.0
    %1429 = vmatmul.mubr.f32.gmra.mrb[0].mxu0 %v1362
    %v1430 = vpop.f32.mrb[0].mxu0
    %v1431 = vadd.f32 0.0, %v1430
    %v1432 = vpop.f32.mrb[0].mxu0
    %1433 = vdwg.mxu0
    %v1434 = vmax.f32 %v1431, 0.0
    %v1435 = vld [vmem:[%s7] sm:$0x3]
    %v1437 = vsel %vm492, %v1434, 0
    %v1440 = vsel %vm496, %v1435, 0
    %1442 = vmatprep.subr.mxu0 0.0
    %1443 = vmatpush1.msra.mxu0 %v1440
    %1444 = vmatprep.subr.mxu0 0.0
    %1445 = vmatpush1.msra.mxu0 0.0
    %1446 = vmatprep.subr.mxu0 0.0
    %1447 = vmatpush1.msra.mxu0 0.0
    %1448 = vmatprep.subr.mxu0 0.0
    %1449 = vmatpush1.msra.mxu0 0.0
    %1450 = vmatprep.subr.mxu0 0.0
    %1451 = vmatpush1.msra.mxu0 0.0
    %1452 = vmatprep.subr.mxu0 0.0
    %1453 = vmatpush1.msra.mxu0 0.0
    %1454 = vmatprep.subr.mxu0 0.0
    %1455 = vmatpush1.msra.mxu0 0.0
    %1456 = vmatprep.subr.mxu0 0.0
    %1457 = vmatpush1.msra.mxu0 0.0
    %1458 = vmatprep.subr.mxu0 0.0
    %1459 = vmatpush1.msra.mxu0 0.0
    %1460 = vmatprep.subr.mxu0 0.0
    %1461 = vmatpush1.msra.mxu0 0.0
    %1462 = vmatprep.subr.mxu0 0.0
    %1463 = vmatpush1.msra.mxu0 0.0
    %1464 = vmatprep.subr.mxu0 0.0
    %1465 = vmatpush1.msra.mxu0 0.0
    %1466 = vmatprep.subr.mxu0 0.0
    %1467 = vmatpush1.msra.mxu0 0.0
    %1468 = vmatprep.subr.mxu0 0.0
    %1469 = vmatpush1.msra.mxu0 0.0
    %1470 = vmatprep.subr.mxu0 0.0
    %1471 = vmatpush1.msra.mxu0 0.0
    %1472 = vmatprep.subr.mxu0 0.0
    %1473 = vmatpush1.msra.mxu0 0.0
    %1474 = vmatprep.subr.mxu0 0.0
    %1475 = vmatpush1.msra.mxu0 0.0
    %1476 = vmatprep.subr.mxu0 0.0
    %1477 = vmatpush1.msra.mxu0 0.0
    %1478 = vmatprep.subr.mxu0 0.0
    %1479 = vmatpush1.msra.mxu0 0.0
    %1480 = vmatprep.subr.mxu0 0.0
    %1481 = vmatpush1.msra.mxu0 0.0
    %1482 = vmatprep.subr.mxu0 0.0
    %1483 = vmatpush1.msra.mxu0 0.0
    %1484 = vmatprep.subr.mxu0 0.0
    %1485 = vmatpush1.msra.mxu0 0.0
    %1486 = vmatprep.subr.mxu0 0.0
    %1487 = vmatpush1.msra.mxu0 0.0
    %1488 = vmatprep.subr.mxu0 0.0
    %1489 = vmatpush1.msra.mxu0 0.0
    %1490 = vmatprep.subr.mxu0 0.0
    %1491 = vmatpush1.msra.mxu0 0.0
    %1492 = vmatprep.subr.mxu0 0.0
    %1493 = vmatpush1.msra.mxu0 0.0
    %1494 = vmatprep.subr.mxu0 0.0
    %1495 = vmatpush1.msra.mxu0 0.0
    %1496 = vmatprep.subr.mxu0 0.0
    %1497 = vmatpush1.msra.mxu0 0.0
    %1498 = vmatprep.subr.mxu0 0.0
    %1499 = vmatpush1.msra.mxu0 0.0
    %1500 = vmatprep.subr.mxu0 0.0
    %1501 = vmatpush1.msra.mxu0 0.0
    %1502 = vmatprep.subr.mxu0 0.0
    %1503 = vmatpush1.msra.mxu0 0.0
    %1504 = vmatprep.subr.mxu0 0.0
    %1505 = vmatpush1.msra.mxu0 0.0
    %1506 = vmatprep.mubr.f32.mxu0 0.0
    %1507 = vmatmul.mubr.f32.gmra.mrb[0].mxu0 %v1437
    %v1508 = vpop.f32.mrb[0].mxu0
    %v1509 = vadd.f32 0.0, %v1508
    %v1510 = vpop.f32.mrb[0].mxu0
    %1511 = vdwg.mxu0
    %v1512 = vxor.u32 %v1509, 2147483648
    %v1513 = vmul.f32 %v1512, 1.442695
    %v1514 = vpow.pop %v1513
    %v1515 = vadd.f32 %v1514, 1.0
    %v1516 = vrcp.pop %v1515
    %v1517 = vmul.f32 1.0, %v1516
    %v1518 = vld [vmem:[%s15] sm:$0xff]
    %v1519 = vld [vmem:[%s15 + $0x8] sm:$0xff]
    %v1520 = vld [vmem:[%s15 + $0x10] sm:$0xff]
    %v1521 = vld [vmem:[%s15 + $0x18] sm:$0xff]
    %v1522 = vld [vmem:[%s9] sm:$0xff]
    %v1524 = vsel %vm1360, %v1517, 0
    %1526 = vmatprep.subr.mxu0 0.0
    %1527 = vmatpush1.msra.mxu0 %v1522
    %1528 = vmatprep.subr.mxu0 0.0
    %1529 = vmatpush1.msra.mxu0 0.0
    %1530 = vmatprep.subr.mxu0 0.0
    %1531 = vmatpush1.msra.mxu0 0.0
    %1532 = vmatprep.subr.mxu0 0.0
    %1533 = vmatpush1.msra.mxu0 0.0
    %1534 = vmatprep.subr.mxu0 0.0
    %1535 = vmatpush1.msra.mxu0 0.0
    %1536 = vmatprep.subr.mxu0 0.0
    %1537 = vmatpush1.msra.mxu0 0.0
    %1538 = vmatprep.subr.mxu0 0.0
    %1539 = vmatpush1.msra.mxu0 0.0
    %1540 = vmatprep.subr.mxu0 0.0
    %1541 = vmatpush1.msra.mxu0 0.0
    %1542 = vmatprep.subr.mxu0 0.0
    %1543 = vmatpush1.msra.mxu0 0.0
    %1544 = vmatprep.subr.mxu0 0.0
    %1545 = vmatpush1.msra.mxu0 0.0
    %1546 = vmatprep.subr.mxu0 0.0
    %1547 = vmatpush1.msra.mxu0 0.0
    %1548 = vmatprep.subr.mxu0 0.0
    %1549 = vmatpush1.msra.mxu0 0.0
    %1550 = vmatprep.subr.mxu0 0.0
    %1551 = vmatpush1.msra.mxu0 0.0
    %1552 = vmatprep.subr.mxu0 0.0
    %1553 = vmatpush1.msra.mxu0 0.0
    %1554 = vmatprep.subr.mxu0 0.0
    %1555 = vmatpush1.msra.mxu0 0.0
    %1556 = vmatprep.subr.mxu0 0.0
    %1557 = vmatpush1.msra.mxu0 0.0
    %1558 = vmatprep.subr.mxu0 0.0
    %1559 = vmatpush1.msra.mxu0 0.0
    %1560 = vmatprep.subr.mxu0 0.0
    %1561 = vmatpush1.msra.mxu0 0.0
    %1562 = vmatprep.subr.mxu0 0.0
    %1563 = vmatpush1.msra.mxu0 0.0
    %1564 = vmatprep.subr.mxu0 0.0
    %1565 = vmatpush1.msra.mxu0 0.0
    %1566 = vmatprep.subr.mxu0 0.0
    %1567 = vmatpush1.msra.mxu0 0.0
    %1568 = vmatprep.subr.mxu0 0.0
    %1569 = vmatpush1.msra.mxu0 0.0
    %1570 = vmatprep.subr.mxu0 0.0
    %1571 = vmatpush1.msra.mxu0 0.0
    %1572 = vmatprep.subr.mxu0 0.0
    %1573 = vmatpush1.msra.mxu0 0.0
    %1574 = vmatprep.subr.mxu0 0.0
    %1575 = vmatpush1.msra.mxu0 0.0
    %1576 = vmatprep.subr.mxu0 0.0
    %1577 = vmatpush1.msra.mxu0 0.0
    %1578 = vmatprep.subr.mxu0 0.0
    %1579 = vmatpush1.msra.mxu0 0.0
    %1580 = vmatprep.subr.mxu0 0.0
    %1581 = vmatpush1.msra.mxu0 0.0
    %1582 = vmatprep.subr.mxu0 0.0
    %1583 = vmatpush1.msra.mxu0 0.0
    %1584 = vmatprep.subr.mxu0 0.0
    %1585 = vmatpush1.msra.mxu0 0.0
    %1586 = vmatprep.subr.mxu0 0.0
    %1587 = vmatpush1.msra.mxu0 0.0
    %1588 = vmatprep.subr.mxu0 0.0
    %1589 = vmatpush1.msra.mxu0 0.0
    %1590 = vmatprep.mubr.f32.mxu0 0.0
    %1591 = vmatmul.mubr.f32.gmra.mrb[0].mxu0 %v1524
    %v1592 = vpop.f32.mrb[0].mxu0
    %v1593 = vadd.f32 0.0, %v1592
    %v1594 = vpop.f32.mrb[0].mxu0
    %1595 = vdwg.mxu0
    %v1597 = vsel %vm492, %v1518, 0
    %v1600 = vsel %vm492, %v1519, 0
    %v1603 = vsel %vm492, %v1520, 0
    %v1606 = vsel %vm492, %v1521, 0
    %v1609 = vsel %vm496, %v1593, 0
    %1611 = vmatprep.subr.mxu0 0.0
    %1612 = vmatpush1.msra.mxu0 %v1609
    %1613 = vmatprep.subr.mxu0 0.0
    %1614 = vmatpush1.msra.mxu0 0.0
    %1615 = vmatprep.subr.mxu0 0.0
    %1616 = vmatpush1.msra.mxu0 0.0
    %1617 = vmatprep.subr.mxu0 0.0
    %1618 = vmatpush1.msra.mxu0 0.0
    %1619 = vmatprep.subr.mxu0 0.0
    %1620 = vmatpush1.msra.mxu0 0.0
    %1621 = vmatprep.subr.mxu0 0.0
    %1622 = vmatpush1.msra.mxu0 0.0
    %1623 = vmatprep.subr.mxu0 0.0
    %1624 = vmatpush1.msra.mxu0 0.0
    %1625 = vmatprep.subr.mxu0 0.0
    %1626 = vmatpush1.msra.mxu0 0.0
    %1627 = vmatprep.subr.mxu0 0.0
    %1628 = vmatpush1.msra.mxu0 0.0
    %1629 = vmatprep.subr.mxu0 0.0
    %1630 = vmatpush1.msra.mxu0 0.0
    %1631 = vmatprep.subr.mxu0 0.0
    %1632 = vmatpush1.msra.mxu0 0.0
    %1633 = vmatprep.subr.mxu0 0.0
    %1634 = vmatpush1.msra.mxu0 0.0
    %1635 = vmatprep.subr.mxu0 0.0
    %1636 = vmatpush1.msra.mxu0 0.0
    %1637 = vmatprep.subr.mxu0 0.0
    %1638 = vmatpush1.msra.mxu0 0.0
    %1639 = vmatprep.subr.mxu0 0.0
    %1640 = vmatpush1.msra.mxu0 0.0
    %1641 = vmatprep.subr.mxu0 0.0
    %1642 = vmatpush1.msra.mxu0 0.0
    %1643 = vmatprep.subr.mxu0 0.0
    %1644 = vmatpush1.msra.mxu0 0.0
    %1645 = vmatprep.subr.mxu0 0.0
    %1646 = vmatpush1.msra.mxu0 0.0
    %1647 = vmatprep.subr.mxu0 0.0
    %1648 = vmatpush1.msra.mxu0 0.0
    %1649 = vmatprep.subr.mxu0 0.0
    %1650 = vmatpush1.msra.mxu0 0.0
    %1651 = vmatprep.subr.mxu0 0.0
    %1652 = vmatpush1.msra.mxu0 0.0
    %1653 = vmatprep.subr.mxu0 0.0
    %1654 = vmatpush1.msra.mxu0 0.0
    %1655 = vmatprep.subr.mxu0 0.0
    %1656 = vmatpush1.msra.mxu0 0.0
    %1657 = vmatprep.subr.mxu0 0.0
    %1658 = vmatpush1.msra.mxu0 0.0
    %1659 = vmatprep.subr.mxu0 0.0
    %1660 = vmatpush1.msra.mxu0 0.0
    %1661 = vmatprep.subr.mxu0 0.0
    %1662 = vmatpush1.msra.mxu0 0.0
    %1663 = vmatprep.subr.mxu0 0.0
    %1664 = vmatpush1.msra.mxu0 0.0
    %1665 = vmatprep.subr.mxu0 0.0
    %1666 = vmatpush1.msra.mxu0 0.0
    %1667 = vmatprep.subr.mxu0 0.0
    %1668 = vmatpush1.msra.mxu0 0.0
    %1669 = vmatprep.subr.mxu0 0.0
    %1670 = vmatpush1.msra.mxu0 0.0
    %1671 = vmatprep.subr.mxu0 0.0
    %1672 = vmatpush1.msra.mxu0 0.0
    %1673 = vmatprep.subr.mxu0 0.0
    %1674 = vmatpush1.msra.mxu0 0.0
    %1675 = vmatprep.mubr.f32.mxu0 0.0
    %1676 = vmatmul.mubr.f32.gmra.mrb[0].mxu0 %v1597
    %v1677 = vpop.f32.mrb[0].mxu0
    %v1678 = vadd.f32 0.0, %v1677
    %v1679 = vpop.f32.mrb[0].mxu0
    %1680 = vmatprep.mubr.f32.mxu0 0.0
    %1681 = vmatmul.mubr.f32.gmra.mrb[0].mxu0 %v1600
    %v1682 = vpop.f32.mrb[0].mxu0
    %v1683 = vadd.f32 0.0, %v1682
    %v1684 = vpop.f32.mrb[0].mxu0
    %1685 = vmatprep.mubr.f32.mxu0 0.0
    %1686 = vmatmul.mubr.f32.gmra.mrb[0].mxu0 %v1603
    %v1687 = vpop.f32.mrb[0].mxu0
    %v1688 = vadd.f32 0.0, %v1687
    %v1689 = vpop.f32.mrb[0].mxu0
    %1690 = vmatprep.mubr.f32.mxu0 0.0
    %1691 = vmatmul.mubr.f32.gmra.mrb[0].mxu0 %v1606
    %v1692 = vpop.f32.mrb[0].mxu0
    %v1693 = vadd.f32 0.0, %v1692
    %v1694 = vpop.f32.mrb[0].mxu0
    %1695 = vdwg.mxu0
    %v1696 = vmul.f32 %v64, %v1678
    %v1697 = vmul.f32 %v65, %v1683
    %v1698 = vmul.f32 %v66, %v1688
    %v1699 = vmul.f32 %v67, %v1693
    %v1700 = vld [vmem:[%s13] sm:$0xff]
    %v1701 = vld [vmem:[%s13 + $0x8] sm:$0xff]
    %v1702 = vld [vmem:[%s13 + $0x10] sm:$0xff]
    %v1703 = vld [vmem:[%s13 + $0x18] sm:$0xff]
    %v1704 = vld [vmem:[%s13 + $0x20] sm:$0xff]
    %v1705 = vld [vmem:[%s13 + $0x28] sm:$0xff]
    %v1706 = vld [vmem:[%s13 + $0x30] sm:$0xff]
    %v1707 = vld [vmem:[%s13 + $0x38] sm:$0xff]
    %v1708 = vld [vmem:[%s13 + $0x40] sm:$0xff]
    %v1709 = vld [vmem:[%s13 + $0x48] sm:$0xff]
    %v1710 = vld [vmem:[%s13 + $0x50] sm:$0xff]
    %v1711 = vld [vmem:[%s13 + $0x58] sm:$0xff]
    %v1712 = vld [vmem:[%s13 + $0x60] sm:$0xff]
    %v1713 = vld [vmem:[%s13 + $0x68] sm:$0xff]
    %v1714 = vld [vmem:[%s13 + $0x70] sm:$0xff]
    %v1715 = vld [vmem:[%s13 + $0x78] sm:$0xff]
    %1716 = vmatprep.subr.mxu0 0.0
    %1717 = vmatpush1.msra.mxu0 %v1700
    %1718 = vmatprep.subr.mxu0 0.0
    %1719 = vmatpush1.msra.mxu0 %v1701
    %1720 = vmatprep.subr.mxu0 0.0
    %1721 = vmatpush1.msra.mxu0 %v1702
    %1722 = vmatprep.subr.mxu0 0.0
    %1723 = vmatpush1.msra.mxu0 %v1703
    %1724 = vmatprep.subr.mxu0 0.0
    %1725 = vmatpush1.msra.mxu0 %v1704
    %1726 = vmatprep.subr.mxu0 0.0
    %1727 = vmatpush1.msra.mxu0 %v1705
    %1728 = vmatprep.subr.mxu0 0.0
    %1729 = vmatpush1.msra.mxu0 %v1706
    %1730 = vmatprep.subr.mxu0 0.0
    %1731 = vmatpush1.msra.mxu0 %v1707
    %1732 = vmatprep.subr.mxu0 0.0
    %1733 = vmatpush1.msra.mxu0 %v1708
    %1734 = vmatprep.subr.mxu0 0.0
    %1735 = vmatpush1.msra.mxu0 %v1709
    %1736 = vmatprep.subr.mxu0 0.0
    %1737 = vmatpush1.msra.mxu0 %v1710
    %1738 = vmatprep.subr.mxu0 0.0
    %1739 = vmatpush1.msra.mxu0 %v1711
    %1740 = vmatprep.subr.mxu0 0.0
    %1741 = vmatpush1.msra.mxu0 %v1712
    %1742 = vmatprep.subr.mxu0 0.0
    %1743 = vmatpush1.msra.mxu0 %v1713
    %1744 = vmatprep.subr.mxu0 0.0
    %1745 = vmatpush1.msra.mxu0 %v1714
    %1746 = vmatprep.subr.mxu0 0.0
    %1747 = vmatpush1.msra.mxu0 %v1715
    %1748 = vmatprep.subr.mxu0 0.0
    %1749 = vmatpush1.msra.mxu0 0.0
    %1750 = vmatprep.subr.mxu0 0.0
    %1751 = vmatpush1.msra.mxu0 0.0
    %1752 = vmatprep.subr.mxu0 0.0
    %1753 = vmatpush1.msra.mxu0 0.0
    %1754 = vmatprep.subr.mxu0 0.0
    %1755 = vmatpush1.msra.mxu0 0.0
    %1756 = vmatprep.subr.mxu0 0.0
    %1757 = vmatpush1.msra.mxu0 0.0
    %1758 = vmatprep.subr.mxu0 0.0
    %1759 = vmatpush1.msra.mxu0 0.0
    %1760 = vmatprep.subr.mxu0 0.0
    %1761 = vmatpush1.msra.mxu0 0.0
    %1762 = vmatprep.subr.mxu0 0.0
    %1763 = vmatpush1.msra.mxu0 0.0
    %1764 = vmatprep.subr.mxu0 0.0
    %1765 = vmatpush1.msra.mxu0 0.0
    %1766 = vmatprep.subr.mxu0 0.0
    %1767 = vmatpush1.msra.mxu0 0.0
    %1768 = vmatprep.subr.mxu0 0.0
    %1769 = vmatpush1.msra.mxu0 0.0
    %1770 = vmatprep.subr.mxu0 0.0
    %1771 = vmatpush1.msra.mxu0 0.0
    %1772 = vmatprep.subr.mxu0 0.0
    %1773 = vmatpush1.msra.mxu0 0.0
    %1774 = vmatprep.subr.mxu0 0.0
    %1775 = vmatpush1.msra.mxu0 0.0
    %1776 = vmatprep.subr.mxu0 0.0
    %1777 = vmatpush1.msra.mxu0 0.0
    %1778 = vmatprep.subr.mxu0 0.0
    %1779 = vmatpush1.msra.mxu0 0.0
    %1780 = vmatprep.mubr.f32.mxu0 0.0
    %1781 = vmatmul.mubr.f32.gmra.mrb[0].mxu0 %v1696
    %v1782 = vpop.f32.mrb[0].mxu0
    %v1783 = vadd.f32 0.0, %v1782
    %v1784 = vpop.f32.mrb[0].mxu0
    %1785 = vmatprep.mubr.f32.mxu0 0.0
    %1786 = vmatmul.mubr.f32.gmra.mrb[0].mxu0 %v1697
    %v1787 = vpop.f32.mrb[0].mxu0
    %v1788 = vadd.f32 0.0, %v1787
    %v1789 = vpop.f32.mrb[0].mxu0
    %1790 = vmatprep.mubr.f32.mxu0 0.0
    %1791 = vmatmul.mubr.f32.gmra.mrb[0].mxu0 %v1698
    %v1792 = vpop.f32.mrb[0].mxu0
    %v1793 = vadd.f32 0.0, %v1792
    %v1794 = vpop.f32.mrb[0].mxu0
    %1795 = vmatprep.mubr.f32.mxu0 0.0
    %1796 = vmatmul.mubr.f32.gmra.mrb[0].mxu0 %v1699
    %v1797 = vpop.f32.mrb[0].mxu0
    %v1798 = vadd.f32 0.0, %v1797
    %v1799 = vpop.f32.mrb[0].mxu0
    %1800 = vdwg.mxu0
    %s1801 = scalar_lea.vmem %s13, 128
    %v1802 = vld [vmem:[%s1801] sm:$0xff]
    %v1803 = vld [vmem:[%s1801 + $0x8] sm:$0xff]
    %v1804 = vld [vmem:[%s1801 + $0x10] sm:$0xff]
    %v1805 = vld [vmem:[%s1801 + $0x18] sm:$0xff]
    %v1806 = vld [vmem:[%s1801 + $0x20] sm:$0xff]
    %v1807 = vld [vmem:[%s1801 + $0x28] sm:$0xff]
    %v1808 = vld [vmem:[%s1801 + $0x30] sm:$0xff]
    %v1809 = vld [vmem:[%s1801 + $0x38] sm:$0xff]
    %v1810 = vld [vmem:[%s1801 + $0x40] sm:$0xff]
    %v1811 = vld [vmem:[%s1801 + $0x48] sm:$0xff]
    %v1812 = vld [vmem:[%s1801 + $0x50] sm:$0xff]
    %v1813 = vld [vmem:[%s1801 + $0x58] sm:$0xff]
    %v1814 = vld [vmem:[%s1801 + $0x60] sm:$0xff]
    %v1815 = vld [vmem:[%s1801 + $0x68] sm:$0xff]
    %v1816 = vld [vmem:[%s1801 + $0x70] sm:$0xff]
    %v1817 = vld [vmem:[%s1801 + $0x78] sm:$0xff]
    %1818 = vmatprep.subr.mxu0 0.0
    %1819 = vmatpush1.msra.mxu0 %v1802
    %1820 = vmatprep.subr.mxu0 0.0
    %1821 = vmatpush1.msra.mxu0 %v1803
    %1822 = vmatprep.subr.mxu0 0.0
    %1823 = vmatpush1.msra.mxu0 %v1804
    %1824 = vmatprep.subr.mxu0 0.0
    %1825 = vmatpush1.msra.mxu0 %v1805
    %1826 = vmatprep.subr.mxu0 0.0
    %1827 = vmatpush1.msra.mxu0 %v1806
    %1828 = vmatprep.subr.mxu0 0.0
    %1829 = vmatpush1.msra.mxu0 %v1807
    %1830 = vmatprep.subr.mxu0 0.0
    %1831 = vmatpush1.msra.mxu0 %v1808
    %1832 = vmatprep.subr.mxu0 0.0
    %1833 = vmatpush1.msra.mxu0 %v1809
    %1834 = vmatprep.subr.mxu0 0.0
    %1835 = vmatpush1.msra.mxu0 %v1810
    %1836 = vmatprep.subr.mxu0 0.0
    %1837 = vmatpush1.msra.mxu0 %v1811
    %1838 = vmatprep.subr.mxu0 0.0
    %1839 = vmatpush1.msra.mxu0 %v1812
    %1840 = vmatprep.subr.mxu0 0.0
    %1841 = vmatpush1.msra.mxu0 %v1813
    %1842 = vmatprep.subr.mxu0 0.0
    %1843 = vmatpush1.msra.mxu0 %v1814
    %1844 = vmatprep.subr.mxu0 0.0
    %1845 = vmatpush1.msra.mxu0 %v1815
    %1846 = vmatprep.subr.mxu0 0.0
    %1847 = vmatpush1.msra.mxu0 %v1816
    %1848 = vmatprep.subr.mxu0 0.0
    %1849 = vmatpush1.msra.mxu0 %v1817
    %1850 = vmatprep.subr.mxu0 0.0
    %1851 = vmatpush1.msra.mxu0 0.0
    %1852 = vmatprep.subr.mxu0 0.0
    %1853 = vmatpush1.msra.mxu0 0.0
    %1854 = vmatprep.subr.mxu0 0.0
    %1855 = vmatpush1.msra.mxu0 0.0
    %1856 = vmatprep.subr.mxu0 0.0
    %1857 = vmatpush1.msra.mxu0 0.0
    %1858 = vmatprep.subr.mxu0 0.0
    %1859 = vmatpush1.msra.mxu0 0.0
    %1860 = vmatprep.subr.mxu0 0.0
    %1861 = vmatpush1.msra.mxu0 0.0
    %1862 = vmatprep.subr.mxu0 0.0
    %1863 = vmatpush1.msra.mxu0 0.0
    %1864 = vmatprep.subr.mxu0 0.0
    %1865 = vmatpush1.msra.mxu0 0.0
    %1866 = vmatprep.subr.mxu0 0.0
    %1867 = vmatpush1.msra.mxu0 0.0
    %1868 = vmatprep.subr.mxu0 0.0
    %1869 = vmatpush1.msra.mxu0 0.0
    %1870 = vmatprep.subr.mxu0 0.0
    %1871 = vmatpush1.msra.mxu0 0.0
    %1872 = vmatprep.subr.mxu0 0.0
    %1873 = vmatpush1.msra.mxu0 0.0
    %1874 = vmatprep.subr.mxu0 0.0
    %1875 = vmatpush1.msra.mxu0 0.0
    %1876 = vmatprep.subr.mxu0 0.0
    %1877 = vmatpush1.msra.mxu0 0.0
    %1878 = vmatprep.subr.mxu0 0.0
    %1879 = vmatpush1.msra.mxu0 0.0
    %1880 = vmatprep.subr.mxu0 0.0
    %1881 = vmatpush1.msra.mxu0 0.0
    %1882 = vmatprep.mubr.f32.mxu0 0.0
    %1883 = vmatmul.mubr.f32.gmra.mrb[0].mxu0 %v1696
    %v1884 = vpop.f32.mrb[0].mxu0
    %v1885 = vadd.f32 0.0, %v1884
    %v1886 = vpop.f32.mrb[0].mxu0
    %1887 = vmatprep.mubr.f32.mxu0 0.0
    %1888 = vmatmul.mubr.f32.gmra.mrb[0].mxu0 %v1697
    %v1889 = vpop.f32.mrb[0].mxu0
    %v1890 = vadd.f32 0.0, %v1889
    %v1891 = vpop.f32.mrb[0].mxu0
    %1892 = vmatprep.mubr.f32.mxu0 0.0
    %1893 = vmatmul.mubr.f32.gmra.mrb[0].mxu0 %v1698
    %v1894 = vpop.f32.mrb[0].mxu0
    %v1895 = vadd.f32 0.0, %v1894
    %v1896 = vpop.f32.mrb[0].mxu0
    %1897 = vmatprep.mubr.f32.mxu0 0.0
    %1898 = vmatmul.mubr.f32.gmra.mrb[0].mxu0 %v1699
    %v1899 = vpop.f32.mrb[0].mxu0
    %v1900 = vadd.f32 0.0, %v1899
    %v1901 = vpop.f32.mrb[0].mxu0
    %1902 = vdwg.mxu0
    %v1903 = vadd.f32 %v1783, %v1885
    %v1904 = vadd.f32 %v1788, %v1890
    %v1905 = vadd.f32 %v1793, %v1895
    %v1906 = vadd.f32 %v1798, %v1900
    %v1907 = vmax.f32 %v1783, %v1885
    %v1908 = vmax.f32 %v1788, %v1890
    %v1909 = vmax.f32 %v1793, %v1895
    %v1910 = vmax.f32 %v1798, %v1900
    %s1911 = scalar_lea.vmem %s13, 256
    %v1912 = vld [vmem:[%s1911] sm:$0xff]
    %v1913 = vld [vmem:[%s1911 + $0x8] sm:$0xff]
    %v1914 = vld [vmem:[%s1911 + $0x10] sm:$0xff]
    %v1915 = vld [vmem:[%s1911 + $0x18] sm:$0xff]
    %v1916 = vld [vmem:[%s1911 + $0x20] sm:$0xff]
    %v1917 = vld [vmem:[%s1911 + $0x28] sm:$0xff]
    %v1918 = vld [vmem:[%s1911 + $0x30] sm:$0xff]
    %v1919 = vld [vmem:[%s1911 + $0x38] sm:$0xff]
    %v1920 = vld [vmem:[%s1911 + $0x40] sm:$0xff]
    %v1921 = vld [vmem:[%s1911 + $0x48] sm:$0xff]
    %v1922 = vld [vmem:[%s1911 + $0x50] sm:$0xff]
    %v1923 = vld [vmem:[%s1911 + $0x58] sm:$0xff]
    %v1924 = vld [vmem:[%s1911 + $0x60] sm:$0xff]
    %v1925 = vld [vmem:[%s1911 + $0x68] sm:$0xff]
    %v1926 = vld [vmem:[%s1911 + $0x70] sm:$0xff]
    %v1927 = vld [vmem:[%s1911 + $0x78] sm:$0xff]
    %1928 = vmatprep.subr.mxu0 0.0
    %1929 = vmatpush1.msra.mxu0 %v1912
    %1930 = vmatprep.subr.mxu0 0.0
    %1931 = vmatpush1.msra.mxu0 %v1913
    %1932 = vmatprep.subr.mxu0 0.0
    %1933 = vmatpush1.msra.mxu0 %v1914
    %1934 = vmatprep.subr.mxu0 0.0
    %1935 = vmatpush1.msra.mxu0 %v1915
    %1936 = vmatprep.subr.mxu0 0.0
    %1937 = vmatpush1.msra.mxu0 %v1916
    %1938 = vmatprep.subr.mxu0 0.0
    %1939 = vmatpush1.msra.mxu0 %v1917
    %1940 = vmatprep.subr.mxu0 0.0
    %1941 = vmatpush1.msra.mxu0 %v1918
    %1942 = vmatprep.subr.mxu0 0.0
    %1943 = vmatpush1.msra.mxu0 %v1919
    %1944 = vmatprep.subr.mxu0 0.0
    %1945 = vmatpush1.msra.mxu0 %v1920
    %1946 = vmatprep.subr.mxu0 0.0
    %1947 = vmatpush1.msra.mxu0 %v1921
    %1948 = vmatprep.subr.mxu0 0.0
    %1949 = vmatpush1.msra.mxu0 %v1922
    %1950 = vmatprep.subr.mxu0 0.0
    %1951 = vmatpush1.msra.mxu0 %v1923
    %1952 = vmatprep.subr.mxu0 0.0
    %1953 = vmatpush1.msra.mxu0 %v1924
    %1954 = vmatprep.subr.mxu0 0.0
    %1955 = vmatpush1.msra.mxu0 %v1925
    %1956 = vmatprep.subr.mxu0 0.0
    %1957 = vmatpush1.msra.mxu0 %v1926
    %1958 = vmatprep.subr.mxu0 0.0
    %1959 = vmatpush1.msra.mxu0 %v1927
    %1960 = vmatprep.subr.mxu0 0.0
    %1961 = vmatpush1.msra.mxu0 0.0
    %1962 = vmatprep.subr.mxu0 0.0
    %1963 = vmatpush1.msra.mxu0 0.0
    %1964 = vmatprep.subr.mxu0 0.0
    %1965 = vmatpush1.msra.mxu0 0.0
    %1966 = vmatprep.subr.mxu0 0.0
    %1967 = vmatpush1.msra.mxu0 0.0
    %1968 = vmatprep.subr.mxu0 0.0
    %1969 = vmatpush1.msra.mxu0 0.0
    %1970 = vmatprep.subr.mxu0 0.0
    %1971 = vmatpush1.msra.mxu0 0.0
    %1972 = vmatprep.subr.mxu0 0.0
    %1973 = vmatpush1.msra.mxu0 0.0
    %1974 = vmatprep.subr.mxu0 0.0
    %1975 = vmatpush1.msra.mxu0 0.0
    %1976 = vmatprep.subr.mxu0 0.0
    %1977 = vmatpush1.msra.mxu0 0.0
    %1978 = vmatprep.subr.mxu0 0.0
    %1979 = vmatpush1.msra.mxu0 0.0
    %1980 = vmatprep.subr.mxu0 0.0
    %1981 = vmatpush1.msra.mxu0 0.0
    %1982 = vmatprep.subr.mxu0 0.0
    %1983 = vmatpush1.msra.mxu0 0.0
    %1984 = vmatprep.subr.mxu0 0.0
    %1985 = vmatpush1.msra.mxu0 0.0
    %1986 = vmatprep.subr.mxu0 0.0
    %1987 = vmatpush1.msra.mxu0 0.0
    %1988 = vmatprep.subr.mxu0 0.0
    %1989 = vmatpush1.msra.mxu0 0.0
    %1990 = vmatprep.subr.mxu0 0.0
    %1991 = vmatpush1.msra.mxu0 0.0
    %1992 = vmatprep.mubr.f32.mxu0 0.0
    %1993 = vmatmul.mubr.f32.gmra.mrb[0].mxu0 %v1696
    %v1994 = vpop.f32.mrb[0].mxu0
    %v1995 = vadd.f32 0.0, %v1994
    %v1996 = vpop.f32.mrb[0].mxu0
    %1997 = vmatprep.mubr.f32.mxu0 0.0
    %1998 = vmatmul.mubr.f32.gmra.mrb[0].mxu0 %v1697
    %v1999 = vpop.f32.mrb[0].mxu0
    %v2000 = vadd.f32 0.0, %v1999
    %v2001 = vpop.f32.mrb[0].mxu0
    %2002 = vmatprep.mubr.f32.mxu0 0.0
    %2003 = vmatmul.mubr.f32.gmra.mrb[0].mxu0 %v1698
    %v2004 = vpop.f32.mrb[0].mxu0
    %v2005 = vadd.f32 0.0, %v2004
    %v2006 = vpop.f32.mrb[0].mxu0
    %2007 = vmatprep.mubr.f32.mxu0 0.0
    %2008 = vmatmul.mubr.f32.gmra.mrb[0].mxu0 %v1699
    %v2009 = vpop.f32.mrb[0].mxu0
    %v2010 = vadd.f32 0.0, %v2009
    %v2011 = vpop.f32.mrb[0].mxu0
    %2012 = vdwg.mxu0
    %v2013 = vadd.f32 %v1903, %v1995
    %v2014 = vadd.f32 %v1904, %v2000
    %v2015 = vadd.f32 %v1905, %v2005
    %v2016 = vadd.f32 %v1906, %v2010
    %v2017 = vmax.f32 %v1907, %v1995
    %v2018 = vmax.f32 %v1908, %v2000
    %v2019 = vmax.f32 %v1909, %v2005
    %v2020 = vmax.f32 %v1910, %v2010
    %s2021 = scalar_lea.vmem %s13, 384
    %v2022 = vld [vmem:[%s2021] sm:$0xff]
    %v2023 = vld [vmem:[%s2021 + $0x8] sm:$0xff]
    %v2024 = vld [vmem:[%s2021 + $0x10] sm:$0xff]
    %v2025 = vld [vmem:[%s2021 + $0x18] sm:$0xff]
    %v2026 = vld [vmem:[%s2021 + $0x20] sm:$0xff]
    %v2027 = vld [vmem:[%s2021 + $0x28] sm:$0xff]
    %v2028 = vld [vmem:[%s2021 + $0x30] sm:$0xff]
    %v2029 = vld [vmem:[%s2021 + $0x38] sm:$0xff]
    %v2030 = vld [vmem:[%s2021 + $0x40] sm:$0xff]
    %v2031 = vld [vmem:[%s2021 + $0x48] sm:$0xff]
    %v2032 = vld [vmem:[%s2021 + $0x50] sm:$0xff]
    %v2033 = vld [vmem:[%s2021 + $0x58] sm:$0xff]
    %v2034 = vld [vmem:[%s2021 + $0x60] sm:$0xff]
    %v2035 = vld [vmem:[%s2021 + $0x68] sm:$0xff]
    %v2036 = vld [vmem:[%s2021 + $0x70] sm:$0xff]
    %v2037 = vld [vmem:[%s2021 + $0x78] sm:$0xff]
    %2038 = vmatprep.subr.mxu0 0.0
    %2039 = vmatpush1.msra.mxu0 %v2022
    %2040 = vmatprep.subr.mxu0 0.0
    %2041 = vmatpush1.msra.mxu0 %v2023
    %2042 = vmatprep.subr.mxu0 0.0
    %2043 = vmatpush1.msra.mxu0 %v2024
    %2044 = vmatprep.subr.mxu0 0.0
    %2045 = vmatpush1.msra.mxu0 %v2025
    %2046 = vmatprep.subr.mxu0 0.0
    %2047 = vmatpush1.msra.mxu0 %v2026
    %2048 = vmatprep.subr.mxu0 0.0
    %2049 = vmatpush1.msra.mxu0 %v2027
    %2050 = vmatprep.subr.mxu0 0.0
    %2051 = vmatpush1.msra.mxu0 %v2028
    %2052 = vmatprep.subr.mxu0 0.0
    %2053 = vmatpush1.msra.mxu0 %v2029
    %2054 = vmatprep.subr.mxu0 0.0
    %2055 = vmatpush1.msra.mxu0 %v2030
    %2056 = vmatprep.subr.mxu0 0.0
    %2057 = vmatpush1.msra.mxu0 %v2031
    %2058 = vmatprep.subr.mxu0 0.0
    %2059 = vmatpush1.msra.mxu0 %v2032
    %2060 = vmatprep.subr.mxu0 0.0
    %2061 = vmatpush1.msra.mxu0 %v2033
    %2062 = vmatprep.subr.mxu0 0.0
    %2063 = vmatpush1.msra.mxu0 %v2034
    %2064 = vmatprep.subr.mxu0 0.0
    %2065 = vmatpush1.msra.mxu0 %v2035
    %2066 = vmatprep.subr.mxu0 0.0
    %2067 = vmatpush1.msra.mxu0 %v2036
    %2068 = vmatprep.subr.mxu0 0.0
    %2069 = vmatpush1.msra.mxu0 %v2037
    %2070 = vmatprep.subr.mxu0 0.0
    %2071 = vmatpush1.msra.mxu0 0.0
    %2072 = vmatprep.subr.mxu0 0.0
    %2073 = vmatpush1.msra.mxu0 0.0
    %2074 = vmatprep.subr.mxu0 0.0
    %2075 = vmatpush1.msra.mxu0 0.0
    %2076 = vmatprep.subr.mxu0 0.0
    %2077 = vmatpush1.msra.mxu0 0.0
    %2078 = vmatprep.subr.mxu0 0.0
    %2079 = vmatpush1.msra.mxu0 0.0
    %2080 = vmatprep.subr.mxu0 0.0
    %2081 = vmatpush1.msra.mxu0 0.0
    %2082 = vmatprep.subr.mxu0 0.0
    %2083 = vmatpush1.msra.mxu0 0.0
    %2084 = vmatprep.subr.mxu0 0.0
    %2085 = vmatpush1.msra.mxu0 0.0
    %2086 = vmatprep.subr.mxu0 0.0
    %2087 = vmatpush1.msra.mxu0 0.0
    %2088 = vmatprep.subr.mxu0 0.0
    %2089 = vmatpush1.msra.mxu0 0.0
    %2090 = vmatprep.subr.mxu0 0.0
    %2091 = vmatpush1.msra.mxu0 0.0
    %2092 = vmatprep.subr.mxu0 0.0
    %2093 = vmatpush1.msra.mxu0 0.0
    %2094 = vmatprep.subr.mxu0 0.0
    %2095 = vmatpush1.msra.mxu0 0.0
    %2096 = vmatprep.subr.mxu0 0.0
    %2097 = vmatpush1.msra.mxu0 0.0
    %2098 = vmatprep.subr.mxu0 0.0
    %2099 = vmatpush1.msra.mxu0 0.0
    %2100 = vmatprep.subr.mxu0 0.0
    %2101 = vmatpush1.msra.mxu0 0.0
    %2102 = vmatprep.mubr.f32.mxu0 0.0
    %2103 = vmatmul.mubr.f32.gmra.mrb[0].mxu0 %v1696
    %v2104 = vpop.f32.mrb[0].mxu0
    %v2105 = vadd.f32 0.0, %v2104
    %v2106 = vpop.f32.mrb[0].mxu0
    %2107 = vmatprep.mubr.f32.mxu0 0.0
    %2108 = vmatmul.mubr.f32.gmra.mrb[0].mxu0 %v1697
    %v2109 = vpop.f32.mrb[0].mxu0
    %v2110 = vadd.f32 0.0, %v2109
    %v2111 = vpop.f32.mrb[0].mxu0
    %2112 = vmatprep.mubr.f32.mxu0 0.0
    %2113 = vmatmul.mubr.f32.gmra.mrb[0].mxu0 %v1698
    %v2114 = vpop.f32.mrb[0].mxu0
    %v2115 = vadd.f32 0.0, %v2114
    %v2116 = vpop.f32.mrb[0].mxu0
    %2117 = vmatprep.mubr.f32.mxu0 0.0
    %2118 = vmatmul.mubr.f32.gmra.mrb[0].mxu0 %v1699
    %v2119 = vpop.f32.mrb[0].mxu0
    %v2120 = vadd.f32 0.0, %v2119
    %v2121 = vpop.f32.mrb[0].mxu0
    %2122 = vdwg.mxu0
    %v2123 = vadd.f32 %v2013, %v2105
    %v2124 = vadd.f32 %v2014, %v2110
    %v2125 = vadd.f32 %v2015, %v2115
    %v2126 = vadd.f32 %v2016, %v2120
    %v2127 = vmax.f32 %v2017, %v2105
    %v2128 = vmax.f32 %v2018, %v2110
    %v2129 = vmax.f32 %v2019, %v2115
    %v2130 = vmax.f32 %v2020, %v2120
    %s2131 = scalar_lea.vmem %s13, 512
    %v2132 = vld [vmem:[%s2131] sm:$0xff]
    %v2133 = vld [vmem:[%s2131 + $0x8] sm:$0xff]
    %v2134 = vld [vmem:[%s2131 + $0x10] sm:$0xff]
    %v2135 = vld [vmem:[%s2131 + $0x18] sm:$0xff]
    %v2136 = vld [vmem:[%s2131 + $0x20] sm:$0xff]
    %v2137 = vld [vmem:[%s2131 + $0x28] sm:$0xff]
    %v2138 = vld [vmem:[%s2131 + $0x30] sm:$0xff]
    %v2139 = vld [vmem:[%s2131 + $0x38] sm:$0xff]
    %v2140 = vld [vmem:[%s2131 + $0x40] sm:$0xff]
    %v2141 = vld [vmem:[%s2131 + $0x48] sm:$0xff]
    %v2142 = vld [vmem:[%s2131 + $0x50] sm:$0xff]
    %v2143 = vld [vmem:[%s2131 + $0x58] sm:$0xff]
    %v2144 = vld [vmem:[%s2131 + $0x60] sm:$0xff]
    %v2145 = vld [vmem:[%s2131 + $0x68] sm:$0xff]
    %v2146 = vld [vmem:[%s2131 + $0x70] sm:$0xff]
    %v2147 = vld [vmem:[%s2131 + $0x78] sm:$0xff]
    %2148 = vmatprep.subr.mxu0 0.0
    %2149 = vmatpush1.msra.mxu0 %v2132
    %2150 = vmatprep.subr.mxu0 0.0
    %2151 = vmatpush1.msra.mxu0 %v2133
    %2152 = vmatprep.subr.mxu0 0.0
    %2153 = vmatpush1.msra.mxu0 %v2134
    %2154 = vmatprep.subr.mxu0 0.0
    %2155 = vmatpush1.msra.mxu0 %v2135
    %2156 = vmatprep.subr.mxu0 0.0
    %2157 = vmatpush1.msra.mxu0 %v2136
    %2158 = vmatprep.subr.mxu0 0.0
    %2159 = vmatpush1.msra.mxu0 %v2137
    %2160 = vmatprep.subr.mxu0 0.0
    %2161 = vmatpush1.msra.mxu0 %v2138
    %2162 = vmatprep.subr.mxu0 0.0
    %2163 = vmatpush1.msra.mxu0 %v2139
    %2164 = vmatprep.subr.mxu0 0.0
    %2165 = vmatpush1.msra.mxu0 %v2140
    %2166 = vmatprep.subr.mxu0 0.0
    %2167 = vmatpush1.msra.mxu0 %v2141
    %2168 = vmatprep.subr.mxu0 0.0
    %2169 = vmatpush1.msra.mxu0 %v2142
    %2170 = vmatprep.subr.mxu0 0.0
    %2171 = vmatpush1.msra.mxu0 %v2143
    %2172 = vmatprep.subr.mxu0 0.0
    %2173 = vmatpush1.msra.mxu0 %v2144
    %2174 = vmatprep.subr.mxu0 0.0
    %2175 = vmatpush1.msra.mxu0 %v2145
    %2176 = vmatprep.subr.mxu0 0.0
    %2177 = vmatpush1.msra.mxu0 %v2146
    %2178 = vmatprep.subr.mxu0 0.0
    %2179 = vmatpush1.msra.mxu0 %v2147
    %2180 = vmatprep.subr.mxu0 0.0
    %2181 = vmatpush1.msra.mxu0 0.0
    %2182 = vmatprep.subr.mxu0 0.0
    %2183 = vmatpush1.msra.mxu0 0.0
    %2184 = vmatprep.subr.mxu0 0.0
    %2185 = vmatpush1.msra.mxu0 0.0
    %2186 = vmatprep.subr.mxu0 0.0
    %2187 = vmatpush1.msra.mxu0 0.0
    %2188 = vmatprep.subr.mxu0 0.0
    %2189 = vmatpush1.msra.mxu0 0.0
    %2190 = vmatprep.subr.mxu0 0.0
    %2191 = vmatpush1.msra.mxu0 0.0
    %2192 = vmatprep.subr.mxu0 0.0
    %2193 = vmatpush1.msra.mxu0 0.0
    %2194 = vmatprep.subr.mxu0 0.0
    %2195 = vmatpush1.msra.mxu0 0.0
    %2196 = vmatprep.subr.mxu0 0.0
    %2197 = vmatpush1.msra.mxu0 0.0
    %2198 = vmatprep.subr.mxu0 0.0
    %2199 = vmatpush1.msra.mxu0 0.0
    %2200 = vmatprep.subr.mxu0 0.0
    %2201 = vmatpush1.msra.mxu0 0.0
    %2202 = vmatprep.subr.mxu0 0.0
    %2203 = vmatpush1.msra.mxu0 0.0
    %2204 = vmatprep.subr.mxu0 0.0
    %2205 = vmatpush1.msra.mxu0 0.0
    %2206 = vmatprep.subr.mxu0 0.0
    %2207 = vmatpush1.msra.mxu0 0.0
    %2208 = vmatprep.subr.mxu0 0.0
    %2209 = vmatpush1.msra.mxu0 0.0
    %2210 = vmatprep.subr.mxu0 0.0
    %2211 = vmatpush1.msra.mxu0 0.0
    %2212 = vmatprep.mubr.f32.mxu0 0.0
    %2213 = vmatmul.mubr.f32.gmra.mrb[0].mxu0 %v1696
    %v2214 = vpop.f32.mrb[0].mxu0
    %v2215 = vadd.f32 0.0, %v2214
    %v2216 = vpop.f32.mrb[0].mxu0
    %2217 = vmatprep.mubr.f32.mxu0 0.0
    %2218 = vmatmul.mubr.f32.gmra.mrb[0].mxu0 %v1697
    %v2219 = vpop.f32.mrb[0].mxu0
    %v2220 = vadd.f32 0.0, %v2219
    %v2221 = vpop.f32.mrb[0].mxu0
    %2222 = vmatprep.mubr.f32.mxu0 0.0
    %2223 = vmatmul.mubr.f32.gmra.mrb[0].mxu0 %v1698
    %v2224 = vpop.f32.mrb[0].mxu0
    %v2225 = vadd.f32 0.0, %v2224
    %v2226 = vpop.f32.mrb[0].mxu0
    %2227 = vmatprep.mubr.f32.mxu0 0.0
    %2228 = vmatmul.mubr.f32.gmra.mrb[0].mxu0 %v1699
    %v2229 = vpop.f32.mrb[0].mxu0
    %v2230 = vadd.f32 0.0, %v2229
    %v2231 = vpop.f32.mrb[0].mxu0
    %2232 = vdwg.mxu0
    %v2233 = vadd.f32 %v2123, %v2215
    %v2234 = vadd.f32 %v2124, %v2220
    %v2235 = vadd.f32 %v2125, %v2225
    %v2236 = vadd.f32 %v2126, %v2230
    %v2237 = vmax.f32 %v2127, %v2215
    %v2238 = vmax.f32 %v2128, %v2220
    %v2239 = vmax.f32 %v2129, %v2225
    %v2240 = vmax.f32 %v2130, %v2230
    %s2241 = scalar_lea.vmem %s13, 640
    %v2242 = vld [vmem:[%s2241] sm:$0xff]
    %v2243 = vld [vmem:[%s2241 + $0x8] sm:$0xff]
    %v2244 = vld [vmem:[%s2241 + $0x10] sm:$0xff]
    %v2245 = vld [vmem:[%s2241 + $0x18] sm:$0xff]
    %v2246 = vld [vmem:[%s2241 + $0x20] sm:$0xff]
    %v2247 = vld [vmem:[%s2241 + $0x28] sm:$0xff]
    %v2248 = vld [vmem:[%s2241 + $0x30] sm:$0xff]
    %v2249 = vld [vmem:[%s2241 + $0x38] sm:$0xff]
    %v2250 = vld [vmem:[%s2241 + $0x40] sm:$0xff]
    %v2251 = vld [vmem:[%s2241 + $0x48] sm:$0xff]
    %v2252 = vld [vmem:[%s2241 + $0x50] sm:$0xff]
    %v2253 = vld [vmem:[%s2241 + $0x58] sm:$0xff]
    %v2254 = vld [vmem:[%s2241 + $0x60] sm:$0xff]
    %v2255 = vld [vmem:[%s2241 + $0x68] sm:$0xff]
    %v2256 = vld [vmem:[%s2241 + $0x70] sm:$0xff]
    %v2257 = vld [vmem:[%s2241 + $0x78] sm:$0xff]
    %2258 = vmatprep.subr.mxu0 0.0
    %2259 = vmatpush1.msra.mxu0 %v2242
    %2260 = vmatprep.subr.mxu0 0.0
    %2261 = vmatpush1.msra.mxu0 %v2243
    %2262 = vmatprep.subr.mxu0 0.0
    %2263 = vmatpush1.msra.mxu0 %v2244
    %2264 = vmatprep.subr.mxu0 0.0
    %2265 = vmatpush1.msra.mxu0 %v2245
    %2266 = vmatprep.subr.mxu0 0.0
    %2267 = vmatpush1.msra.mxu0 %v2246
    %2268 = vmatprep.subr.mxu0 0.0
    %2269 = vmatpush1.msra.mxu0 %v2247
    %2270 = vmatprep.subr.mxu0 0.0
    %2271 = vmatpush1.msra.mxu0 %v2248
    %2272 = vmatprep.subr.mxu0 0.0
    %2273 = vmatpush1.msra.mxu0 %v2249
    %2274 = vmatprep.subr.mxu0 0.0
    %2275 = vmatpush1.msra.mxu0 %v2250
    %2276 = vmatprep.subr.mxu0 0.0
    %2277 = vmatpush1.msra.mxu0 %v2251
    %2278 = vmatprep.subr.mxu0 0.0
    %2279 = vmatpush1.msra.mxu0 %v2252
    %2280 = vmatprep.subr.mxu0 0.0
    %2281 = vmatpush1.msra.mxu0 %v2253
    %2282 = vmatprep.subr.mxu0 0.0
    %2283 = vmatpush1.msra.mxu0 %v2254
    %2284 = vmatprep.subr.mxu0 0.0
    %2285 = vmatpush1.msra.mxu0 %v2255
    %2286 = vmatprep.subr.mxu0 0.0
    %2287 = vmatpush1.msra.mxu0 %v2256
    %2288 = vmatprep.subr.mxu0 0.0
    %2289 = vmatpush1.msra.mxu0 %v2257
    %2290 = vmatprep.subr.mxu0 0.0
    %2291 = vmatpush1.msra.mxu0 0.0
    %2292 = vmatprep.subr.mxu0 0.0
    %2293 = vmatpush1.msra.mxu0 0.0
    %2294 = vmatprep.subr.mxu0 0.0
    %2295 = vmatpush1.msra.mxu0 0.0
    %2296 = vmatprep.subr.mxu0 0.0
    %2297 = vmatpush1.msra.mxu0 0.0
    %2298 = vmatprep.subr.mxu0 0.0
    %2299 = vmatpush1.msra.mxu0 0.0
    %2300 = vmatprep.subr.mxu0 0.0
    %2301 = vmatpush1.msra.mxu0 0.0
    %2302 = vmatprep.subr.mxu0 0.0
    %2303 = vmatpush1.msra.mxu0 0.0
    %2304 = vmatprep.subr.mxu0 0.0
    %2305 = vmatpush1.msra.mxu0 0.0
    %2306 = vmatprep.subr.mxu0 0.0
    %2307 = vmatpush1.msra.mxu0 0.0
    %2308 = vmatprep.subr.mxu0 0.0
    %2309 = vmatpush1.msra.mxu0 0.0
    %2310 = vmatprep.subr.mxu0 0.0
    %2311 = vmatpush1.msra.mxu0 0.0
    %2312 = vmatprep.subr.mxu0 0.0
    %2313 = vmatpush1.msra.mxu0 0.0
    %2314 = vmatprep.subr.mxu0 0.0
    %2315 = vmatpush1.msra.mxu0 0.0
    %2316 = vmatprep.subr.mxu0 0.0
    %2317 = vmatpush1.msra.mxu0 0.0
    %2318 = vmatprep.subr.mxu0 0.0
    %2319 = vmatpush1.msra.mxu0 0.0
    %2320 = vmatprep.subr.mxu0 0.0
    %2321 = vmatpush1.msra.mxu0 0.0
    %2322 = vmatprep.mubr.f32.mxu0 0.0
    %2323 = vmatmul.mubr.f32.gmra.mrb[0].mxu0 %v1696
    %v2324 = vpop.f32.mrb[0].mxu0
    %v2325 = vadd.f32 0.0, %v2324
    %v2326 = vpop.f32.mrb[0].mxu0
    %2327 = vmatprep.mubr.f32.mxu0 0.0
    %2328 = vmatmul.mubr.f32.gmra.mrb[0].mxu0 %v1697
    %v2329 = vpop.f32.mrb[0].mxu0
    %v2330 = vadd.f32 0.0, %v2329
    %v2331 = vpop.f32.mrb[0].mxu0
    %2332 = vmatprep.mubr.f32.mxu0 0.0
    %2333 = vmatmul.mubr.f32.gmra.mrb[0].mxu0 %v1698
    %v2334 = vpop.f32.mrb[0].mxu0
    %v2335 = vadd.f32 0.0, %v2334
    %v2336 = vpop.f32.mrb[0].mxu0
    %2337 = vmatprep.mubr.f32.mxu0 0.0
    %2338 = vmatmul.mubr.f32.gmra.mrb[0].mxu0 %v1699
    %v2339 = vpop.f32.mrb[0].mxu0
    %v2340 = vadd.f32 0.0, %v2339
    %v2341 = vpop.f32.mrb[0].mxu0
    %2342 = vdwg.mxu0
    %v2343 = vadd.f32 %v2233, %v2325
    %v2344 = vadd.f32 %v2234, %v2330
    %v2345 = vadd.f32 %v2235, %v2335
    %v2346 = vadd.f32 %v2236, %v2340
    %v2347 = vmax.f32 %v2237, %v2325
    %v2348 = vmax.f32 %v2238, %v2330
    %v2349 = vmax.f32 %v2239, %v2335
    %v2350 = vmax.f32 %v2240, %v2340
    %s2351 = scalar_lea.vmem %s13, 768
    %v2352 = vld [vmem:[%s2351] sm:$0xff]
    %v2353 = vld [vmem:[%s2351 + $0x8] sm:$0xff]
    %v2354 = vld [vmem:[%s2351 + $0x10] sm:$0xff]
    %v2355 = vld [vmem:[%s2351 + $0x18] sm:$0xff]
    %v2356 = vld [vmem:[%s2351 + $0x20] sm:$0xff]
    %v2357 = vld [vmem:[%s2351 + $0x28] sm:$0xff]
    %v2358 = vld [vmem:[%s2351 + $0x30] sm:$0xff]
    %v2359 = vld [vmem:[%s2351 + $0x38] sm:$0xff]
    %v2360 = vld [vmem:[%s2351 + $0x40] sm:$0xff]
    %v2361 = vld [vmem:[%s2351 + $0x48] sm:$0xff]
    %v2362 = vld [vmem:[%s2351 + $0x50] sm:$0xff]
    %v2363 = vld [vmem:[%s2351 + $0x58] sm:$0xff]
    %v2364 = vld [vmem:[%s2351 + $0x60] sm:$0xff]
    %v2365 = vld [vmem:[%s2351 + $0x68] sm:$0xff]
    %v2366 = vld [vmem:[%s2351 + $0x70] sm:$0xff]
    %v2367 = vld [vmem:[%s2351 + $0x78] sm:$0xff]
    %2368 = vmatprep.subr.mxu0 0.0
    %2369 = vmatpush1.msra.mxu0 %v2352
    %2370 = vmatprep.subr.mxu0 0.0
    %2371 = vmatpush1.msra.mxu0 %v2353
    %2372 = vmatprep.subr.mxu0 0.0
    %2373 = vmatpush1.msra.mxu0 %v2354
    %2374 = vmatprep.subr.mxu0 0.0
    %2375 = vmatpush1.msra.mxu0 %v2355
    %2376 = vmatprep.subr.mxu0 0.0
    %2377 = vmatpush1.msra.mxu0 %v2356
    %2378 = vmatprep.subr.mxu0 0.0
    %2379 = vmatpush1.msra.mxu0 %v2357
    %2380 = vmatprep.subr.mxu0 0.0
    %2381 = vmatpush1.msra.mxu0 %v2358
    %2382 = vmatprep.subr.mxu0 0.0
    %2383 = vmatpush1.msra.mxu0 %v2359
    %2384 = vmatprep.subr.mxu0 0.0
    %2385 = vmatpush1.msra.mxu0 %v2360
    %2386 = vmatprep.subr.mxu0 0.0
    %2387 = vmatpush1.msra.mxu0 %v2361
    %2388 = vmatprep.subr.mxu0 0.0
    %2389 = vmatpush1.msra.mxu0 %v2362
    %2390 = vmatprep.subr.mxu0 0.0
    %2391 = vmatpush1.msra.mxu0 %v2363
    %2392 = vmatprep.subr.mxu0 0.0
    %2393 = vmatpush1.msra.mxu0 %v2364
    %2394 = vmatprep.subr.mxu0 0.0
    %2395 = vmatpush1.msra.mxu0 %v2365
    %2396 = vmatprep.subr.mxu0 0.0
    %2397 = vmatpush1.msra.mxu0 %v2366
    %2398 = vmatprep.subr.mxu0 0.0
    %2399 = vmatpush1.msra.mxu0 %v2367
    %2400 = vmatprep.subr.mxu0 0.0
    %2401 = vmatpush1.msra.mxu0 0.0
    %2402 = vmatprep.subr.mxu0 0.0
    %2403 = vmatpush1.msra.mxu0 0.0
    %2404 = vmatprep.subr.mxu0 0.0
    %2405 = vmatpush1.msra.mxu0 0.0
    %2406 = vmatprep.subr.mxu0 0.0
    %2407 = vmatpush1.msra.mxu0 0.0
    %2408 = vmatprep.subr.mxu0 0.0
    %2409 = vmatpush1.msra.mxu0 0.0
    %2410 = vmatprep.subr.mxu0 0.0
    %2411 = vmatpush1.msra.mxu0 0.0
    %2412 = vmatprep.subr.mxu0 0.0
    %2413 = vmatpush1.msra.mxu0 0.0
    %2414 = vmatprep.subr.mxu0 0.0
    %2415 = vmatpush1.msra.mxu0 0.0
    %2416 = vmatprep.subr.mxu0 0.0
    %2417 = vmatpush1.msra.mxu0 0.0
    %2418 = vmatprep.subr.mxu0 0.0
    %2419 = vmatpush1.msra.mxu0 0.0
    %2420 = vmatprep.subr.mxu0 0.0
    %2421 = vmatpush1.msra.mxu0 0.0
    %2422 = vmatprep.subr.mxu0 0.0
    %2423 = vmatpush1.msra.mxu0 0.0
    %2424 = vmatprep.subr.mxu0 0.0
    %2425 = vmatpush1.msra.mxu0 0.0
    %2426 = vmatprep.subr.mxu0 0.0
    %2427 = vmatpush1.msra.mxu0 0.0
    %2428 = vmatprep.subr.mxu0 0.0
    %2429 = vmatpush1.msra.mxu0 0.0
    %2430 = vmatprep.subr.mxu0 0.0
    %2431 = vmatpush1.msra.mxu0 0.0
    %2432 = vmatprep.mubr.f32.mxu0 0.0
    %2433 = vmatmul.mubr.f32.gmra.mrb[0].mxu0 %v1696
    %v2434 = vpop.f32.mrb[0].mxu0
    %v2435 = vadd.f32 0.0, %v2434
    %v2436 = vpop.f32.mrb[0].mxu0
    %2437 = vmatprep.mubr.f32.mxu0 0.0
    %2438 = vmatmul.mubr.f32.gmra.mrb[0].mxu0 %v1697
    %v2439 = vpop.f32.mrb[0].mxu0
    %v2440 = vadd.f32 0.0, %v2439
    %v2441 = vpop.f32.mrb[0].mxu0
    %2442 = vmatprep.mubr.f32.mxu0 0.0
    %2443 = vmatmul.mubr.f32.gmra.mrb[0].mxu0 %v1698
    %v2444 = vpop.f32.mrb[0].mxu0
    %v2445 = vadd.f32 0.0, %v2444
    %v2446 = vpop.f32.mrb[0].mxu0
    %2447 = vmatprep.mubr.f32.mxu0 0.0
    %2448 = vmatmul.mubr.f32.gmra.mrb[0].mxu0 %v1699
    %v2449 = vpop.f32.mrb[0].mxu0
    %v2450 = vadd.f32 0.0, %v2449
    %v2451 = vpop.f32.mrb[0].mxu0
    %2452 = vdwg.mxu0
    %v2453 = vadd.f32 %v2343, %v2435
    %v2454 = vadd.f32 %v2344, %v2440
    %v2455 = vadd.f32 %v2345, %v2445
    %v2456 = vadd.f32 %v2346, %v2450
    %v2457 = vmax.f32 %v2347, %v2435
    %v2458 = vmax.f32 %v2348, %v2440
    %v2459 = vmax.f32 %v2349, %v2445
    %v2460 = vmax.f32 %v2350, %v2450
    %s2461 = scalar_lea.vmem %s13, 896
    %v2462 = vld [vmem:[%s2461] sm:$0xff]
    %v2463 = vld [vmem:[%s2461 + $0x8] sm:$0xff]
    %v2464 = vld [vmem:[%s2461 + $0x10] sm:$0xff]
    %v2465 = vld [vmem:[%s2461 + $0x18] sm:$0xff]
    %v2466 = vld [vmem:[%s2461 + $0x20] sm:$0xff]
    %v2467 = vld [vmem:[%s2461 + $0x28] sm:$0xff]
    %v2468 = vld [vmem:[%s2461 + $0x30] sm:$0xff]
    %v2469 = vld [vmem:[%s2461 + $0x38] sm:$0xff]
    %v2470 = vld [vmem:[%s2461 + $0x40] sm:$0xff]
    %v2471 = vld [vmem:[%s2461 + $0x48] sm:$0xff]
    %v2472 = vld [vmem:[%s2461 + $0x50] sm:$0xff]
    %v2473 = vld [vmem:[%s2461 + $0x58] sm:$0xff]
    %v2474 = vld [vmem:[%s2461 + $0x60] sm:$0xff]
    %v2475 = vld [vmem:[%s2461 + $0x68] sm:$0xff]
    %v2476 = vld [vmem:[%s2461 + $0x70] sm:$0xff]
    %v2477 = vld [vmem:[%s2461 + $0x78] sm:$0xff]
    %2478 = vmatprep.subr.mxu0 0.0
    %2479 = vmatpush1.msra.mxu0 %v2462
    %2480 = vmatprep.subr.mxu0 0.0
    %2481 = vmatpush1.msra.mxu0 %v2463
    %2482 = vmatprep.subr.mxu0 0.0
    %2483 = vmatpush1.msra.mxu0 %v2464
    %2484 = vmatprep.subr.mxu0 0.0
    %2485 = vmatpush1.msra.mxu0 %v2465
    %2486 = vmatprep.subr.mxu0 0.0
    %2487 = vmatpush1.msra.mxu0 %v2466
    %2488 = vmatprep.subr.mxu0 0.0
    %2489 = vmatpush1.msra.mxu0 %v2467
    %2490 = vmatprep.subr.mxu0 0.0
    %2491 = vmatpush1.msra.mxu0 %v2468
    %2492 = vmatprep.subr.mxu0 0.0
    %2493 = vmatpush1.msra.mxu0 %v2469
    %2494 = vmatprep.subr.mxu0 0.0
    %2495 = vmatpush1.msra.mxu0 %v2470
    %2496 = vmatprep.subr.mxu0 0.0
    %2497 = vmatpush1.msra.mxu0 %v2471
    %2498 = vmatprep.subr.mxu0 0.0
    %2499 = vmatpush1.msra.mxu0 %v2472
    %2500 = vmatprep.subr.mxu0 0.0
    %2501 = vmatpush1.msra.mxu0 %v2473
    %2502 = vmatprep.subr.mxu0 0.0
    %2503 = vmatpush1.msra.mxu0 %v2474
    %2504 = vmatprep.subr.mxu0 0.0
    %2505 = vmatpush1.msra.mxu0 %v2475
    %2506 = vmatprep.subr.mxu0 0.0
    %2507 = vmatpush1.msra.mxu0 %v2476
    %2508 = vmatprep.subr.mxu0 0.0
    %2509 = vmatpush1.msra.mxu0 %v2477
    %2510 = vmatprep.subr.mxu0 0.0
    %2511 = vmatpush1.msra.mxu0 0.0
    %2512 = vmatprep.subr.mxu0 0.0
    %2513 = vmatpush1.msra.mxu0 0.0
    %2514 = vmatprep.subr.mxu0 0.0
    %2515 = vmatpush1.msra.mxu0 0.0
    %2516 = vmatprep.subr.mxu0 0.0
    %2517 = vmatpush1.msra.mxu0 0.0
    %2518 = vmatprep.subr.mxu0 0.0
    %2519 = vmatpush1.msra.mxu0 0.0
    %2520 = vmatprep.subr.mxu0 0.0
    %2521 = vmatpush1.msra.mxu0 0.0
    %2522 = vmatprep.subr.mxu0 0.0
    %2523 = vmatpush1.msra.mxu0 0.0
    %2524 = vmatprep.subr.mxu0 0.0
    %2525 = vmatpush1.msra.mxu0 0.0
    %2526 = vmatprep.subr.mxu0 0.0
    %2527 = vmatpush1.msra.mxu0 0.0
    %2528 = vmatprep.subr.mxu0 0.0
    %2529 = vmatpush1.msra.mxu0 0.0
    %2530 = vmatprep.subr.mxu0 0.0
    %2531 = vmatpush1.msra.mxu0 0.0
    %2532 = vmatprep.subr.mxu0 0.0
    %2533 = vmatpush1.msra.mxu0 0.0
    %2534 = vmatprep.subr.mxu0 0.0
    %2535 = vmatpush1.msra.mxu0 0.0
    %2536 = vmatprep.subr.mxu0 0.0
    %2537 = vmatpush1.msra.mxu0 0.0
    %2538 = vmatprep.subr.mxu0 0.0
    %2539 = vmatpush1.msra.mxu0 0.0
    %2540 = vmatprep.subr.mxu0 0.0
    %2541 = vmatpush1.msra.mxu0 0.0
    %2542 = vmatprep.mubr.f32.mxu0 0.0
    %2543 = vmatmul.mubr.f32.gmra.mrb[0].mxu0 %v1696
    %v2544 = vpop.f32.mrb[0].mxu0
    %v2545 = vadd.f32 0.0, %v2544
    %v2546 = vpop.f32.mrb[0].mxu0
    %2547 = vmatprep.mubr.f32.mxu0 0.0
    %2548 = vmatmul.mubr.f32.gmra.mrb[0].mxu0 %v1697
    %v2549 = vpop.f32.mrb[0].mxu0
    %v2550 = vadd.f32 0.0, %v2549
    %v2551 = vpop.f32.mrb[0].mxu0
    %2552 = vmatprep.mubr.f32.mxu0 0.0
    %2553 = vmatmul.mubr.f32.gmra.mrb[0].mxu0 %v1698
    %v2554 = vpop.f32.mrb[0].mxu0
    %v2555 = vadd.f32 0.0, %v2554
    %v2556 = vpop.f32.mrb[0].mxu0
    %2557 = vmatprep.mubr.f32.mxu0 0.0
    %2558 = vmatmul.mubr.f32.gmra.mrb[0].mxu0 %v1699
    %v2559 = vpop.f32.mrb[0].mxu0
    %v2560 = vadd.f32 0.0, %v2559
    %v2561 = vpop.f32.mrb[0].mxu0
    %2562 = vdwg.mxu0
    %v2563 = vadd.f32 %v2453, %v2545
    %v2564 = vadd.f32 %v2454, %v2550
    %v2565 = vadd.f32 %v2455, %v2555
    %v2566 = vadd.f32 %v2456, %v2560
    %v2567 = vmax.f32 %v2457, %v2545
    %v2568 = vmax.f32 %v2458, %v2550
    %v2569 = vmax.f32 %v2459, %v2555
    %v2570 = vmax.f32 %v2460, %v2560
    %v2571 = vmul.f32 %v2563, 0.125
    %v2572 = vmul.f32 %v2564, 0.125
    %v2573 = vmul.f32 %v2565, 0.125
    %v2574 = vmul.f32 %v2566, 0.125
    %2575 = vst.msk [vmem:[#allocation4] sm:$0xff] %vm399, 0.0
    %2576 = vst.msk [vmem:[#allocation4 + $0x8] sm:$0xff] %vm399, 0.0
    %2577 = vst.msk [vmem:[#allocation4 + $0x10] sm:$0x3] %vm844, 0.0
    %2578 = vst.msk [vmem:[#allocation4 + $0x18] sm:$0xff] %vm399, 0.0
    %2579 = vst.msk [vmem:[#allocation4 + $0x20] sm:$0xff] %vm399, 0.0
    %2580 = vst.msk [vmem:[#allocation4 + $0x28] sm:$0x3] %vm844, 0.0
    %vm2581 = vcmask 130048
    %2582 = vst.msk [vmem:[#allocation4 + $0x1] sm:$0xff] %vm2581, %v2571
    %2583 = vst.msk [vmem:[#allocation4 + $0x9] sm:$0xff] %vm2581, %v2572
    %2584 = vst.msk [vmem:[#allocation4 + $0x19] sm:$0xff] %vm2581, %v2573
    %2585 = vst.msk [vmem:[#allocation4 + $0x21] sm:$0xff] %vm2581, %v2574
    %2590 = vrot.lane.b32.xlu0 %v2567, 16
    %v2591 = vpop.permute.xlu0 %2590
    %2592 = vrot.lane.b32.xlu0 %v2568, 16
    %v2593 = vpop.permute.xlu0 %2592
    %2594 = vrot.lane.b32.xlu0 %v2569, 16
    %v2595 = vpop.permute.xlu0 %2594
    %2596 = vrot.lane.b32.xlu0 %v2570, 16
    %v2597 = vpop.permute.xlu0 %2596
    %vm2602 = vcmask 261248
    %2603 = vst.msk [vmem:[#allocation4 + $0x1] sm:$0xff] %vm2602, %v2591
    %2604 = vst.msk [vmem:[#allocation4 + $0x9] sm:$0xff] %vm2602, %v2593
    %2605 = vst.msk [vmem:[#allocation4 + $0x19] sm:$0xff] %vm2602, %v2595
    %2606 = vst.msk [vmem:[#allocation4 + $0x21] sm:$0xff] %vm2602, %v2597
    %v2607 = vld [vmem:[#allocation4] sm:$0xff]
    %v2608 = vld [vmem:[#allocation4 + $0x8] sm:$0xff]
    %v2609 = vld [vmem:[#allocation4 + $0x18] sm:$0xff]
    %v2610 = vld [vmem:[#allocation4 + $0x20] sm:$0xff]
    %v2611 = vld [vmem:[%s3] sm:$0xff]
    %v2612 = vld [vmem:[%s3 + $0x8] sm:$0xff]
    %v2613 = vld [vmem:[%s3 + $0x10] sm:$0xff]
    %v2614 = vld [vmem:[%s3 + $0x18] sm:$0xff]
    %v2615 = vld [vmem:[#allocation4 + $0x1] sm:$0xff]
    %v2616 = vld [vmem:[#allocation4 + $0x9] sm:$0xff]
    %v2617 = vld [vmem:[#allocation4 + $0x19] sm:$0xff]
    %v2618 = vld [vmem:[#allocation4 + $0x21] sm:$0xff]
    %s2619 = scalar_lea.vmem %s3, 32
    %v2620 = vld [vmem:[%s2619] sm:$0xff]
    %v2621 = vld [vmem:[%s2619 + $0x8] sm:$0xff]
    %v2622 = vld [vmem:[%s2619 + $0x10] sm:$0xff]
    %v2623 = vld [vmem:[%s2619 + $0x18] sm:$0xff]
    %v2625 = vsel %vm399, %v2615, 0
    %v2628 = vsel %vm399, %v2616, 0
    %v2631 = vsel %vm399, %v2617, 0
    %v2634 = vsel %vm399, %v2618, 0
    %2636 = vmatprep.subr.mxu0 0.0
    %2637 = vmatpush1.msra.mxu0 %v2620
    %2638 = vmatprep.subr.mxu0 0.0
    %2639 = vmatpush1.msra.mxu0 %v2621
    %2640 = vmatprep.subr.mxu0 0.0
    %2641 = vmatpush1.msra.mxu0 %v2622
    %2642 = vmatprep.subr.mxu0 0.0
    %2643 = vmatpush1.msra.mxu0 %v2623
    %2644 = vmatprep.subr.mxu0 0.0
    %2645 = vmatpush1.msra.mxu0 0.0
    %2646 = vmatprep.subr.mxu0 0.0
    %2647 = vmatpush1.msra.mxu0 0.0
    %2648 = vmatprep.subr.mxu0 0.0
    %2649 = vmatpush1.msra.mxu0 0.0
    %2650 = vmatprep.subr.mxu0 0.0
    %2651 = vmatpush1.msra.mxu0 0.0
    %2652 = vmatprep.subr.mxu0 0.0
    %2653 = vmatpush1.msra.mxu0 0.0
    %2654 = vmatprep.subr.mxu0 0.0
    %2655 = vmatpush1.msra.mxu0 0.0
    %2656 = vmatprep.subr.mxu0 0.0
    %2657 = vmatpush1.msra.mxu0 0.0
    %2658 = vmatprep.subr.mxu0 0.0
    %2659 = vmatpush1.msra.mxu0 0.0
    %2660 = vmatprep.subr.mxu0 0.0
    %2661 = vmatpush1.msra.mxu0 0.0
    %2662 = vmatprep.subr.mxu0 0.0
    %2663 = vmatpush1.msra.mxu0 0.0
    %2664 = vmatprep.subr.mxu0 0.0
    %2665 = vmatpush1.msra.mxu0 0.0
    %2666 = vmatprep.subr.mxu0 0.0
    %2667 = vmatpush1.msra.mxu0 0.0
    %2668 = vmatprep.subr.mxu0 0.0
    %2669 = vmatpush1.msra.mxu0 0.0
    %2670 = vmatprep.subr.mxu0 0.0
    %2671 = vmatpush1.msra.mxu0 0.0
    %2672 = vmatprep.subr.mxu0 0.0
    %2673 = vmatpush1.msra.mxu0 0.0
    %2674 = vmatprep.subr.mxu0 0.0
    %2675 = vmatpush1.msra.mxu0 0.0
    %2676 = vmatprep.subr.mxu0 0.0
    %2677 = vmatpush1.msra.mxu0 0.0
    %2678 = vmatprep.subr.mxu0 0.0
    %2679 = vmatpush1.msra.mxu0 0.0
    %2680 = vmatprep.subr.mxu0 0.0
    %2681 = vmatpush1.msra.mxu0 0.0
    %2682 = vmatprep.subr.mxu0 0.0
    %2683 = vmatpush1.msra.mxu0 0.0
    %2684 = vmatprep.subr.mxu0 0.0
    %2685 = vmatpush1.msra.mxu0 0.0
    %2686 = vmatprep.subr.mxu0 0.0
    %2687 = vmatpush1.msra.mxu0 0.0
    %2688 = vmatprep.subr.mxu0 0.0
    %2689 = vmatpush1.msra.mxu0 0.0
    %2690 = vmatprep.subr.mxu0 0.0
    %2691 = vmatpush1.msra.mxu0 0.0
    %2692 = vmatprep.subr.mxu0 0.0
    %2693 = vmatpush1.msra.mxu0 0.0
    %2694 = vmatprep.subr.mxu0 0.0
    %2695 = vmatpush1.msra.mxu0 0.0
    %2696 = vmatprep.subr.mxu0 0.0
    %2697 = vmatpush1.msra.mxu0 0.0
    %2698 = vmatprep.subr.mxu0 0.0
    %2699 = vmatpush1.msra.mxu0 0.0
    %2700 = vmatprep.mubr.f32.mxu0 0.0
    %2701 = vmatmul.mubr.f32.gmra.mrb[0].mxu0 %v2625
    %v2702 = vpop.f32.mrb[0].mxu0
    %v2703 = vadd.f32 0.0, %v2702
    %v2704 = vpop.f32.mrb[0].mxu0
    %2705 = vmatprep.mubr.f32.mxu0 0.0
    %2706 = vmatmul.mubr.f32.gmra.mrb[0].mxu0 %v2628
    %v2707 = vpop.f32.mrb[0].mxu0
    %v2708 = vadd.f32 0.0, %v2707
    %v2709 = vpop.f32.mrb[0].mxu0
    %2710 = vmatprep.mubr.f32.mxu0 0.0
    %2711 = vmatmul.mubr.f32.gmra.mrb[0].mxu0 %v2631
    %v2712 = vpop.f32.mrb[0].mxu0
    %v2713 = vadd.f32 0.0, %v2712
    %v2714 = vpop.f32.mrb[0].mxu0
    %2715 = vmatprep.mubr.f32.mxu0 0.0
    %2716 = vmatmul.mubr.f32.gmra.mrb[0].mxu0 %v2634
    %v2717 = vpop.f32.mrb[0].mxu0
    %v2718 = vadd.f32 0.0, %v2717
    %v2719 = vpop.f32.mrb[0].mxu0
    %2720 = vdwg.mxu0
    %v2722 = vsel %vm399, %v2607, 0
    %v2725 = vsel %vm399, %v2608, 0
    %v2728 = vsel %vm399, %v2609, 0
    %v2731 = vsel %vm399, %v2610, 0
    %2733 = vmatprep.subr.mxu0 0.0
    %2734 = vmatpush1.msra.mxu0 %v2611
    %2735 = vmatprep.subr.mxu0 0.0
    %2736 = vmatpush1.msra.mxu0 %v2612
    %2737 = vmatprep.subr.mxu0 0.0
    %2738 = vmatpush1.msra.mxu0 %v2613
    %2739 = vmatprep.subr.mxu0 0.0
    %2740 = vmatpush1.msra.mxu0 %v2614
    %2741 = vmatprep.subr.mxu0 0.0
    %2742 = vmatpush1.msra.mxu0 0.0
    %2743 = vmatprep.subr.mxu0 0.0
    %2744 = vmatpush1.msra.mxu0 0.0
    %2745 = vmatprep.subr.mxu0 0.0
    %2746 = vmatpush1.msra.mxu0 0.0
    %2747 = vmatprep.subr.mxu0 0.0
    %2748 = vmatpush1.msra.mxu0 0.0
    %2749 = vmatprep.subr.mxu0 0.0
    %2750 = vmatpush1.msra.mxu0 0.0
    %2751 = vmatprep.subr.mxu0 0.0
    %2752 = vmatpush1.msra.mxu0 0.0
    %2753 = vmatprep.subr.mxu0 0.0
    %2754 = vmatpush1.msra.mxu0 0.0
    %2755 = vmatprep.subr.mxu0 0.0
    %2756 = vmatpush1.msra.mxu0 0.0
    %2757 = vmatprep.subr.mxu0 0.0
    %2758 = vmatpush1.msra.mxu0 0.0
    %2759 = vmatprep.subr.mxu0 0.0
    %2760 = vmatpush1.msra.mxu0 0.0
    %2761 = vmatprep.subr.mxu0 0.0
    %2762 = vmatpush1.msra.mxu0 0.0
    %2763 = vmatprep.subr.mxu0 0.0
    %2764 = vmatpush1.msra.mxu0 0.0
    %2765 = vmatprep.subr.mxu0 0.0
    %2766 = vmatpush1.msra.mxu0 0.0
    %2767 = vmatprep.subr.mxu0 0.0
    %2768 = vmatpush1.msra.mxu0 0.0
    %2769 = vmatprep.subr.mxu0 0.0
    %2770 = vmatpush1.msra.mxu0 0.0
    %2771 = vmatprep.subr.mxu0 0.0
    %2772 = vmatpush1.msra.mxu0 0.0
    %2773 = vmatprep.subr.mxu0 0.0
    %2774 = vmatpush1.msra.mxu0 0.0
    %2775 = vmatprep.subr.mxu0 0.0
    %2776 = vmatpush1.msra.mxu0 0.0
    %2777 = vmatprep.subr.mxu0 0.0
    %2778 = vmatpush1.msra.mxu0 0.0
    %2779 = vmatprep.subr.mxu0 0.0
    %2780 = vmatpush1.msra.mxu0 0.0
    %2781 = vmatprep.subr.mxu0 0.0
    %2782 = vmatpush1.msra.mxu0 0.0
    %2783 = vmatprep.subr.mxu0 0.0
    %2784 = vmatpush1.msra.mxu0 0.0
    %2785 = vmatprep.subr.mxu0 0.0
    %2786 = vmatpush1.msra.mxu0 0.0
    %2787 = vmatprep.subr.mxu0 0.0
    %2788 = vmatpush1.msra.mxu0 0.0
    %2789 = vmatprep.subr.mxu0 0.0
    %2790 = vmatpush1.msra.mxu0 0.0
    %2791 = vmatprep.subr.mxu0 0.0
    %2792 = vmatpush1.msra.mxu0 0.0
    %2793 = vmatprep.subr.mxu0 0.0
    %2794 = vmatpush1.msra.mxu0 0.0
    %2795 = vmatprep.subr.mxu0 0.0
    %2796 = vmatpush1.msra.mxu0 0.0
    %2797 = vmatprep.mubr.f32.mxu0 0.0
    %2798 = vmatmul.mubr.f32.gmra.mrb[0].mxu0 %v2722
    %v2799 = vpop.f32.mrb[0].mxu0
    %v2800 = vadd.f32 %v2703, %v2799
    %v2801 = vpop.f32.mrb[0].mxu0
    %2802 = vmatprep.mubr.f32.mxu0 0.0
    %2803 = vmatmul.mubr.f32.gmra.mrb[0].mxu0 %v2725
    %v2804 = vpop.f32.mrb[0].mxu0
    %v2805 = vadd.f32 %v2708, %v2804
    %v2806 = vpop.f32.mrb[0].mxu0
    %2807 = vmatprep.mubr.f32.mxu0 0.0
    %2808 = vmatmul.mubr.f32.gmra.mrb[0].mxu0 %v2728
    %v2809 = vpop.f32.mrb[0].mxu0
    %v2810 = vadd.f32 %v2713, %v2809
    %v2811 = vpop.f32.mrb[0].mxu0
    %2812 = vmatprep.mubr.f32.mxu0 0.0
    %2813 = vmatmul.mubr.f32.gmra.mrb[0].mxu0 %v2731
    %v2814 = vpop.f32.mrb[0].mxu0
    %v2815 = vadd.f32 %v2718, %v2814
    %v2816 = vpop.f32.mrb[0].mxu0
    %2817 = vdwg.mxu0
    %v2818 = vld [vmem:[#allocation4 + $0x2] sm:$0xff]
    %v2819 = vld [vmem:[#allocation4 + $0xa] sm:$0xff]
    %v2820 = vld [vmem:[#allocation4 + $0x1a] sm:$0xff]
    %v2821 = vld [vmem:[#allocation4 + $0x22] sm:$0xff]
    %s2822 = scalar_lea.vmem %s3, 64
    %v2823 = vld [vmem:[%s2822] sm:$0xff]
    %v2824 = vld [vmem:[%s2822 + $0x8] sm:$0xff]
    %v2825 = vld [vmem:[%s2822 + $0x10] sm:$0xff]
    %v2826 = vld [vmem:[%s2822 + $0x18] sm:$0xff]
    %v2828 = vsel %vm399, %v2818, 0
    %v2831 = vsel %vm399, %v2819, 0
    %v2834 = vsel %vm399, %v2820, 0
    %v2837 = vsel %vm399, %v2821, 0
    %2839 = vmatprep.subr.mxu0 0.0
    %2840 = vmatpush1.msra.mxu0 %v2823
    %2841 = vmatprep.subr.mxu0 0.0
    %2842 = vmatpush1.msra.mxu0 %v2824
    %2843 = vmatprep.subr.mxu0 0.0
    %2844 = vmatpush1.msra.mxu0 %v2825
    %2845 = vmatprep.subr.mxu0 0.0
    %2846 = vmatpush1.msra.mxu0 %v2826
    %2847 = vmatprep.subr.mxu0 0.0
    %2848 = vmatpush1.msra.mxu0 0.0
    %2849 = vmatprep.subr.mxu0 0.0
    %2850 = vmatpush1.msra.mxu0 0.0
    %2851 = vmatprep.subr.mxu0 0.0
    %2852 = vmatpush1.msra.mxu0 0.0
    %2853 = vmatprep.subr.mxu0 0.0
    %2854 = vmatpush1.msra.mxu0 0.0
    %2855 = vmatprep.subr.mxu0 0.0
    %2856 = vmatpush1.msra.mxu0 0.0
    %2857 = vmatprep.subr.mxu0 0.0
    %2858 = vmatpush1.msra.mxu0 0.0
    %2859 = vmatprep.subr.mxu0 0.0
    %2860 = vmatpush1.msra.mxu0 0.0
    %2861 = vmatprep.subr.mxu0 0.0
    %2862 = vmatpush1.msra.mxu0 0.0
    %2863 = vmatprep.subr.mxu0 0.0
    %2864 = vmatpush1.msra.mxu0 0.0
    %2865 = vmatprep.subr.mxu0 0.0
    %2866 = vmatpush1.msra.mxu0 0.0
    %2867 = vmatprep.subr.mxu0 0.0
    %2868 = vmatpush1.msra.mxu0 0.0
    %2869 = vmatprep.subr.mxu0 0.0
    %2870 = vmatpush1.msra.mxu0 0.0
    %2871 = vmatprep.subr.mxu0 0.0
    %2872 = vmatpush1.msra.mxu0 0.0
    %2873 = vmatprep.subr.mxu0 0.0
    %2874 = vmatpush1.msra.mxu0 0.0
    %2875 = vmatprep.subr.mxu0 0.0
    %2876 = vmatpush1.msra.mxu0 0.0
    %2877 = vmatprep.subr.mxu0 0.0
    %2878 = vmatpush1.msra.mxu0 0.0
    %2879 = vmatprep.subr.mxu0 0.0
    %2880 = vmatpush1.msra.mxu0 0.0
    %2881 = vmatprep.subr.mxu0 0.0
    %2882 = vmatpush1.msra.mxu0 0.0
    %2883 = vmatprep.subr.mxu0 0.0
    %2884 = vmatpush1.msra.mxu0 0.0
    %2885 = vmatprep.subr.mxu0 0.0
    %2886 = vmatpush1.msra.mxu0 0.0
    %2887 = vmatprep.subr.mxu0 0.0
    %2888 = vmatpush1.msra.mxu0 0.0
    %2889 = vmatprep.subr.mxu0 0.0
    %2890 = vmatpush1.msra.mxu0 0.0
    %2891 = vmatprep.subr.mxu0 0.0
    %2892 = vmatpush1.msra.mxu0 0.0
    %2893 = vmatprep.subr.mxu0 0.0
    %2894 = vmatpush1.msra.mxu0 0.0
    %2895 = vmatprep.subr.mxu0 0.0
    %2896 = vmatpush1.msra.mxu0 0.0
    %2897 = vmatprep.subr.mxu0 0.0
    %2898 = vmatpush1.msra.mxu0 0.0
    %2899 = vmatprep.subr.mxu0 0.0
    %2900 = vmatpush1.msra.mxu0 0.0
    %2901 = vmatprep.subr.mxu0 0.0
    %2902 = vmatpush1.msra.mxu0 0.0
    %2903 = vmatprep.mubr.f32.mxu0 0.0
    %2904 = vmatmul.mubr.f32.gmra.mrb[0].mxu0 %v2828
    %v2905 = vpop.f32.mrb[0].mxu0
    %v2906 = vadd.f32 0.0, %v2905
    %v2907 = vpop.f32.mrb[0].mxu0
    %2908 = vmatprep.mubr.f32.mxu0 0.0
    %2909 = vmatmul.mubr.f32.gmra.mrb[0].mxu0 %v2831
    %v2910 = vpop.f32.mrb[0].mxu0
    %v2911 = vadd.f32 0.0, %v2910
    %v2912 = vpop.f32.mrb[0].mxu0
    %2913 = vmatprep.mubr.f32.mxu0 0.0
    %2914 = vmatmul.mubr.f32.gmra.mrb[0].mxu0 %v2834
    %v2915 = vpop.f32.mrb[0].mxu0
    %v2916 = vadd.f32 0.0, %v2915
    %v2917 = vpop.f32.mrb[0].mxu0
    %2918 = vmatprep.mubr.f32.mxu0 0.0
    %2919 = vmatmul.mubr.f32.gmra.mrb[0].mxu0 %v2837
    %v2920 = vpop.f32.mrb[0].mxu0
    %v2921 = vadd.f32 0.0, %v2920
    %v2922 = vpop.f32.mrb[0].mxu0
    %2923 = vdwg.mxu0
    %v2924 = vadd.f32 %v2800, %v2906
    %v2925 = vadd.f32 %v2805, %v2911
    %v2926 = vadd.f32 %v2810, %v2916
    %v2927 = vadd.f32 %v2815, %v2921
    %v2928 = vxor.u32 %v2924, 2147483648
    %v2929 = vxor.u32 %v2925, 2147483648
    %v2930 = vxor.u32 %v2926, 2147483648
    %v2931 = vxor.u32 %v2927, 2147483648
    %v2932 = vmul.f32 %v2928, 1.442695
    %v2933 = vpow.pop %v2932
    %v2934 = vmul.f32 %v2929, 1.442695
    %v2935 = vpow.pop %v2934
    %v2936 = vmul.f32 %v2930, 1.442695
    %v2937 = vpow.pop %v2936
    %v2938 = vmul.f32 %v2931, 1.442695
    %v2939 = vpow.pop %v2938
    %v2940 = vadd.f32 %v2933, 1.0
    %v2941 = vadd.f32 %v2935, 1.0
    %v2942 = vadd.f32 %v2937, 1.0
    %v2943 = vadd.f32 %v2939, 1.0
    %v2944 = vrcp.pop %v2940
    %v2945 = vmul.f32 1.0, %v2944
    %v2946 = vrcp.pop %v2941
    %v2947 = vmul.f32 1.0, %v2946
    %v2948 = vrcp.pop %v2942
    %v2949 = vmul.f32 1.0, %v2948
    %v2950 = vrcp.pop %v2943
    %v2951 = vmul.f32 1.0, %v2950
    %s2952 = sld [smem:[#allocation5]]
    %s2953 = sld [smem:[#allocation6]]
    %v2954 = vstv %s2952
    %v2955 = vmul.f32 %v1191, %v2954
    %v2956 = vmul.f32 %v1193, %v2954
    %v2957 = vmul.f32 %v1195, %v2954
    %v2958 = vmul.f32 %v1197, %v2954
    %v2959 = vadd.f32 %v2955, 1.0
    %v2960 = vadd.f32 %v2956, 1.0
    %v2961 = vadd.f32 %v2957, 1.0
    %v2962 = vadd.f32 %v2958, 1.0
    %v2963 = vmul.f32 %v2959, %v2945
    %v2964 = vmul.f32 %v2960, %v2947
    %v2965 = vmul.f32 %v2961, %v2949
    %v2966 = vmul.f32 %v2962, %v2951
    %v2967 = vstv %s2953
    %v2968 = vmul.f32 %v2963, %v2967
    %v2969 = vmul.f32 %v2964, %v2967
    %v2970 = vmul.f32 %v2965, %v2967
    %v2971 = vmul.f32 %v2966, %v2967
    %v2972 = vld [vmem:[%s12] sm:$0xff]
    %v2973 = vld [vmem:[%s12 + $0x8] sm:$0xff]
    %v2975 = vsel %vm2581, %v2968, 0
    %v2978 = vsel %vm2581, %v2969, 0
    %v2981 = vsel %vm2581, %v2970, 0
    %v2984 = vsel %vm2581, %v2971, 0
    %2986 = vmatprep.subr.mxu0 0.0
    %2987 = vmatpush1.msra.mxu0 %v2972
    %2988 = vmatprep.subr.mxu0 0.0
    %2989 = vmatpush1.msra.mxu0 %v2973
    %2990 = vmatprep.subr.mxu0 0.0
    %2991 = vmatpush1.msra.mxu0 0.0
    %2992 = vmatprep.subr.mxu0 0.0
    %2993 = vmatpush1.msra.mxu0 0.0
    %2994 = vmatprep.subr.mxu0 0.0
    %2995 = vmatpush1.msra.mxu0 0.0
    %2996 = vmatprep.subr.mxu0 0.0
    %2997 = vmatpush1.msra.mxu0 0.0
    %2998 = vmatprep.subr.mxu0 0.0
    %2999 = vmatpush1.msra.mxu0 0.0
    %3000 = vmatprep.subr.mxu0 0.0
    %3001 = vmatpush1.msra.mxu0 0.0
    %3002 = vmatprep.subr.mxu0 0.0
    %3003 = vmatpush1.msra.mxu0 0.0
    %3004 = vmatprep.subr.mxu0 0.0
    %3005 = vmatpush1.msra.mxu0 0.0
    %3006 = vmatprep.subr.mxu0 0.0
    %3007 = vmatpush1.msra.mxu0 0.0
    %3008 = vmatprep.subr.mxu0 0.0
    %3009 = vmatpush1.msra.mxu0 0.0
    %3010 = vmatprep.subr.mxu0 0.0
    %3011 = vmatpush1.msra.mxu0 0.0
    %3012 = vmatprep.subr.mxu0 0.0
    %3013 = vmatpush1.msra.mxu0 0.0
    %3014 = vmatprep.subr.mxu0 0.0
    %3015 = vmatpush1.msra.mxu0 0.0
    %3016 = vmatprep.subr.mxu0 0.0
    %3017 = vmatpush1.msra.mxu0 0.0
    %3018 = vmatprep.subr.mxu0 0.0
    %3019 = vmatpush1.msra.mxu0 0.0
    %3020 = vmatprep.subr.mxu0 0.0
    %3021 = vmatpush1.msra.mxu0 0.0
    %3022 = vmatprep.subr.mxu0 0.0
    %3023 = vmatpush1.msra.mxu0 0.0
    %3024 = vmatprep.subr.mxu0 0.0
    %3025 = vmatpush1.msra.mxu0 0.0
    %3026 = vmatprep.subr.mxu0 0.0
    %3027 = vmatpush1.msra.mxu0 0.0
    %3028 = vmatprep.subr.mxu0 0.0
    %3029 = vmatpush1.msra.mxu0 0.0
    %3030 = vmatprep.subr.mxu0 0.0
    %3031 = vmatpush1.msra.mxu0 0.0
    %3032 = vmatprep.subr.mxu0 0.0
    %3033 = vmatpush1.msra.mxu0 0.0
    %3034 = vmatprep.subr.mxu0 0.0
    %3035 = vmatpush1.msra.mxu0 0.0
    %3036 = vmatprep.subr.mxu0 0.0
    %3037 = vmatpush1.msra.mxu0 0.0
    %3038 = vmatprep.subr.mxu0 0.0
    %3039 = vmatpush1.msra.mxu0 0.0
    %3040 = vmatprep.subr.mxu0 0.0
    %3041 = vmatpush1.msra.mxu0 0.0
    %3042 = vmatprep.subr.mxu0 0.0
    %3043 = vmatpush1.msra.mxu0 0.0
    %3044 = vmatprep.subr.mxu0 0.0
    %3045 = vmatpush1.msra.mxu0 0.0
    %3046 = vmatprep.subr.mxu0 0.0
    %3047 = vmatpush1.msra.mxu0 0.0
    %3048 = vmatprep.subr.mxu0 0.0
    %3049 = vmatpush1.msra.mxu0 0.0
    %3050 = vmatprep.mubr.f32.mxu0 0.0
    %3051 = vmatmul.mubr.f32.gmra.mrb[0].mxu0 %v2975
    %v3052 = vpop.f32.mrb[0].mxu0
    %v3053 = vadd.f32 0.0, %v3052
    %v3054 = vpop.f32.mrb[0].mxu0
    %3055 = vmatprep.mubr.f32.mxu0 0.0
    %3056 = vmatmul.mubr.f32.gmra.mrb[0].mxu0 %v2978
    %v3057 = vpop.f32.mrb[0].mxu0
    %v3058 = vadd.f32 0.0, %v3057
    %v3059 = vpop.f32.mrb[0].mxu0
    %3060 = vmatprep.mubr.f32.mxu0 0.0
    %3061 = vmatmul.mubr.f32.gmra.mrb[0].mxu0 %v2981
    %v3062 = vpop.f32.mrb[0].mxu0
    %v3063 = vadd.f32 0.0, %v3062
    %v3064 = vpop.f32.mrb[0].mxu0
    %3065 = vmatprep.mubr.f32.mxu0 0.0
    %3066 = vmatmul.mubr.f32.gmra.mrb[0].mxu0 %v2984
    %v3067 = vpop.f32.mrb[0].mxu0
    %v3068 = vadd.f32 0.0, %v3067
    %v3069 = vpop.f32.mrb[0].mxu0
    %3070 = vdwg.mxu0
    %v3071 = vmul.f32 %v1696, %v3053
    %v3072 = vmul.f32 %v1697, %v3058
    %v3073 = vmul.f32 %v1698, %v3063
    %v3074 = vmul.f32 %v1699, %v3068
    %3075 = vst [vmem:[#allocation7] sm:$0xff] %v3071
    %3076 = vst [vmem:[#allocation7 + $0x8] sm:$0xff] %v3072
    %3077 = vst [vmem:[#allocation7 + $0x10] sm:$0xff] %v3073
    %3078 = vst [vmem:[#allocation7 + $0x18] sm:$0xff] %v3074
    %3079 = vst.msk [vmem:[%s19] sm:$0xff] %vm2581, %v1191
    %3080 = vst.msk [vmem:[%s19 + $0x8] sm:$0xff] %vm2581, %v1193
    %3081 = vst.msk [vmem:[%s19 + $0x10] sm:$0xff] %vm2581, %v1195
    %3082 = vst.msk [vmem:[%s19 + $0x18] sm:$0xff] %vm2581, %v1197
    // Predicated region
    $region74: #{tpu_custom_call.1} parent=1 // pred_check
      _
    $region75: #{tpu_custom_call.1} parent=1 // pred_check_branch
      %3084 = sbr.rel (0) target = $region77
    $region76: #{tpu_custom_call.1} parent=1 // pred_region
      %s3086 = ssub.s32 512, 512
      %3087 = vsyncadd [#allocation8], %s3086
      %s3088 = sshll.u32 [#allocation7], 4
      %s3089 = int_to_ptr.vmem [resolvable:$true] %s3088
      %3094 = dma.vmem_to_hbm [thread:$0]  %s3089, 512, %s18, [#allocation8], 128, 128, 8
    $region77: #{tpu_custom_call.1} parent=1 // pred_fallthru
      _
    // Predicated region
    $region78: #{tpu_custom_call.1} parent=1 // pred_check
      _
    $region79: #{tpu_custom_call.1} parent=1 // pred_check_branch
      %3096 = sbr.rel (0) target = $region81
    $region80: #{tpu_custom_call.1} parent=1 // pred_region
      _
    $region81: #{tpu_custom_call.1} parent=1 // pred_fallthru
      _
    // Predicated region
    $region82: #{tpu_custom_call.1} parent=1 // pred_check
      _
    $region83: #{tpu_custom_call.1} parent=1 // pred_check_branch
      %3098 = sbr.rel (0) target = $region85
    $region84: #{tpu_custom_call.1} parent=1 // pred_region
      %3099 = dma.done [#allocation8], 512
    $region85: #{tpu_custom_call.1} parent=1 // pred_fallthru
      _
    // Predicated region
    $region86: #{tpu_custom_call.1} parent=1 // pred_check
      _
    $region87: #{tpu_custom_call.1} parent=1 // pred_check_branch
      %3101 = sbr.rel (0) target = $region89
    $region88: #{tpu_custom_call.1} parent=1 // pred_region
      _
    $region89: #{tpu_custom_call.1} parent=1 // pred_fallthru
      _
    %3102 = vsyncpa [#allocation8], 1

</llo_original>
